<compile_context>
chip_gen: v7x
topology: tpu7x:2x2x1
jax: 0.10.0
libtpu: 0.0.40
codegen_flags: <defaults>
</compile_context>

<pallas_src>
import numpy as np

import jax
import jax.numpy as jnp
from jax.experimental import pallas as pl
from jax.experimental.pallas import tpu as pltpu

ALPHA = 0.02  # LeakyReLU negative slope (module passes 0.02 explicitly)


def _leaky(v):
    return jnp.where(v >= 0, v, ALPHA * v)


def _cnn_kernel(x_ref, w1b_ref, b1b_ref, w2b_ref, b2b_ref,
                s2in_ref, sf_ref, fw1r_ref, fb1_ref, fw2t_ref, fb2_ref,
                o_ref,
                xr1_ref, a1_ref, xr2_ref, a2_ref, s_ref):
    f32 = jnp.float32
    bf16 = jnp.bfloat16

    # ---------------- conv1 (1 -> 4, k3, s1, p1), channel-lane packed ----------------
    # xr1 rows: b*32 + p (p = padded row, [0,30)); lanes: co*32 + q (q = padded col, [0,30)),
    # input replicated across the 4 output-channel lane blocks.
    xr1_ref[...] = jnp.zeros_like(xr1_ref)
    xr1_ref[1:29, 1:29] = x_ref[0]
    xr1_ref[33:61, 1:29] = x_ref[1]
    xf = xr1_ref[...]
    xf = (xf + pltpu.roll(xf, 32, axis=1)
          + pltpu.roll(xf, 64, axis=1)
          + pltpu.roll(xf, 96, axis=1))      # replicate block 0 into all 4 channel blocks
    xr1_ref[...] = xf

    acc1 = jnp.zeros((64, 128), f32)
    for kh in range(3):
        rows = xr1_ref[kh:kh + 64, :]                       # row (kh) shift via offset load
        for kw in range(3):
            patch = pltpu.roll(rows, 128 - kw, axis=1) if kw else rows   # lane (kw) shift
            t = kh * 3 + kw
            acc1 = acc1 + patch * w1b_ref[t:t + 1, :]        # weight pre-broadcast per co block
    a1 = _leaky(acc1 + b1b_ref[...])                         # rows b*32+h, lanes co*32+w
    a1_ref[...] = a1

    # ---------------- maxpool 2x2/2 #1 + scatter into conv2's padded input ----------------
    even = a1_ref[pl.ds(0, 32, stride=2), :]                 # rows b*16 + i  (h = 2i)
    odd = a1_ref[pl.ds(1, 32, stride=2), :]                  # rows b*16 + i  (h = 2i+1)
    rmax = jnp.maximum(even, odd)
    cmax = jnp.maximum(rmax, pltpu.roll(rmax, 127, axis=1))  # even lanes hold the 2x2 max

    # xr2 rows: ci*64 + b*32 + p (p = padded row, [0,18)); lanes: co*32 + q (q padded, [0,18)).
    xr2_ref[...] = jnp.zeros_like(xr2_ref)
    for ci in range(4):
        # 0/1 matrix picks lanes ci*32+2j and scatters them to lanes co*32+2+j for all co.
        sel = jnp.dot(cmax, s2in_ref[ci], preferred_element_type=f32)    # (32, 128)
        xr2_ref[ci * 64 + 2:ci * 64 + 16, :] = sel[0:14, :]              # batch 0
        xr2_ref[ci * 64 + 34:ci * 64 + 48, :] = sel[16:30, :]            # batch 1

    # ---------------- conv2 (4 -> 4, k3, s1, p2), channel-lane packed ----------------
    acc2 = jnp.zeros((64, 128), f32)
    for ci in range(4):
        for kh in range(3):
            rows = xr2_ref[ci * 64 + kh:ci * 64 + kh + 64, :]
            for kw in range(3):
                patch = pltpu.roll(rows, 128 - kw, axis=1) if kw else rows
                t = ci * 9 + kh * 3 + kw
                acc2 = acc2 + patch * w2b_ref[t:t + 1, :]
    a2 = _leaky(acc2 + b2b_ref[...])                         # rows b*32+h, lanes co*32+w (16x16)
    a2_ref[...] = a2

    # ---------------- maxpool 2x2/2 #2 + flatten-compaction ----------------
    even2 = a2_ref[pl.ds(0, 32, stride=2), :]
    odd2 = a2_ref[pl.ds(1, 32, stride=2), :]
    rmax2 = jnp.maximum(even2, odd2)
    cmax2 = jnp.maximum(rmax2, pltpu.roll(rmax2, 127, axis=1))
    # s[b*16 + i, co*8 + j] = pool2[b, co, i, j]
    s_ref[...] = jnp.dot(cmax2, sf_ref[...], preferred_element_type=f32)   # (32, 32)

    # ---------------- fc1 (256 -> 512) contracted straight out of s_ref, then fc2 ----------------
    h1 = jnp.zeros((2, 512), f32)
    for i in range(8):
        rows = s_ref[pl.ds(i, 2, stride=16), :].astype(bf16)   # (2, 32): rows (b=0,i), (b=1,i)
        h1 = h1 + jnp.dot(rows, fw1r_ref[i], preferred_element_type=f32)
    h1 = h1 + fb1_ref[...]
    out = jnp.dot(h1.astype(bf16), fw2t_ref[...], preferred_element_type=f32) + fb2_ref[...]
    o_ref[...] = out.astype(o_ref.dtype)


def cnn_forward_pallas(x_nchw, p):
    """x_nchw: (2, 1, 28, 28) float32; p: params prepared once by prepare_params()."""
    x3 = x_nchw.reshape(2, 28, 28)
    vmem = pltpu.MemorySpace.VMEM
    return pl.pallas_call(
        _cnn_kernel,
        out_shape=jax.ShapeDtypeStruct((2, 10), jnp.float32),
        in_specs=[pl.BlockSpec(memory_space=vmem)] * 11,
        out_specs=pl.BlockSpec(memory_space=vmem),
        scratch_shapes=[
            pltpu.VMEM((72, 128), jnp.float32),    # padded, channel-replicated conv1 input
            pltpu.VMEM((64, 128), jnp.float32),    # conv1 activation (lane-packed)
            pltpu.VMEM((264, 128), jnp.float32),   # padded, channel-replicated conv2 input
            pltpu.VMEM((64, 128), jnp.float32),    # conv2 activation (lane-packed)
            pltpu.VMEM((32, 32), jnp.float32),     # pooled/flattened features
        ],
    )(x3, p["w1b"], p["b1b"], p["w2b"], p["b2b"],
      p["s2in"], p["sf"], p["fw1r"], p["fb1"], p["fw2t"], p["fb2"])


cnn_forward = jax.jit(cnn_forward_pallas)


# ---------------- parameter construction / one-time host-side layout prep ----------------

def init_params(key):
    ks = jax.random.split(key, 8)
    s = 0.1
    return {
        "w1": s * jax.random.normal(ks[0], (4, 1, 3, 3), jnp.float32),
        "b1": s * jax.random.normal(ks[1], (4,), jnp.float32),
        "w2": s * jax.random.normal(ks[2], (4, 4, 3, 3), jnp.float32),
        "b2": s * jax.random.normal(ks[3], (4,), jnp.float32),
        "fw1": s * jax.random.normal(ks[4], (512, 256), jnp.float32),   # torch (out, in)
        "fb1": s * jax.random.normal(ks[5], (512,), jnp.float32),
        "fw2": s * jax.random.normal(ks[6], (10, 512), jnp.float32),
        "fb2": s * jax.random.normal(ks[7], (10,), jnp.float32),
    }


def prepare_params(p):
    """One-time prep (outside the per-call path): broadcast conv weights along the
    channel-lane blocks, build the 0/1 pooling/scatter selection matrices, and
    re-layout fc weights (fc weights + feeds in bf16 for the MXU)."""
    # conv1: w1b[kh*3+kw, co*32 + w] = w1[co, 0, kh, kw]
    w1b = jnp.repeat(p["w1"].reshape(4, 9).T, 32, axis=1)                       # (9, 128)
    b1b = jnp.repeat(p["b1"], 32)[None, :]                                      # (1, 128)
    # conv2: w2b[ci*9 + t, co*32 + w] = w2[co, ci, t]
    w2b = jnp.repeat(
        p["w2"].reshape(4, 4, 9).transpose(1, 2, 0).reshape(36, 4), 32, axis=1)  # (36, 128)
    b2b = jnp.repeat(p["b2"], 32)[None, :]                                       # (1, 128)

    # Pool-1 selection/scatter: picks lane ci*32 + 2j, writes lane co*32 + 2 + j for all co.
    s2in = np.zeros((4, 128, 128), np.float32)
    for ci in range(4):
        for co in range(4):
            for j in range(14):
                s2in[ci, ci * 32 + 2 * j, co * 32 + 2 + j] = 1.0
    # Pool-2 selection/compaction: picks lane co*32 + 2j, writes lane co*8 + j.
    sf = np.zeros((128, 32), np.float32)
    for co in range(4):
        for j in range(8):
            sf[co * 32 + 2 * j, co * 8 + j] = 1.0

    # fc1: fw1r[i, c*8 + j, n] = fw1[n, c*64 + i*8 + j]  (torch flatten order is (c, i, j))
    fw1r = (p["fw1"].T.reshape(4, 8, 8, 512)
            .transpose(1, 0, 2, 3)
            .reshape(8, 32, 512)
            .astype(jnp.bfloat16))
    return {
        "w1b": w1b, "b1b": b1b, "w2b": w2b, "b2b": b2b,
        "s2in": jnp.asarray(s2in), "sf": jnp.asarray(sf),
        "fw1r": fw1r,
        "fb1": p["fb1"][None, :],
        "fw2t": p["fw2"].T.astype(jnp.bfloat16),
        "fb2": p["fb2"][None, :],
    }


def reference_forward(x, p):
    """Pure-JAX (XLA) replica of the PyTorch module, used only to validate the kernel."""
    def conv(v, w, b, pad):
        out = jax.lax.conv_general_dilated(
            v, w, window_strides=(1, 1), padding=[(pad, pad), (pad, pad)],
            dimension_numbers=("NCHW", "OIHW", "NCHW"))
        return out + b.reshape(1, -1, 1, 1)

    def pool(v):
        return jax.lax.reduce_window(v, -jnp.inf, jax.lax.max,
                                     (1, 1, 2, 2), (1, 1, 2, 2), "VALID")

    h = pool(_leaky(conv(x, p["w1"], p["b1"], 1)))
    h = pool(_leaky(conv(h, p["w2"], p["b2"], 2)))
    h = h.reshape(-1, 4 * 8 * 8)
    h = h @ p["fw1"].T + p["fb1"]
    return h @ p["fw2"].T + p["fb2"]


if __name__ == "__main__":
    key = jax.random.PRNGKey(0)
    kx, kp = jax.random.split(key)
    # batch=2, 1 channel, 28x28 (the only spatial size consistent with fc1's 4*8*8 input)
    x = jax.random.normal(kx, (2, 1, 28, 28), jnp.float32)
    params = init_params(kp)
    prepped = prepare_params(params)   # one-time layout prep, not in the per-call path

    out = cnn_forward(x, prepped)
    out = jax.block_until_ready(out)

    assert out.shape == (2, 10) and out.dtype == jnp.float32
    ref = reference_forward(x, params)
    err = float(jnp.max(jnp.abs(out - ref)))
    assert err < 3e-2, "mismatch vs reference, max abs diff = %f" % err
    print("KERNEL_OK")
</pallas_src>

<mosaic_0001>
module attributes {stable_mosaic.version = 11 : i64} {
  func.func @_cnn_kernel(%arg0: memref<2x28x28xf32, #tpu.memory_space<vmem>>, %arg1: memref<9x128xf32, #tpu.memory_space<vmem>>, %arg2: memref<1x128xf32, #tpu.memory_space<vmem>>, %arg3: memref<36x128xf32, #tpu.memory_space<vmem>>, %arg4: memref<1x128xf32, #tpu.memory_space<vmem>>, %arg5: memref<4x128x128xf32, #tpu.memory_space<vmem>>, %arg6: memref<128x32xf32, #tpu.memory_space<vmem>>, %arg7: memref<8x32x512xbf16, #tpu.memory_space<vmem>>, %arg8: memref<1x512xf32, #tpu.memory_space<vmem>>, %arg9: memref<512x10xbf16, #tpu.memory_space<vmem>>, %arg10: memref<1x10xf32, #tpu.memory_space<vmem>>, %arg11: memref<2x10xf32, #tpu.memory_space<vmem>>, %arg12: memref<72x128xf32, #tpu.memory_space<vmem>>, %arg13: memref<64x128xf32, #tpu.memory_space<vmem>>, %arg14: memref<264x128xf32, #tpu.memory_space<vmem>>, %arg15: memref<64x128xf32, #tpu.memory_space<vmem>>, %arg16: memref<32x32xf32, #tpu.memory_space<vmem>>) attributes {dimension_semantics = [], scalar_prefetch = 0 : i64, scratch_operands = 5 : i64, tpu.core_type = #tpu.core_type<tc>} {
    %cst = arith.constant 0.000000e+00 : f32
    %0 = vector.broadcast %cst : f32 to vector<72x128xf32>
    %c0 = arith.constant 0 : index
    %c0_0 = arith.constant 0 : index
    %1 = vector.load %arg12[%c0, %c0_0] : memref<72x128xf32, #tpu.memory_space<vmem>>, vector<72x128xf32>
    tpu.vector_store %arg12[%c0, %c0_0], %0 {strides = array<i32>} : memref<72x128xf32, #tpu.memory_space<vmem>>, vector<72x128xf32>,
    %c0_1 = arith.constant 0 : index
    %c0_2 = arith.constant 0 : index
    %c0_3 = arith.constant 0 : index
    %2 = vector.load %arg0[%c0_1, %c0_2, %c0_3] : memref<2x28x28xf32, #tpu.memory_space<vmem>>, vector<1x28x28xf32>
    %3 = vector.shape_cast %2 : vector<1x28x28xf32> to vector<28x28xf32>
    %c1 = arith.constant 1 : index
    %c1_4 = arith.constant 1 : index
    %4 = vector.load %arg12[%c1, %c1_4] : memref<72x128xf32, #tpu.memory_space<vmem>>, vector<28x28xf32>
    tpu.vector_store %arg12[%c1, %c1_4], %3 {strides = array<i32>} : memref<72x128xf32, #tpu.memory_space<vmem>>, vector<28x28xf32>,
    %c1_5 = arith.constant 1 : index
    %c0_6 = arith.constant 0 : index
    %c0_7 = arith.constant 0 : index
    %5 = vector.load %arg0[%c1_5, %c0_6, %c0_7] : memref<2x28x28xf32, #tpu.memory_space<vmem>>, vector<1x28x28xf32>
    %6 = vector.shape_cast %5 : vector<1x28x28xf32> to vector<28x28xf32>
    %c33 = arith.constant 33 : index
    %c1_8 = arith.constant 1 : index
    %7 = vector.load %arg12[%c33, %c1_8] : memref<72x128xf32, #tpu.memory_space<vmem>>, vector<28x28xf32>
    tpu.vector_store %arg12[%c33, %c1_8], %6 {strides = array<i32>} : memref<72x128xf32, #tpu.memory_space<vmem>>, vector<28x28xf32>,
    %c0_9 = arith.constant 0 : index
    %c0_10 = arith.constant 0 : index
    %8 = vector.load %arg12[%c0_9, %c0_10] : memref<72x128xf32, #tpu.memory_space<vmem>>, vector<72x128xf32>
    %c32_i32 = arith.constant 32 : i32
    %9 = tpu.dynamic_rotate %8 by %c32_i32 dim 1 : vector<72x128xf32>, i32 -> vector<72x128xf32>
    %10 = arith.addf %8, %9 : vector<72x128xf32>
    %c64_i32 = arith.constant 64 : i32
    %11 = tpu.dynamic_rotate %8 by %c64_i32 dim 1 : vector<72x128xf32>, i32 -> vector<72x128xf32>
    %12 = arith.addf %10, %11 : vector<72x128xf32>
    %c96_i32 = arith.constant 96 : i32
    %13 = tpu.dynamic_rotate %8 by %c96_i32 dim 1 : vector<72x128xf32>, i32 -> vector<72x128xf32>
    %14 = arith.addf %12, %13 : vector<72x128xf32>
    %c0_11 = arith.constant 0 : index
    %c0_12 = arith.constant 0 : index
    %15 = vector.load %arg12[%c0_11, %c0_12] : memref<72x128xf32, #tpu.memory_space<vmem>>, vector<72x128xf32>
    tpu.vector_store %arg12[%c0_11, %c0_12], %14 {strides = array<i32>} : memref<72x128xf32, #tpu.memory_space<vmem>>, vector<72x128xf32>,
    %cst_13 = arith.constant 0.000000e+00 : f32
    %16 = vector.broadcast %cst_13 : f32 to vector<64x128xf32>
    %c0_14 = arith.constant 0 : index
    %c0_15 = arith.constant 0 : index
    %17 = vector.load %arg12[%c0_14, %c0_15] : memref<72x128xf32, #tpu.memory_space<vmem>>, vector<64x128xf32>
    %c0_16 = arith.constant 0 : index
    %c0_17 = arith.constant 0 : index
    %18 = vector.load %arg1[%c0_16, %c0_17] : memref<9x128xf32, #tpu.memory_space<vmem>>, vector<1x128xf32>
    %19 = vector.broadcast %18 : vector<1x128xf32> to vector<64x128xf32>
    %20 = arith.mulf %17, %19 : vector<64x128xf32>
    %21 = arith.addf %16, %20 : vector<64x128xf32>
    %c127_i32 = arith.constant 127 : i32
    %22 = tpu.dynamic_rotate %17 by %c127_i32 dim 1 : vector<64x128xf32>, i32 -> vector<64x128xf32>
    %c1_18 = arith.constant 1 : index
    %c0_19 = arith.constant 0 : index
    %23 = vector.load %arg1[%c1_18, %c0_19] : memref<9x128xf32, #tpu.memory_space<vmem>>, vector<1x128xf32>
    %24 = vector.broadcast %23 : vector<1x128xf32> to vector<64x128xf32>
    %25 = arith.mulf %22, %24 : vector<64x128xf32>
    %26 = arith.addf %21, %25 : vector<64x128xf32>
    %c126_i32 = arith.constant 126 : i32
    %27 = tpu.dynamic_rotate %17 by %c126_i32 dim 1 : vector<64x128xf32>, i32 -> vector<64x128xf32>
    %c2 = arith.constant 2 : index
    %c0_20 = arith.constant 0 : index
    %28 = vector.load %arg1[%c2, %c0_20] : memref<9x128xf32, #tpu.memory_space<vmem>>, vector<1x128xf32>
    %29 = vector.broadcast %28 : vector<1x128xf32> to vector<64x128xf32>
    %30 = arith.mulf %27, %29 : vector<64x128xf32>
    %31 = arith.addf %26, %30 : vector<64x128xf32>
    %c1_21 = arith.constant 1 : index
    %c0_22 = arith.constant 0 : index
    %32 = vector.load %arg12[%c1_21, %c0_22] : memref<72x128xf32, #tpu.memory_space<vmem>>, vector<64x128xf32>
    %c3 = arith.constant 3 : index
    %c0_23 = arith.constant 0 : index
    %33 = vector.load %arg1[%c3, %c0_23] : memref<9x128xf32, #tpu.memory_space<vmem>>, vector<1x128xf32>
    %34 = vector.broadcast %33 : vector<1x128xf32> to vector<64x128xf32>
    %35 = arith.mulf %32, %34 : vector<64x128xf32>
    %36 = arith.addf %31, %35 : vector<64x128xf32>
    %c127_i32_24 = arith.constant 127 : i32
    %37 = tpu.dynamic_rotate %32 by %c127_i32_24 dim 1 : vector<64x128xf32>, i32 -> vector<64x128xf32>
    %c4 = arith.constant 4 : index
    %c0_25 = arith.constant 0 : index
    %38 = vector.load %arg1[%c4, %c0_25] : memref<9x128xf32, #tpu.memory_space<vmem>>, vector<1x128xf32>
    %39 = vector.broadcast %38 : vector<1x128xf32> to vector<64x128xf32>
    %40 = arith.mulf %37, %39 : vector<64x128xf32>
    %41 = arith.addf %36, %40 : vector<64x128xf32>
    %c126_i32_26 = arith.constant 126 : i32
    %42 = tpu.dynamic_rotate %32 by %c126_i32_26 dim 1 : vector<64x128xf32>, i32 -> vector<64x128xf32>
    %c5 = arith.constant 5 : index
    %c0_27 = arith.constant 0 : index
    %43 = vector.load %arg1[%c5, %c0_27] : memref<9x128xf32, #tpu.memory_space<vmem>>, vector<1x128xf32>
    %44 = vector.broadcast %43 : vector<1x128xf32> to vector<64x128xf32>
    %45 = arith.mulf %42, %44 : vector<64x128xf32>
    %46 = arith.addf %41, %45 : vector<64x128xf32>
    %c2_28 = arith.constant 2 : index
    %c0_29 = arith.constant 0 : index
    %47 = vector.load %arg12[%c2_28, %c0_29] : memref<72x128xf32, #tpu.memory_space<vmem>>, vector<64x128xf32>
    %c6 = arith.constant 6 : index
    %c0_30 = arith.constant 0 : index
    %48 = vector.load %arg1[%c6, %c0_30] : memref<9x128xf32, #tpu.memory_space<vmem>>, vector<1x128xf32>
    %49 = vector.broadcast %48 : vector<1x128xf32> to vector<64x128xf32>
    %50 = arith.mulf %47, %49 : vector<64x128xf32>
    %51 = arith.addf %46, %50 : vector<64x128xf32>
    %c127_i32_31 = arith.constant 127 : i32
    %52 = tpu.dynamic_rotate %47 by %c127_i32_31 dim 1 : vector<64x128xf32>, i32 -> vector<64x128xf32>
    %c7 = arith.constant 7 : index
    %c0_32 = arith.constant 0 : index
    %53 = vector.load %arg1[%c7, %c0_32] : memref<9x128xf32, #tpu.memory_space<vmem>>, vector<1x128xf32>
    %54 = vector.broadcast %53 : vector<1x128xf32> to vector<64x128xf32>
    %55 = arith.mulf %52, %54 : vector<64x128xf32>
    %56 = arith.addf %51, %55 : vector<64x128xf32>
    %c126_i32_33 = arith.constant 126 : i32
    %57 = tpu.dynamic_rotate %47 by %c126_i32_33 dim 1 : vector<64x128xf32>, i32 -> vector<64x128xf32>
    %c8 = arith.constant 8 : index
    %c0_34 = arith.constant 0 : index
    %58 = vector.load %arg1[%c8, %c0_34] : memref<9x128xf32, #tpu.memory_space<vmem>>, vector<1x128xf32>
    %59 = vector.broadcast %58 : vector<1x128xf32> to vector<64x128xf32>
    %60 = arith.mulf %57, %59 : vector<64x128xf32>
    %61 = arith.addf %56, %60 : vector<64x128xf32>
    %c0_35 = arith.constant 0 : index
    %c0_36 = arith.constant 0 : index
    %62 = vector.load %arg2[%c0_35, %c0_36] : memref<1x128xf32, #tpu.memory_space<vmem>>, vector<1x128xf32>
    %63 = vector.broadcast %62 : vector<1x128xf32> to vector<64x128xf32>
    %64 = arith.addf %61, %63 : vector<64x128xf32>
    %cst_37 = arith.constant 0.000000e+00 : f32
    %65 = vector.broadcast %cst_37 : f32 to vector<64x128xf32>
    %66 = arith.cmpf oge, %64, %65 : vector<64x128xf32>
    %cst_38 = arith.constant 2.000000e-02 : f32
    %67 = vector.broadcast %cst_38 : f32 to vector<64x128xf32>
    %68 = arith.mulf %67, %64 : vector<64x128xf32>
    %69 = arith.select %66, %64, %68 : vector<64x128xi1>, vector<64x128xf32>
    %c0_39 = arith.constant 0 : index
    %c0_40 = arith.constant 0 : index
    %70 = vector.load %arg13[%c0_39, %c0_40] : memref<64x128xf32, #tpu.memory_space<vmem>>, vector<64x128xf32>
    tpu.vector_store %arg13[%c0_39, %c0_40], %69 {strides = array<i32>} : memref<64x128xf32, #tpu.memory_space<vmem>>, vector<64x128xf32>,
    %c0_41 = arith.constant 0 : index
    %c0_42 = arith.constant 0 : index
    %71 = tpu.strided_load %arg13[%c0_41, %c0_42] {strides = array<i32: 2, 1>} : memref<64x128xf32, #tpu.memory_space<vmem>>, vector<32x128xf32>
    %c1_43 = arith.constant 1 : index
    %c0_44 = arith.constant 0 : index
    %72 = tpu.strided_load %arg13[%c1_43, %c0_44] {strides = array<i32: 2, 1>} : memref<64x128xf32, #tpu.memory_space<vmem>>, vector<32x128xf32>
    %73 = arith.maximumf %71, %72 : vector<32x128xf32>
    %c127_i32_45 = arith.constant 127 : i32
    %74 = tpu.dynamic_rotate %73 by %c127_i32_45 dim 1 : vector<32x128xf32>, i32 -> vector<32x128xf32>
    %75 = arith.maximumf %73, %74 : vector<32x128xf32>
    %cst_46 = arith.constant 0.000000e+00 : f32
    %76 = vector.broadcast %cst_46 : f32 to vector<264x128xf32>
    %c0_47 = arith.constant 0 : index
    %c0_48 = arith.constant 0 : index
    %77 = vector.load %arg14[%c0_47, %c0_48] : memref<264x128xf32, #tpu.memory_space<vmem>>, vector<264x128xf32>
    tpu.vector_store %arg14[%c0_47, %c0_48], %76 {strides = array<i32>} : memref<264x128xf32, #tpu.memory_space<vmem>>, vector<264x128xf32>,
    %c0_49 = arith.constant 0 : index
    %c0_50 = arith.constant 0 : index
    %c0_51 = arith.constant 0 : index
    %78 = vector.load %arg5[%c0_49, %c0_50, %c0_51] : memref<4x128x128xf32, #tpu.memory_space<vmem>>, vector<1x128x128xf32>
    %79 = vector.shape_cast %78 : vector<1x128x128xf32> to vector<128x128xf32>
    %cst_52 = arith.constant dense<0.000000e+00> : vector<32x128xf32>
    %80 = tpu.matmul %75, %79, %cst_52 {dimension_numbers = #tpu.dot_dimension_numbers<[1], [0], [0], [1], [0, 0, 1, 1], [], []>} : vector<32x128xf32>, vector<128x128xf32>, vector<32x128xf32> -> vector<32x128xf32>
    %81 = vector.extract_strided_slice %80 {offsets = [0, 0], sizes = [14, 128], strides = [1, 1]} : vector<32x128xf32> to vector<14x128xf32>
    %c2_53 = arith.constant 2 : index
    %c0_54 = arith.constant 0 : index
    %82 = vector.load %arg14[%c2_53, %c0_54] : memref<264x128xf32, #tpu.memory_space<vmem>>, vector<14x128xf32>
    tpu.vector_store %arg14[%c2_53, %c0_54], %81 {strides = array<i32>} : memref<264x128xf32, #tpu.memory_space<vmem>>, vector<14x128xf32>,
    %83 = vector.extract_strided_slice %80 {offsets = [16, 0], sizes = [14, 128], strides = [1, 1]} : vector<32x128xf32> to vector<14x128xf32>
    %c34 = arith.constant 34 : index
    %c0_55 = arith.constant 0 : index
    %84 = vector.load %arg14[%c34, %c0_55] : memref<264x128xf32, #tpu.memory_space<vmem>>, vector<14x128xf32>
    tpu.vector_store %arg14[%c34, %c0_55], %83 {strides = array<i32>} : memref<264x128xf32, #tpu.memory_space<vmem>>, vector<14x128xf32>,
    %c1_56 = arith.constant 1 : index
    %c0_57 = arith.constant 0 : index
    %c0_58 = arith.constant 0 : index
    %85 = vector.load %arg5[%c1_56, %c0_57, %c0_58] : memref<4x128x128xf32, #tpu.memory_space<vmem>>, vector<1x128x128xf32>
    %86 = vector.shape_cast %85 : vector<1x128x128xf32> to vector<128x128xf32>
    %cst_59 = arith.constant dense<0.000000e+00> : vector<32x128xf32>
    %87 = tpu.matmul %75, %86, %cst_59 {dimension_numbers = #tpu.dot_dimension_numbers<[1], [0], [0], [1], [0, 0, 1, 1], [], []>} : vector<32x128xf32>, vector<128x128xf32>, vector<32x128xf32> -> vector<32x128xf32>
    %88 = vector.extract_strided_slice %87 {offsets = [0, 0], sizes = [14, 128], strides = [1, 1]} : vector<32x128xf32> to vector<14x128xf32>
    %c66 = arith.constant 66 : index
    %c0_60 = arith.constant 0 : index
    %89 = vector.load %arg14[%c66, %c0_60] : memref<264x128xf32, #tpu.memory_space<vmem>>, vector<14x128xf32>
    tpu.vector_store %arg14[%c66, %c0_60], %88 {strides = array<i32>} : memref<264x128xf32, #tpu.memory_space<vmem>>, vector<14x128xf32>,
    %90 = vector.extract_strided_slice %87 {offsets = [16, 0], sizes = [14, 128], strides = [1, 1]} : vector<32x128xf32> to vector<14x128xf32>
    %c98 = arith.constant 98 : index
    %c0_61 = arith.constant 0 : index
    %91 = vector.load %arg14[%c98, %c0_61] : memref<264x128xf32, #tpu.memory_space<vmem>>, vector<14x128xf32>
    tpu.vector_store %arg14[%c98, %c0_61], %90 {strides = array<i32>} : memref<264x128xf32, #tpu.memory_space<vmem>>, vector<14x128xf32>,
    %c2_62 = arith.constant 2 : index
    %c0_63 = arith.constant 0 : index
    %c0_64 = arith.constant 0 : index
    %92 = vector.load %arg5[%c2_62, %c0_63, %c0_64] : memref<4x128x128xf32, #tpu.memory_space<vmem>>, vector<1x128x128xf32>
    %93 = vector.shape_cast %92 : vector<1x128x128xf32> to vector<128x128xf32>
    %cst_65 = arith.constant dense<0.000000e+00> : vector<32x128xf32>
    %94 = tpu.matmul %75, %93, %cst_65 {dimension_numbers = #tpu.dot_dimension_numbers<[1], [0], [0], [1], [0, 0, 1, 1], [], []>} : vector<32x128xf32>, vector<128x128xf32>, vector<32x128xf32> -> vector<32x128xf32>
    %95 = vector.extract_strided_slice %94 {offsets = [0, 0], sizes = [14, 128], strides = [1, 1]} : vector<32x128xf32> to vector<14x128xf32>
    %c130 = arith.constant 130 : index
    %c0_66 = arith.constant 0 : index
    %96 = vector.load %arg14[%c130, %c0_66] : memref<264x128xf32, #tpu.memory_space<vmem>>, vector<14x128xf32>
    tpu.vector_store %arg14[%c130, %c0_66], %95 {strides = array<i32>} : memref<264x128xf32, #tpu.memory_space<vmem>>, vector<14x128xf32>,
    %97 = vector.extract_strided_slice %94 {offsets = [16, 0], sizes = [14, 128], strides = [1, 1]} : vector<32x128xf32> to vector<14x128xf32>
    %c162 = arith.constant 162 : index
    %c0_67 = arith.constant 0 : index
    %98 = vector.load %arg14[%c162, %c0_67] : memref<264x128xf32, #tpu.memory_space<vmem>>, vector<14x128xf32>
    tpu.vector_store %arg14[%c162, %c0_67], %97 {strides = array<i32>} : memref<264x128xf32, #tpu.memory_space<vmem>>, vector<14x128xf32>,
    %c3_68 = arith.constant 3 : index
    %c0_69 = arith.constant 0 : index
    %c0_70 = arith.constant 0 : index
    %99 = vector.load %arg5[%c3_68, %c0_69, %c0_70] : memref<4x128x128xf32, #tpu.memory_space<vmem>>, vector<1x128x128xf32>
    %100 = vector.shape_cast %99 : vector<1x128x128xf32> to vector<128x128xf32>
    %cst_71 = arith.constant dense<0.000000e+00> : vector<32x128xf32>
    %101 = tpu.matmul %75, %100, %cst_71 {dimension_numbers = #tpu.dot_dimension_numbers<[1], [0], [0], [1], [0, 0, 1, 1], [], []>} : vector<32x128xf32>, vector<128x128xf32>, vector<32x128xf32> -> vector<32x128xf32>
    %102 = vector.extract_strided_slice %101 {offsets = [0, 0], sizes = [14, 128], strides = [1, 1]} : vector<32x128xf32> to vector<14x128xf32>
    %c194 = arith.constant 194 : index
    %c0_72 = arith.constant 0 : index
    %103 = vector.load %arg14[%c194, %c0_72] : memref<264x128xf32, #tpu.memory_space<vmem>>, vector<14x128xf32>
    tpu.vector_store %arg14[%c194, %c0_72], %102 {strides = array<i32>} : memref<264x128xf32, #tpu.memory_space<vmem>>, vector<14x128xf32>,
    %104 = vector.extract_strided_slice %101 {offsets = [16, 0], sizes = [14, 128], strides = [1, 1]} : vector<32x128xf32> to vector<14x128xf32>
    %c226 = arith.constant 226 : index
    %c0_73 = arith.constant 0 : index
    %105 = vector.load %arg14[%c226, %c0_73] : memref<264x128xf32, #tpu.memory_space<vmem>>, vector<14x128xf32>
    tpu.vector_store %arg14[%c226, %c0_73], %104 {strides = array<i32>} : memref<264x128xf32, #tpu.memory_space<vmem>>, vector<14x128xf32>,
    %cst_74 = arith.constant 0.000000e+00 : f32
    %106 = vector.broadcast %cst_74 : f32 to vector<64x128xf32>
    %c0_75 = arith.constant 0 : index
    %c0_76 = arith.constant 0 : index
    %107 = vector.load %arg14[%c0_75, %c0_76] : memref<264x128xf32, #tpu.memory_space<vmem>>, vector<64x128xf32>
    %c0_77 = arith.constant 0 : index
    %c0_78 = arith.constant 0 : index
    %108 = vector.load %arg3[%c0_77, %c0_78] : memref<36x128xf32, #tpu.memory_space<vmem>>, vector<1x128xf32>
    %109 = vector.broadcast %108 : vector<1x128xf32> to vector<64x128xf32>
    %110 = arith.mulf %107, %109 : vector<64x128xf32>
    %111 = arith.addf %106, %110 : vector<64x128xf32>
    %c127_i32_79 = arith.constant 127 : i32
    %112 = tpu.dynamic_rotate %107 by %c127_i32_79 dim 1 : vector<64x128xf32>, i32 -> vector<64x128xf32>
    %c1_80 = arith.constant 1 : index
    %c0_81 = arith.constant 0 : index
    %113 = vector.load %arg3[%c1_80, %c0_81] : memref<36x128xf32, #tpu.memory_space<vmem>>, vector<1x128xf32>
    %114 = vector.broadcast %113 : vector<1x128xf32> to vector<64x128xf32>
    %115 = arith.mulf %112, %114 : vector<64x128xf32>
    %116 = arith.addf %111, %115 : vector<64x128xf32>
    %c126_i32_82 = arith.constant 126 : i32
    %117 = tpu.dynamic_rotate %107 by %c126_i32_82 dim 1 : vector<64x128xf32>, i32 -> vector<64x128xf32>
    %c2_83 = arith.constant 2 : index
    %c0_84 = arith.constant 0 : index
    %118 = vector.load %arg3[%c2_83, %c0_84] : memref<36x128xf32, #tpu.memory_space<vmem>>, vector<1x128xf32>
    %119 = vector.broadcast %118 : vector<1x128xf32> to vector<64x128xf32>
    %120 = arith.mulf %117, %119 : vector<64x128xf32>
    %121 = arith.addf %116, %120 : vector<64x128xf32>
    %c1_85 = arith.constant 1 : index
    %c0_86 = arith.constant 0 : index
    %122 = vector.load %arg14[%c1_85, %c0_86] : memref<264x128xf32, #tpu.memory_space<vmem>>, vector<64x128xf32>
    %c3_87 = arith.constant 3 : index
    %c0_88 = arith.constant 0 : index
    %123 = vector.load %arg3[%c3_87, %c0_88] : memref<36x128xf32, #tpu.memory_space<vmem>>, vector<1x128xf32>
    %124 = vector.broadcast %123 : vector<1x128xf32> to vector<64x128xf32>
    %125 = arith.mulf %122, %124 : vector<64x128xf32>
    %126 = arith.addf %121, %125 : vector<64x128xf32>
    %c127_i32_89 = arith.constant 127 : i32
    %127 = tpu.dynamic_rotate %122 by %c127_i32_89 dim 1 : vector<64x128xf32>, i32 -> vector<64x128xf32>
    %c4_90 = arith.constant 4 : index
    %c0_91 = arith.constant 0 : index
    %128 = vector.load %arg3[%c4_90, %c0_91] : memref<36x128xf32, #tpu.memory_space<vmem>>, vector<1x128xf32>
    %129 = vector.broadcast %128 : vector<1x128xf32> to vector<64x128xf32>
    %130 = arith.mulf %127, %129 : vector<64x128xf32>
    %131 = arith.addf %126, %130 : vector<64x128xf32>
    %c126_i32_92 = arith.constant 126 : i32
    %132 = tpu.dynamic_rotate %122 by %c126_i32_92 dim 1 : vector<64x128xf32>, i32 -> vector<64x128xf32>
    %c5_93 = arith.constant 5 : index
    %c0_94 = arith.constant 0 : index
    %133 = vector.load %arg3[%c5_93, %c0_94] : memref<36x128xf32, #tpu.memory_space<vmem>>, vector<1x128xf32>
    %134 = vector.broadcast %133 : vector<1x128xf32> to vector<64x128xf32>
    %135 = arith.mulf %132, %134 : vector<64x128xf32>
    %136 = arith.addf %131, %135 : vector<64x128xf32>
    %c2_95 = arith.constant 2 : index
    %c0_96 = arith.constant 0 : index
    %137 = vector.load %arg14[%c2_95, %c0_96] : memref<264x128xf32, #tpu.memory_space<vmem>>, vector<64x128xf32>
    %c6_97 = arith.constant 6 : index
    %c0_98 = arith.constant 0 : index
    %138 = vector.load %arg3[%c6_97, %c0_98] : memref<36x128xf32, #tpu.memory_space<vmem>>, vector<1x128xf32>
    %139 = vector.broadcast %138 : vector<1x128xf32> to vector<64x128xf32>
    %140 = arith.mulf %137, %139 : vector<64x128xf32>
    %141 = arith.addf %136, %140 : vector<64x128xf32>
    %c127_i32_99 = arith.constant 127 : i32
    %142 = tpu.dynamic_rotate %137 by %c127_i32_99 dim 1 : vector<64x128xf32>, i32 -> vector<64x128xf32>
    %c7_100 = arith.constant 7 : index
    %c0_101 = arith.constant 0 : index
    %143 = vector.load %arg3[%c7_100, %c0_101] : memref<36x128xf32, #tpu.memory_space<vmem>>, vector<1x128xf32>
    %144 = vector.broadcast %143 : vector<1x128xf32> to vector<64x128xf32>
    %145 = arith.mulf %142, %144 : vector<64x128xf32>
    %146 = arith.addf %141, %145 : vector<64x128xf32>
    %c126_i32_102 = arith.constant 126 : i32
    %147 = tpu.dynamic_rotate %137 by %c126_i32_102 dim 1 : vector<64x128xf32>, i32 -> vector<64x128xf32>
    %c8_103 = arith.constant 8 : index
    %c0_104 = arith.constant 0 : index
    %148 = vector.load %arg3[%c8_103, %c0_104] : memref<36x128xf32, #tpu.memory_space<vmem>>, vector<1x128xf32>
    %149 = vector.broadcast %148 : vector<1x128xf32> to vector<64x128xf32>
    %150 = arith.mulf %147, %149 : vector<64x128xf32>
    %151 = arith.addf %146, %150 : vector<64x128xf32>
    %c64 = arith.constant 64 : index
    %c0_105 = arith.constant 0 : index
    %152 = vector.load %arg14[%c64, %c0_105] : memref<264x128xf32, #tpu.memory_space<vmem>>, vector<64x128xf32>
    %c9 = arith.constant 9 : index
    %c0_106 = arith.constant 0 : index
    %153 = vector.load %arg3[%c9, %c0_106] : memref<36x128xf32, #tpu.memory_space<vmem>>, vector<1x128xf32>
    %154 = vector.broadcast %153 : vector<1x128xf32> to vector<64x128xf32>
    %155 = arith.mulf %152, %154 : vector<64x128xf32>
    %156 = arith.addf %151, %155 : vector<64x128xf32>
    %c127_i32_107 = arith.constant 127 : i32
    %157 = tpu.dynamic_rotate %152 by %c127_i32_107 dim 1 : vector<64x128xf32>, i32 -> vector<64x128xf32>
    %c10 = arith.constant 10 : index
    %c0_108 = arith.constant 0 : index
    %158 = vector.load %arg3[%c10, %c0_108] : memref<36x128xf32, #tpu.memory_space<vmem>>, vector<1x128xf32>
    %159 = vector.broadcast %158 : vector<1x128xf32> to vector<64x128xf32>
    %160 = arith.mulf %157, %159 : vector<64x128xf32>
    %161 = arith.addf %156, %160 : vector<64x128xf32>
    %c126_i32_109 = arith.constant 126 : i32
    %162 = tpu.dynamic_rotate %152 by %c126_i32_109 dim 1 : vector<64x128xf32>, i32 -> vector<64x128xf32>
    %c11 = arith.constant 11 : index
    %c0_110 = arith.constant 0 : index
    %163 = vector.load %arg3[%c11, %c0_110] : memref<36x128xf32, #tpu.memory_space<vmem>>, vector<1x128xf32>
    %164 = vector.broadcast %163 : vector<1x128xf32> to vector<64x128xf32>
    %165 = arith.mulf %162, %164 : vector<64x128xf32>
    %166 = arith.addf %161, %165 : vector<64x128xf32>
    %c65 = arith.constant 65 : index
    %c0_111 = arith.constant 0 : index
    %167 = vector.load %arg14[%c65, %c0_111] : memref<264x128xf32, #tpu.memory_space<vmem>>, vector<64x128xf32>
    %c12 = arith.constant 12 : index
    %c0_112 = arith.constant 0 : index
    %168 = vector.load %arg3[%c12, %c0_112] : memref<36x128xf32, #tpu.memory_space<vmem>>, vector<1x128xf32>
    %169 = vector.broadcast %168 : vector<1x128xf32> to vector<64x128xf32>
    %170 = arith.mulf %167, %169 : vector<64x128xf32>
    %171 = arith.addf %166, %170 : vector<64x128xf32>
    %c127_i32_113 = arith.constant 127 : i32
    %172 = tpu.dynamic_rotate %167 by %c127_i32_113 dim 1 : vector<64x128xf32>, i32 -> vector<64x128xf32>
    %c13 = arith.constant 13 : index
    %c0_114 = arith.constant 0 : index
    %173 = vector.load %arg3[%c13, %c0_114] : memref<36x128xf32, #tpu.memory_space<vmem>>, vector<1x128xf32>
    %174 = vector.broadcast %173 : vector<1x128xf32> to vector<64x128xf32>
    %175 = arith.mulf %172, %174 : vector<64x128xf32>
    %176 = arith.addf %171, %175 : vector<64x128xf32>
    %c126_i32_115 = arith.constant 126 : i32
    %177 = tpu.dynamic_rotate %167 by %c126_i32_115 dim 1 : vector<64x128xf32>, i32 -> vector<64x128xf32>
    %c14 = arith.constant 14 : index
    %c0_116 = arith.constant 0 : index
    %178 = vector.load %arg3[%c14, %c0_116] : memref<36x128xf32, #tpu.memory_space<vmem>>, vector<1x128xf32>
    %179 = vector.broadcast %178 : vector<1x128xf32> to vector<64x128xf32>
    %180 = arith.mulf %177, %179 : vector<64x128xf32>
    %181 = arith.addf %176, %180 : vector<64x128xf32>
    %c66_117 = arith.constant 66 : index
    %c0_118 = arith.constant 0 : index
    %182 = vector.load %arg14[%c66_117, %c0_118] : memref<264x128xf32, #tpu.memory_space<vmem>>, vector<64x128xf32>
    %c15 = arith.constant 15 : index
    %c0_119 = arith.constant 0 : index
    %183 = vector.load %arg3[%c15, %c0_119] : memref<36x128xf32, #tpu.memory_space<vmem>>, vector<1x128xf32>
    %184 = vector.broadcast %183 : vector<1x128xf32> to vector<64x128xf32>
    %185 = arith.mulf %182, %184 : vector<64x128xf32>
    %186 = arith.addf %181, %185 : vector<64x128xf32>
    %c127_i32_120 = arith.constant 127 : i32
    %187 = tpu.dynamic_rotate %182 by %c127_i32_120 dim 1 : vector<64x128xf32>, i32 -> vector<64x128xf32>
    %c16 = arith.constant 16 : index
    %c0_121 = arith.constant 0 : index
    %188 = vector.load %arg3[%c16, %c0_121] : memref<36x128xf32, #tpu.memory_space<vmem>>, vector<1x128xf32>
    %189 = vector.broadcast %188 : vector<1x128xf32> to vector<64x128xf32>
    %190 = arith.mulf %187, %189 : vector<64x128xf32>
    %191 = arith.addf %186, %190 : vector<64x128xf32>
    %c126_i32_122 = arith.constant 126 : i32
    %192 = tpu.dynamic_rotate %182 by %c126_i32_122 dim 1 : vector<64x128xf32>, i32 -> vector<64x128xf32>
    %c17 = arith.constant 17 : index
    %c0_123 = arith.constant 0 : index
    %193 = vector.load %arg3[%c17, %c0_123] : memref<36x128xf32, #tpu.memory_space<vmem>>, vector<1x128xf32>
    %194 = vector.broadcast %193 : vector<1x128xf32> to vector<64x128xf32>
    %195 = arith.mulf %192, %194 : vector<64x128xf32>
    %196 = arith.addf %191, %195 : vector<64x128xf32>
    %c128 = arith.constant 128 : index
    %c0_124 = arith.constant 0 : index
    %197 = vector.load %arg14[%c128, %c0_124] : memref<264x128xf32, #tpu.memory_space<vmem>>, vector<64x128xf32>
    %c18 = arith.constant 18 : index
    %c0_125 = arith.constant 0 : index
    %198 = vector.load %arg3[%c18, %c0_125] : memref<36x128xf32, #tpu.memory_space<vmem>>, vector<1x128xf32>
    %199 = vector.broadcast %198 : vector<1x128xf32> to vector<64x128xf32>
    %200 = arith.mulf %197, %199 : vector<64x128xf32>
    %201 = arith.addf %196, %200 : vector<64x128xf32>
    %c127_i32_126 = arith.constant 127 : i32
    %202 = tpu.dynamic_rotate %197 by %c127_i32_126 dim 1 : vector<64x128xf32>, i32 -> vector<64x128xf32>
    %c19 = arith.constant 19 : index
    %c0_127 = arith.constant 0 : index
    %203 = vector.load %arg3[%c19, %c0_127] : memref<36x128xf32, #tpu.memory_space<vmem>>, vector<1x128xf32>
    %204 = vector.broadcast %203 : vector<1x128xf32> to vector<64x128xf32>
    %205 = arith.mulf %202, %204 : vector<64x128xf32>
    %206 = arith.addf %201, %205 : vector<64x128xf32>
    %c126_i32_128 = arith.constant 126 : i32
    %207 = tpu.dynamic_rotate %197 by %c126_i32_128 dim 1 : vector<64x128xf32>, i32 -> vector<64x128xf32>
    %c20 = arith.constant 20 : index
    %c0_129 = arith.constant 0 : index
    %208 = vector.load %arg3[%c20, %c0_129] : memref<36x128xf32, #tpu.memory_space<vmem>>, vector<1x128xf32>
    %209 = vector.broadcast %208 : vector<1x128xf32> to vector<64x128xf32>
    %210 = arith.mulf %207, %209 : vector<64x128xf32>
    %211 = arith.addf %206, %210 : vector<64x128xf32>
    %c129 = arith.constant 129 : index
    %c0_130 = arith.constant 0 : index
    %212 = vector.load %arg14[%c129, %c0_130] : memref<264x128xf32, #tpu.memory_space<vmem>>, vector<64x128xf32>
    %c21 = arith.constant 21 : index
    %c0_131 = arith.constant 0 : index
    %213 = vector.load %arg3[%c21, %c0_131] : memref<36x128xf32, #tpu.memory_space<vmem>>, vector<1x128xf32>
    %214 = vector.broadcast %213 : vector<1x128xf32> to vector<64x128xf32>
    %215 = arith.mulf %212, %214 : vector<64x128xf32>
    %216 = arith.addf %211, %215 : vector<64x128xf32>
    %c127_i32_132 = arith.constant 127 : i32
    %217 = tpu.dynamic_rotate %212 by %c127_i32_132 dim 1 : vector<64x128xf32>, i32 -> vector<64x128xf32>
    %c22 = arith.constant 22 : index
    %c0_133 = arith.constant 0 : index
    %218 = vector.load %arg3[%c22, %c0_133] : memref<36x128xf32, #tpu.memory_space<vmem>>, vector<1x128xf32>
    %219 = vector.broadcast %218 : vector<1x128xf32> to vector<64x128xf32>
    %220 = arith.mulf %217, %219 : vector<64x128xf32>
    %221 = arith.addf %216, %220 : vector<64x128xf32>
    %c126_i32_134 = arith.constant 126 : i32
    %222 = tpu.dynamic_rotate %212 by %c126_i32_134 dim 1 : vector<64x128xf32>, i32 -> vector<64x128xf32>
    %c23 = arith.constant 23 : index
    %c0_135 = arith.constant 0 : index
    %223 = vector.load %arg3[%c23, %c0_135] : memref<36x128xf32, #tpu.memory_space<vmem>>, vector<1x128xf32>
    %224 = vector.broadcast %223 : vector<1x128xf32> to vector<64x128xf32>
    %225 = arith.mulf %222, %224 : vector<64x128xf32>
    %226 = arith.addf %221, %225 : vector<64x128xf32>
    %c130_136 = arith.constant 130 : index
    %c0_137 = arith.constant 0 : index
    %227 = vector.load %arg14[%c130_136, %c0_137] : memref<264x128xf32, #tpu.memory_space<vmem>>, vector<64x128xf32>
    %c24 = arith.constant 24 : index
    %c0_138 = arith.constant 0 : index
    %228 = vector.load %arg3[%c24, %c0_138] : memref<36x128xf32, #tpu.memory_space<vmem>>, vector<1x128xf32>
    %229 = vector.broadcast %228 : vector<1x128xf32> to vector<64x128xf32>
    %230 = arith.mulf %227, %229 : vector<64x128xf32>
    %231 = arith.addf %226, %230 : vector<64x128xf32>
    %c127_i32_139 = arith.constant 127 : i32
    %232 = tpu.dynamic_rotate %227 by %c127_i32_139 dim 1 : vector<64x128xf32>, i32 -> vector<64x128xf32>
    %c25 = arith.constant 25 : index
    %c0_140 = arith.constant 0 : index
    %233 = vector.load %arg3[%c25, %c0_140] : memref<36x128xf32, #tpu.memory_space<vmem>>, vector<1x128xf32>
    %234 = vector.broadcast %233 : vector<1x128xf32> to vector<64x128xf32>
    %235 = arith.mulf %232, %234 : vector<64x128xf32>
    %236 = arith.addf %231, %235 : vector<64x128xf32>
    %c126_i32_141 = arith.constant 126 : i32
    %237 = tpu.dynamic_rotate %227 by %c126_i32_141 dim 1 : vector<64x128xf32>, i32 -> vector<64x128xf32>
    %c26 = arith.constant 26 : index
    %c0_142 = arith.constant 0 : index
    %238 = vector.load %arg3[%c26, %c0_142] : memref<36x128xf32, #tpu.memory_space<vmem>>, vector<1x128xf32>
    %239 = vector.broadcast %238 : vector<1x128xf32> to vector<64x128xf32>
    %240 = arith.mulf %237, %239 : vector<64x128xf32>
    %241 = arith.addf %236, %240 : vector<64x128xf32>
    %c192 = arith.constant 192 : index
    %c0_143 = arith.constant 0 : index
    %242 = vector.load %arg14[%c192, %c0_143] : memref<264x128xf32, #tpu.memory_space<vmem>>, vector<64x128xf32>
    %c27 = arith.constant 27 : index
    %c0_144 = arith.constant 0 : index
    %243 = vector.load %arg3[%c27, %c0_144] : memref<36x128xf32, #tpu.memory_space<vmem>>, vector<1x128xf32>
    %244 = vector.broadcast %243 : vector<1x128xf32> to vector<64x128xf32>
    %245 = arith.mulf %242, %244 : vector<64x128xf32>
    %246 = arith.addf %241, %245 : vector<64x128xf32>
    %c127_i32_145 = arith.constant 127 : i32
    %247 = tpu.dynamic_rotate %242 by %c127_i32_145 dim 1 : vector<64x128xf32>, i32 -> vector<64x128xf32>
    %c28 = arith.constant 28 : index
    %c0_146 = arith.constant 0 : index
    %248 = vector.load %arg3[%c28, %c0_146] : memref<36x128xf32, #tpu.memory_space<vmem>>, vector<1x128xf32>
    %249 = vector.broadcast %248 : vector<1x128xf32> to vector<64x128xf32>
    %250 = arith.mulf %247, %249 : vector<64x128xf32>
    %251 = arith.addf %246, %250 : vector<64x128xf32>
    %c126_i32_147 = arith.constant 126 : i32
    %252 = tpu.dynamic_rotate %242 by %c126_i32_147 dim 1 : vector<64x128xf32>, i32 -> vector<64x128xf32>
    %c29 = arith.constant 29 : index
    %c0_148 = arith.constant 0 : index
    %253 = vector.load %arg3[%c29, %c0_148] : memref<36x128xf32, #tpu.memory_space<vmem>>, vector<1x128xf32>
    %254 = vector.broadcast %253 : vector<1x128xf32> to vector<64x128xf32>
    %255 = arith.mulf %252, %254 : vector<64x128xf32>
    %256 = arith.addf %251, %255 : vector<64x128xf32>
    %c193 = arith.constant 193 : index
    %c0_149 = arith.constant 0 : index
    %257 = vector.load %arg14[%c193, %c0_149] : memref<264x128xf32, #tpu.memory_space<vmem>>, vector<64x128xf32>
    %c30 = arith.constant 30 : index
    %c0_150 = arith.constant 0 : index
    %258 = vector.load %arg3[%c30, %c0_150] : memref<36x128xf32, #tpu.memory_space<vmem>>, vector<1x128xf32>
    %259 = vector.broadcast %258 : vector<1x128xf32> to vector<64x128xf32>
    %260 = arith.mulf %257, %259 : vector<64x128xf32>
    %261 = arith.addf %256, %260 : vector<64x128xf32>
    %c127_i32_151 = arith.constant 127 : i32
    %262 = tpu.dynamic_rotate %257 by %c127_i32_151 dim 1 : vector<64x128xf32>, i32 -> vector<64x128xf32>
    %c31 = arith.constant 31 : index
    %c0_152 = arith.constant 0 : index
    %263 = vector.load %arg3[%c31, %c0_152] : memref<36x128xf32, #tpu.memory_space<vmem>>, vector<1x128xf32>
    %264 = vector.broadcast %263 : vector<1x128xf32> to vector<64x128xf32>
    %265 = arith.mulf %262, %264 : vector<64x128xf32>
    %266 = arith.addf %261, %265 : vector<64x128xf32>
    %c126_i32_153 = arith.constant 126 : i32
    %267 = tpu.dynamic_rotate %257 by %c126_i32_153 dim 1 : vector<64x128xf32>, i32 -> vector<64x128xf32>
    %c32 = arith.constant 32 : index
    %c0_154 = arith.constant 0 : index
    %268 = vector.load %arg3[%c32, %c0_154] : memref<36x128xf32, #tpu.memory_space<vmem>>, vector<1x128xf32>
    %269 = vector.broadcast %268 : vector<1x128xf32> to vector<64x128xf32>
    %270 = arith.mulf %267, %269 : vector<64x128xf32>
    %271 = arith.addf %266, %270 : vector<64x128xf32>
    %c194_155 = arith.constant 194 : index
    %c0_156 = arith.constant 0 : index
    %272 = vector.load %arg14[%c194_155, %c0_156] : memref<264x128xf32, #tpu.memory_space<vmem>>, vector<64x128xf32>
    %c33_157 = arith.constant 33 : index
    %c0_158 = arith.constant 0 : index
    %273 = vector.load %arg3[%c33_157, %c0_158] : memref<36x128xf32, #tpu.memory_space<vmem>>, vector<1x128xf32>
    %274 = vector.broadcast %273 : vector<1x128xf32> to vector<64x128xf32>
    %275 = arith.mulf %272, %274 : vector<64x128xf32>
    %276 = arith.addf %271, %275 : vector<64x128xf32>
    %c127_i32_159 = arith.constant 127 : i32
    %277 = tpu.dynamic_rotate %272 by %c127_i32_159 dim 1 : vector<64x128xf32>, i32 -> vector<64x128xf32>
    %c34_160 = arith.constant 34 : index
    %c0_161 = arith.constant 0 : index
    %278 = vector.load %arg3[%c34_160, %c0_161] : memref<36x128xf32, #tpu.memory_space<vmem>>, vector<1x128xf32>
    %279 = vector.broadcast %278 : vector<1x128xf32> to vector<64x128xf32>
    %280 = arith.mulf %277, %279 : vector<64x128xf32>
    %281 = arith.addf %276, %280 : vector<64x128xf32>
    %c126_i32_162 = arith.constant 126 : i32
    %282 = tpu.dynamic_rotate %272 by %c126_i32_162 dim 1 : vector<64x128xf32>, i32 -> vector<64x128xf32>
    %c35 = arith.constant 35 : index
    %c0_163 = arith.constant 0 : index
    %283 = vector.load %arg3[%c35, %c0_163] : memref<36x128xf32, #tpu.memory_space<vmem>>, vector<1x128xf32>
    %284 = vector.broadcast %283 : vector<1x128xf32> to vector<64x128xf32>
    %285 = arith.mulf %282, %284 : vector<64x128xf32>
    %286 = arith.addf %281, %285 : vector<64x128xf32>
    %c0_164 = arith.constant 0 : index
    %c0_165 = arith.constant 0 : index
    %287 = vector.load %arg4[%c0_164, %c0_165] : memref<1x128xf32, #tpu.memory_space<vmem>>, vector<1x128xf32>
    %288 = vector.broadcast %287 : vector<1x128xf32> to vector<64x128xf32>
    %289 = arith.addf %286, %288 : vector<64x128xf32>
    %cst_166 = arith.constant 0.000000e+00 : f32
    %290 = vector.broadcast %cst_166 : f32 to vector<64x128xf32>
    %291 = arith.cmpf oge, %289, %290 : vector<64x128xf32>
    %cst_167 = arith.constant 2.000000e-02 : f32
    %292 = vector.broadcast %cst_167 : f32 to vector<64x128xf32>
    %293 = arith.mulf %292, %289 : vector<64x128xf32>
    %294 = arith.select %291, %289, %293 : vector<64x128xi1>, vector<64x128xf32>
    %c0_168 = arith.constant 0 : index
    %c0_169 = arith.constant 0 : index
    %295 = vector.load %arg15[%c0_168, %c0_169] : memref<64x128xf32, #tpu.memory_space<vmem>>, vector<64x128xf32>
    tpu.vector_store %arg15[%c0_168, %c0_169], %294 {strides = array<i32>} : memref<64x128xf32, #tpu.memory_space<vmem>>, vector<64x128xf32>,
    %c0_170 = arith.constant 0 : index
    %c0_171 = arith.constant 0 : index
    %296 = tpu.strided_load %arg15[%c0_170, %c0_171] {strides = array<i32: 2, 1>} : memref<64x128xf32, #tpu.memory_space<vmem>>, vector<32x128xf32>
    %c1_172 = arith.constant 1 : index
    %c0_173 = arith.constant 0 : index
    %297 = tpu.strided_load %arg15[%c1_172, %c0_173] {strides = array<i32: 2, 1>} : memref<64x128xf32, #tpu.memory_space<vmem>>, vector<32x128xf32>
    %298 = arith.maximumf %296, %297 : vector<32x128xf32>
    %c127_i32_174 = arith.constant 127 : i32
    %299 = tpu.dynamic_rotate %298 by %c127_i32_174 dim 1 : vector<32x128xf32>, i32 -> vector<32x128xf32>
    %300 = arith.maximumf %298, %299 : vector<32x128xf32>
    %c0_175 = arith.constant 0 : index
    %c0_176 = arith.constant 0 : index
    %301 = vector.load %arg6[%c0_175, %c0_176] : memref<128x32xf32, #tpu.memory_space<vmem>>, vector<128x32xf32>
    %cst_177 = arith.constant dense<0.000000e+00> : vector<32x32xf32>
    %302 = tpu.matmul %300, %301, %cst_177 {dimension_numbers = #tpu.dot_dimension_numbers<[1], [0], [0], [1], [0, 0, 1, 1], [], []>} : vector<32x128xf32>, vector<128x32xf32>, vector<32x32xf32> -> vector<32x32xf32>
    %c0_178 = arith.constant 0 : index
    %c0_179 = arith.constant 0 : index
    %303 = vector.load %arg16[%c0_178, %c0_179] : memref<32x32xf32, #tpu.memory_space<vmem>>, vector<32x32xf32>
    tpu.vector_store %arg16[%c0_178, %c0_179], %302 {strides = array<i32>} : memref<32x32xf32, #tpu.memory_space<vmem>>, vector<32x32xf32>,
    %cst_180 = arith.constant 0.000000e+00 : f32
    %304 = vector.broadcast %cst_180 : f32 to vector<2x512xf32>
    %c0_181 = arith.constant 0 : index
    %c0_182 = arith.constant 0 : index
    %305 = tpu.strided_load %arg16[%c0_181, %c0_182] {strides = array<i32: 16, 1>} : memref<32x32xf32, #tpu.memory_space<vmem>>, vector<2x32xf32>
    %306 = arith.truncf %305 : vector<2x32xf32> to vector<2x32xbf16>
    %c0_183 = arith.constant 0 : index
    %c0_184 = arith.constant 0 : index
    %c0_185 = arith.constant 0 : index
    %307 = vector.load %arg7[%c0_183, %c0_184, %c0_185] : memref<8x32x512xbf16, #tpu.memory_space<vmem>>, vector<1x32x512xbf16>
    %308 = vector.shape_cast %307 : vector<1x32x512xbf16> to vector<32x512xbf16>
    %cst_186 = arith.constant dense<0.000000e+00> : vector<2x512xf32>
    %309 = tpu.matmul %306, %308, %cst_186 {dimension_numbers = #tpu.dot_dimension_numbers<[1], [0], [0], [1], [0, 0, 1, 1], [], []>} : vector<2x32xbf16>, vector<32x512xbf16>, vector<2x512xf32> -> vector<2x512xf32>
    %310 = arith.addf %304, %309 : vector<2x512xf32>
    %c1_187 = arith.constant 1 : index
    %c0_188 = arith.constant 0 : index
    %311 = tpu.strided_load %arg16[%c1_187, %c0_188] {strides = array<i32: 16, 1>} : memref<32x32xf32, #tpu.memory_space<vmem>>, vector<2x32xf32>
    %312 = arith.truncf %311 : vector<2x32xf32> to vector<2x32xbf16>
    %c1_189 = arith.constant 1 : index
    %c0_190 = arith.constant 0 : index
    %c0_191 = arith.constant 0 : index
    %313 = vector.load %arg7[%c1_189, %c0_190, %c0_191] : memref<8x32x512xbf16, #tpu.memory_space<vmem>>, vector<1x32x512xbf16>
    %314 = vector.shape_cast %313 : vector<1x32x512xbf16> to vector<32x512xbf16>
    %cst_192 = arith.constant dense<0.000000e+00> : vector<2x512xf32>
    %315 = tpu.matmul %312, %314, %cst_192 {dimension_numbers = #tpu.dot_dimension_numbers<[1], [0], [0], [1], [0, 0, 1, 1], [], []>} : vector<2x32xbf16>, vector<32x512xbf16>, vector<2x512xf32> -> vector<2x512xf32>
    %316 = arith.addf %310, %315 : vector<2x512xf32>
    %c2_193 = arith.constant 2 : index
    %c0_194 = arith.constant 0 : index
    %317 = tpu.strided_load %arg16[%c2_193, %c0_194] {strides = array<i32: 16, 1>} : memref<32x32xf32, #tpu.memory_space<vmem>>, vector<2x32xf32>
    %318 = arith.truncf %317 : vector<2x32xf32> to vector<2x32xbf16>
    %c2_195 = arith.constant 2 : index
    %c0_196 = arith.constant 0 : index
    %c0_197 = arith.constant 0 : index
    %319 = vector.load %arg7[%c2_195, %c0_196, %c0_197] : memref<8x32x512xbf16, #tpu.memory_space<vmem>>, vector<1x32x512xbf16>
    %320 = vector.shape_cast %319 : vector<1x32x512xbf16> to vector<32x512xbf16>
    %cst_198 = arith.constant dense<0.000000e+00> : vector<2x512xf32>
    %321 = tpu.matmul %318, %320, %cst_198 {dimension_numbers = #tpu.dot_dimension_numbers<[1], [0], [0], [1], [0, 0, 1, 1], [], []>} : vector<2x32xbf16>, vector<32x512xbf16>, vector<2x512xf32> -> vector<2x512xf32>
    %322 = arith.addf %316, %321 : vector<2x512xf32>
    %c3_199 = arith.constant 3 : index
    %c0_200 = arith.constant 0 : index
    %323 = tpu.strided_load %arg16[%c3_199, %c0_200] {strides = array<i32: 16, 1>} : memref<32x32xf32, #tpu.memory_space<vmem>>, vector<2x32xf32>
    %324 = arith.truncf %323 : vector<2x32xf32> to vector<2x32xbf16>
    %c3_201 = arith.constant 3 : index
    %c0_202 = arith.constant 0 : index
    %c0_203 = arith.constant 0 : index
    %325 = vector.load %arg7[%c3_201, %c0_202, %c0_203] : memref<8x32x512xbf16, #tpu.memory_space<vmem>>, vector<1x32x512xbf16>
    %326 = vector.shape_cast %325 : vector<1x32x512xbf16> to vector<32x512xbf16>
    %cst_204 = arith.constant dense<0.000000e+00> : vector<2x512xf32>
    %327 = tpu.matmul %324, %326, %cst_204 {dimension_numbers = #tpu.dot_dimension_numbers<[1], [0], [0], [1], [0, 0, 1, 1], [], []>} : vector<2x32xbf16>, vector<32x512xbf16>, vector<2x512xf32> -> vector<2x512xf32>
    %328 = arith.addf %322, %327 : vector<2x512xf32>
    %c4_205 = arith.constant 4 : index
    %c0_206 = arith.constant 0 : index
    %329 = tpu.strided_load %arg16[%c4_205, %c0_206] {strides = array<i32: 16, 1>} : memref<32x32xf32, #tpu.memory_space<vmem>>, vector<2x32xf32>
    %330 = arith.truncf %329 : vector<2x32xf32> to vector<2x32xbf16>
    %c4_207 = arith.constant 4 : index
    %c0_208 = arith.constant 0 : index
    %c0_209 = arith.constant 0 : index
    %331 = vector.load %arg7[%c4_207, %c0_208, %c0_209] : memref<8x32x512xbf16, #tpu.memory_space<vmem>>, vector<1x32x512xbf16>
    %332 = vector.shape_cast %331 : vector<1x32x512xbf16> to vector<32x512xbf16>
    %cst_210 = arith.constant dense<0.000000e+00> : vector<2x512xf32>
    %333 = tpu.matmul %330, %332, %cst_210 {dimension_numbers = #tpu.dot_dimension_numbers<[1], [0], [0], [1], [0, 0, 1, 1], [], []>} : vector<2x32xbf16>, vector<32x512xbf16>, vector<2x512xf32> -> vector<2x512xf32>
    %334 = arith.addf %328, %333 : vector<2x512xf32>
    %c5_211 = arith.constant 5 : index
    %c0_212 = arith.constant 0 : index
    %335 = tpu.strided_load %arg16[%c5_211, %c0_212] {strides = array<i32: 16, 1>} : memref<32x32xf32, #tpu.memory_space<vmem>>, vector<2x32xf32>
    %336 = arith.truncf %335 : vector<2x32xf32> to vector<2x32xbf16>
    %c5_213 = arith.constant 5 : index
    %c0_214 = arith.constant 0 : index
    %c0_215 = arith.constant 0 : index
    %337 = vector.load %arg7[%c5_213, %c0_214, %c0_215] : memref<8x32x512xbf16, #tpu.memory_space<vmem>>, vector<1x32x512xbf16>
    %338 = vector.shape_cast %337 : vector<1x32x512xbf16> to vector<32x512xbf16>
    %cst_216 = arith.constant dense<0.000000e+00> : vector<2x512xf32>
    %339 = tpu.matmul %336, %338, %cst_216 {dimension_numbers = #tpu.dot_dimension_numbers<[1], [0], [0], [1], [0, 0, 1, 1], [], []>} : vector<2x32xbf16>, vector<32x512xbf16>, vector<2x512xf32> -> vector<2x512xf32>
    %340 = arith.addf %334, %339 : vector<2x512xf32>
    %c6_217 = arith.constant 6 : index
    %c0_218 = arith.constant 0 : index
    %341 = tpu.strided_load %arg16[%c6_217, %c0_218] {strides = array<i32: 16, 1>} : memref<32x32xf32, #tpu.memory_space<vmem>>, vector<2x32xf32>
    %342 = arith.truncf %341 : vector<2x32xf32> to vector<2x32xbf16>
    %c6_219 = arith.constant 6 : index
    %c0_220 = arith.constant 0 : index
    %c0_221 = arith.constant 0 : index
    %343 = vector.load %arg7[%c6_219, %c0_220, %c0_221] : memref<8x32x512xbf16, #tpu.memory_space<vmem>>, vector<1x32x512xbf16>
    %344 = vector.shape_cast %343 : vector<1x32x512xbf16> to vector<32x512xbf16>
    %cst_222 = arith.constant dense<0.000000e+00> : vector<2x512xf32>
    %345 = tpu.matmul %342, %344, %cst_222 {dimension_numbers = #tpu.dot_dimension_numbers<[1], [0], [0], [1], [0, 0, 1, 1], [], []>} : vector<2x32xbf16>, vector<32x512xbf16>, vector<2x512xf32> -> vector<2x512xf32>
    %346 = arith.addf %340, %345 : vector<2x512xf32>
    %c7_223 = arith.constant 7 : index
    %c0_224 = arith.constant 0 : index
    %347 = tpu.strided_load %arg16[%c7_223, %c0_224] {strides = array<i32: 16, 1>} : memref<32x32xf32, #tpu.memory_space<vmem>>, vector<2x32xf32>
    %348 = arith.truncf %347 : vector<2x32xf32> to vector<2x32xbf16>
    %c7_225 = arith.constant 7 : index
    %c0_226 = arith.constant 0 : index
    %c0_227 = arith.constant 0 : index
    %349 = vector.load %arg7[%c7_225, %c0_226, %c0_227] : memref<8x32x512xbf16, #tpu.memory_space<vmem>>, vector<1x32x512xbf16>
    %350 = vector.shape_cast %349 : vector<1x32x512xbf16> to vector<32x512xbf16>
    %cst_228 = arith.constant dense<0.000000e+00> : vector<2x512xf32>
    %351 = tpu.matmul %348, %350, %cst_228 {dimension_numbers = #tpu.dot_dimension_numbers<[1], [0], [0], [1], [0, 0, 1, 1], [], []>} : vector<2x32xbf16>, vector<32x512xbf16>, vector<2x512xf32> -> vector<2x512xf32>
    %352 = arith.addf %346, %351 : vector<2x512xf32>
    %c0_229 = arith.constant 0 : index
    %c0_230 = arith.constant 0 : index
    %353 = vector.load %arg8[%c0_229, %c0_230] : memref<1x512xf32, #tpu.memory_space<vmem>>, vector<1x512xf32>
    %354 = vector.broadcast %353 : vector<1x512xf32> to vector<2x512xf32>
    %355 = arith.addf %352, %354 : vector<2x512xf32>
    %356 = arith.truncf %355 : vector<2x512xf32> to vector<2x512xbf16>
    %c0_231 = arith.constant 0 : index
    %c0_232 = arith.constant 0 : index
    %357 = vector.load %arg9[%c0_231, %c0_232] : memref<512x10xbf16, #tpu.memory_space<vmem>>, vector<512x10xbf16>
    %cst_233 = arith.constant dense<0.000000e+00> : vector<2x10xf32>
    %358 = tpu.matmul %356, %357, %cst_233 {dimension_numbers = #tpu.dot_dimension_numbers<[1], [0], [0], [1], [0, 0, 1, 1], [], []>} : vector<2x512xbf16>, vector<512x10xbf16>, vector<2x10xf32> -> vector<2x10xf32>
    %c0_234 = arith.constant 0 : index
    %c0_235 = arith.constant 0 : index
    %359 = vector.load %arg10[%c0_234, %c0_235] : memref<1x10xf32, #tpu.memory_space<vmem>>, vector<1x10xf32>
    %360 = vector.broadcast %359 : vector<1x10xf32> to vector<2x10xf32>
    %361 = arith.addf %358, %360 : vector<2x10xf32>
    %c0_236 = arith.constant 0 : index
    %c0_237 = arith.constant 0 : index
    %362 = vector.load %arg11[%c0_236, %c0_237] : memref<2x10xf32, #tpu.memory_space<vmem>>, vector<2x10xf32>
    tpu.vector_store %arg11[%c0_236, %c0_237], %361 {strides = array<i32>} : memref<2x10xf32, #tpu.memory_space<vmem>>, vector<2x10xf32>,
    return
  }
}

</mosaic_0001>

<llo_original>
// kernel: cnn_forward_pallas.1
$region0: #{cnn_forward_pallas.1}
  #allocation0 [shape = 'u32[]', space=smem, size = 0x4, offset = 0x4, fixed_abs, tag = 'smem constant byte address 0x4 - core index']
  #allocation1 [shape = 'u32[144,128]{1,0:T(1,128)}', space=vmem, size = 0x12000, scoped, tag = 'internal scratch']
  #allocation2 [shape = 'f32[72,128]{1,0:T(8,128)}', space=vmem, size = 0x9000, scoped, tag = 'scratch operand']
  #allocation3 [shape = 'f32[64,128]{1,0:T(8,128)}', space=vmem, size = 0x8000, scoped, tag = 'scratch operand']
  #allocation4 [shape = 'f32[264,128]{1,0:T(8,128)}', space=vmem, size = 0x21000, scoped, tag = 'scratch operand']
  #allocation5 [shape = 'f32[64,128]{1,0:T(8,128)}', space=vmem, size = 0x8000, scoped, tag = 'scratch operand']
  #allocation6 [shape = 'f32[32,32]{1,0:T(8,128)}', space=vmem, size = 0x4000, scoped, tag = 'scratch operand']
  %s0 = inlined_call_operand.vmem [shape: f32[2,28,28], index: 0, kind: input, shape index: {}]
  %s1 = inlined_call_operand.vmem [shape: f32[9,128], index: 1, kind: input, shape index: {}]
  %s2 = inlined_call_operand.vmem [shape: f32[1,128], index: 2, kind: input, shape index: {}]
  %s3 = inlined_call_operand.vmem [shape: f32[36,128], index: 3, kind: input, shape index: {}]
  %s4 = inlined_call_operand.vmem [shape: f32[1,128], index: 4, kind: input, shape index: {}]
  %s5 = inlined_call_operand.vmem [shape: f32[4,128,128], index: 5, kind: input, shape index: {}]
  %s6 = inlined_call_operand.vmem [shape: f32[128,32], index: 6, kind: input, shape index: {}]
  %s7 = inlined_call_operand.hbm [shape: bf16[8,32,512], index: 7, kind: input, shape index: {}]
  %s8 = inlined_call_operand.vmem [shape: f32[1,512], index: 8, kind: input, shape index: {}]
  %s9 = inlined_call_operand.vmem [shape: bf16[512,10], index: 9, kind: input, shape index: {}]
  %s10 = inlined_call_operand.vmem [shape: f32[1,10], index: 10, kind: input, shape index: {}]
  %s11 = inlined_call_operand.hbm [shape: f32[2,10], index: 11, kind: output, shape index: {}]
  %s12 = sld [smem:[#allocation0]]
  $region58: #{cnn_forward_pallas.1} parent=0
    _
  %s14 = ssub.s32 1, %s12
  %s15 = scalar_select 0, %s14, %s12
  $region1: #{cnn_forward_pallas.1} parent=0
    #allocation7 [shape = 'u8[262144]{0}', space=vmem, size = 0x40000, scoped, tag = 'input window, operand 7, single buffered']
    #allocation8 [shape = 's32[1]{0}', space=sflag, size = 0x4, scoped, tag = 'scoped memory for cnn_forward_pallas.1']
    #allocation9 [shape = 's32[1]{0}', space=sflag, size = 0x4, scoped, tag = 'scoped memory for cnn_forward_pallas.1']
    #allocation10 [shape = 'u8[1024]{0}', space=vmem, size = 0x400, scoped, tag = 'output window, operand 0, single buffered']
    %16 = vsyncpa [#allocation8], 0
    %17 = vsyncpa [#allocation9], 0
    // Predicated region
    $region2: #{cnn_forward_pallas.1} parent=1 // pred_check
      _
    $region3: #{cnn_forward_pallas.1} parent=1 // pred_check_branch
      %19 = sbr.rel (0) target = $region5
    $region4: #{cnn_forward_pallas.1} parent=1 // pred_region
      _
    $region5: #{cnn_forward_pallas.1} parent=1 // pred_fallthru
      _
    // Predicated region
    $region6: #{cnn_forward_pallas.1} parent=1 // pred_check
      _
    $region7: #{cnn_forward_pallas.1} parent=1 // pred_check_branch
      %21 = sbr.rel (0) target = $region9
    $region8: #{cnn_forward_pallas.1} parent=1 // pred_region
      _
    $region9: #{cnn_forward_pallas.1} parent=1 // pred_fallthru
      _
    // Predicated region
    $region10: #{cnn_forward_pallas.1} parent=1 // pred_check
      _
    $region11: #{cnn_forward_pallas.1} parent=1 // pred_check_branch
      %23 = sbr.rel (0) target = $region13
    $region12: #{cnn_forward_pallas.1} parent=1 // pred_region
      _
    $region13: #{cnn_forward_pallas.1} parent=1 // pred_fallthru
      _
    // Predicated region
    $region14: #{cnn_forward_pallas.1} parent=1 // pred_check
      _
    $region15: #{cnn_forward_pallas.1} parent=1 // pred_check_branch
      %25 = sbr.rel (0) target = $region17
    $region16: #{cnn_forward_pallas.1} parent=1 // pred_region
      _
    $region17: #{cnn_forward_pallas.1} parent=1 // pred_fallthru
      _
    // Predicated region
    $region18: #{cnn_forward_pallas.1} parent=1 // pred_check
      _
    $region19: #{cnn_forward_pallas.1} parent=1 // pred_check_branch
      %27 = sbr.rel (0) target = $region21
    $region20: #{cnn_forward_pallas.1} parent=1 // pred_region
      _
    $region21: #{cnn_forward_pallas.1} parent=1 // pred_fallthru
      _
    // Predicated region
    $region22: #{cnn_forward_pallas.1} parent=1 // pred_check
      _
    $region23: #{cnn_forward_pallas.1} parent=1 // pred_check_branch
      %29 = sbr.rel (0) target = $region25
    $region24: #{cnn_forward_pallas.1} parent=1 // pred_region
      _
    $region25: #{cnn_forward_pallas.1} parent=1 // pred_fallthru
      _
    // Predicated region
    $region26: #{cnn_forward_pallas.1} parent=1 // pred_check
      _
    $region27: #{cnn_forward_pallas.1} parent=1 // pred_check_branch
      %31 = sbr.rel (0) target = $region29
    $region28: #{cnn_forward_pallas.1} parent=1 // pred_region
      _
    $region29: #{cnn_forward_pallas.1} parent=1 // pred_fallthru
      _
    // Predicated region
    $region30: #{cnn_forward_pallas.1} parent=1 // pred_check
      _
    $region31: #{cnn_forward_pallas.1} parent=1 // pred_check_branch
      %33 = sbr.rel (0) target = $region33
    $region32: #{cnn_forward_pallas.1} parent=1 // pred_region
      %s35 = ssub.s32 8192, 8192
      %36 = vsyncadd [#allocation8], %s35
      %s37 = sshll.u32 [#allocation7], 4
      %s38 = int_to_ptr.vmem [resolvable:$true] %s37
      %43 = dma.hbm_to_vmem [thread:$0]  %s7, 8192, %s38, [#allocation8], 256, 256, 16
    $region33: #{cnn_forward_pallas.1} parent=1 // pred_fallthru
      _
    // Predicated region
    $region34: #{cnn_forward_pallas.1} parent=1 // pred_check
      _
    $region35: #{cnn_forward_pallas.1} parent=1 // pred_check_branch
      %45 = sbr.rel (0) target = $region37
    $region36: #{cnn_forward_pallas.1} parent=1 // pred_region
      _
    $region37: #{cnn_forward_pallas.1} parent=1 // pred_fallthru
      _
    // Predicated region
    $region38: #{cnn_forward_pallas.1} parent=1 // pred_check
      _
    $region39: #{cnn_forward_pallas.1} parent=1 // pred_check_branch
      %47 = sbr.rel (0) target = $region41
    $region40: #{cnn_forward_pallas.1} parent=1 // pred_region
      _
    $region41: #{cnn_forward_pallas.1} parent=1 // pred_fallthru
      _
    // Predicated region
    $region42: #{cnn_forward_pallas.1} parent=1 // pred_check
      _
    $region43: #{cnn_forward_pallas.1} parent=1 // pred_check_branch
      %49 = sbr.rel (0) target = $region45
    $region44: #{cnn_forward_pallas.1} parent=1 // pred_region
      _
    $region45: #{cnn_forward_pallas.1} parent=1 // pred_fallthru
      _
    // Predicated region
    $region46: #{cnn_forward_pallas.1} parent=1 // pred_check
      _
    $region47: #{cnn_forward_pallas.1} parent=1 // pred_check_branch
      %51 = sbr.rel (0) target = $region49
    $region48: #{cnn_forward_pallas.1} parent=1 // pred_region
      %52 = dma.done [#allocation8], 8192
    $region49: #{cnn_forward_pallas.1} parent=1 // pred_fallthru
      _
    %54 = vst [vmem:[#allocation2] sm:$0xff] 0.0
    %55 = vst [vmem:[#allocation2 + $0x8] sm:$0xff] 0.0
    %56 = vst [vmem:[#allocation2 + $0x10] sm:$0xff] 0.0
    %57 = vst [vmem:[#allocation2 + $0x18] sm:$0xff] 0.0
    %58 = vst [vmem:[#allocation2 + $0x20] sm:$0xff] 0.0
    %59 = vst [vmem:[#allocation2 + $0x28] sm:$0xff] 0.0
    %60 = vst [vmem:[#allocation2 + $0x30] sm:$0xff] 0.0
    %61 = vst [vmem:[#allocation2 + $0x38] sm:$0xff] 0.0
    %62 = vst [vmem:[#allocation2 + $0x40] sm:$0xff] 0.0
    %v63 = vld [vmem:[%s0] sm:$0xff]
    %v64 = vld [vmem:[%s0 + $0x8] sm:$0xff]
    %v65 = vld [vmem:[%s0 + $0x10] sm:$0xff]
    %v66 = vld [vmem:[%s0 + $0x18] sm:$0xf]
    %71 = vrot.lane.b32.xlu0 %v63, 1
    %v72 = vpop.permute.xlu0 %71
    %73 = vrot.lane.b32.xlu0 %v64, 1
    %v74 = vpop.permute.xlu0 %73
    %75 = vrot.lane.b32.xlu0 %v65, 1
    %v76 = vpop.permute.xlu0 %75
    %77 = vrot.lane.b32.xlu0 %v66, 1
    %v78 = vpop.permute.xlu0 %77
    %vm83 = vcmask 236552
    %84 = vst.msk [vmem:[#allocation2 + $0x1] sm:$0xff] %vm83, %v72
    %85 = vst.msk [vmem:[#allocation2 + $0x9] sm:$0xff] %vm83, %v74
    %86 = vst.msk [vmem:[#allocation2 + $0x11] sm:$0xff] %vm83, %v76
    %vm87 = vcmask 232456
    %88 = vst.msk [vmem:[#allocation2 + $0x19] sm:$0xf] %vm87, %v78
    %s89 = scalar_lea.vmem %s0, 32
    %v90 = vld [vmem:[%s89] sm:$0xff]
    %v91 = vld [vmem:[%s89 + $0x8] sm:$0xff]
    %v92 = vld [vmem:[%s89 + $0x10] sm:$0xff]
    %v93 = vld [vmem:[%s89 + $0x18] sm:$0xf]
    %98 = vrot.lane.b32.xlu0 %v90, 1
    %v99 = vpop.permute.xlu0 %98
    %100 = vrot.lane.b32.xlu0 %v91, 1
    %v101 = vpop.permute.xlu0 %100
    %102 = vrot.lane.b32.xlu0 %v92, 1
    %v103 = vpop.permute.xlu0 %102
    %104 = vrot.lane.b32.xlu0 %v93, 1
    %v105 = vpop.permute.xlu0 %104
    %110 = vst.msk [vmem:[#allocation2 + $0x21] sm:$0xff] %vm83, %v99
    %111 = vst.msk [vmem:[#allocation2 + $0x29] sm:$0xff] %vm83, %v101
    %112 = vst.msk [vmem:[#allocation2 + $0x31] sm:$0xff] %vm83, %v103
    %113 = vst.msk [vmem:[#allocation2 + $0x39] sm:$0xf] %vm87, %v105
    %v114 = vld [vmem:[#allocation2] sm:$0xff]
    %v115 = vld [vmem:[#allocation2 + $0x8] sm:$0xff]
    %v116 = vld [vmem:[#allocation2 + $0x10] sm:$0xff]
    %v117 = vld [vmem:[#allocation2 + $0x18] sm:$0xff]
    %v118 = vld [vmem:[#allocation2 + $0x20] sm:$0xff]
    %v119 = vld [vmem:[#allocation2 + $0x28] sm:$0xff]
    %v120 = vld [vmem:[#allocation2 + $0x30] sm:$0xff]
    %v121 = vld [vmem:[#allocation2 + $0x38] sm:$0xff]
    %v122 = vld [vmem:[#allocation2 + $0x40] sm:$0xff]
    %123 = vrot.lane.b32.xlu0 %v114, 32
    %v124 = vpop.permute.xlu0 %123
    %125 = vrot.lane.b32.xlu0 %v115, 32
    %v126 = vpop.permute.xlu0 %125
    %127 = vrot.lane.b32.xlu0 %v116, 32
    %v128 = vpop.permute.xlu0 %127
    %129 = vrot.lane.b32.xlu0 %v117, 32
    %v130 = vpop.permute.xlu0 %129
    %131 = vrot.lane.b32.xlu0 %v118, 32
    %v132 = vpop.permute.xlu0 %131
    %133 = vrot.lane.b32.xlu0 %v119, 32
    %v134 = vpop.permute.xlu0 %133
    %135 = vrot.lane.b32.xlu0 %v120, 32
    %v136 = vpop.permute.xlu0 %135
    %137 = vrot.lane.b32.xlu0 %v121, 32
    %v138 = vpop.permute.xlu0 %137
    %139 = vrot.lane.b32.xlu0 %v122, 32
    %v140 = vpop.permute.xlu0 %139
    %v141 = vadd.f32 %v114, %v124
    %v142 = vadd.f32 %v115, %v126
    %v143 = vadd.f32 %v116, %v128
    %v144 = vadd.f32 %v117, %v130
    %v145 = vadd.f32 %v118, %v132
    %v146 = vadd.f32 %v119, %v134
    %v147 = vadd.f32 %v120, %v136
    %v148 = vadd.f32 %v121, %v138
    %v149 = vadd.f32 %v122, %v140
    %150 = vrot.lane.b32.xlu0 %v114, 64
    %v151 = vpop.permute.xlu0 %150
    %152 = vrot.lane.b32.xlu0 %v115, 64
    %v153 = vpop.permute.xlu0 %152
    %154 = vrot.lane.b32.xlu0 %v116, 64
    %v155 = vpop.permute.xlu0 %154
    %156 = vrot.lane.b32.xlu0 %v117, 64
    %v157 = vpop.permute.xlu0 %156
    %158 = vrot.lane.b32.xlu0 %v118, 64
    %v159 = vpop.permute.xlu0 %158
    %160 = vrot.lane.b32.xlu0 %v119, 64
    %v161 = vpop.permute.xlu0 %160
    %162 = vrot.lane.b32.xlu0 %v120, 64
    %v163 = vpop.permute.xlu0 %162
    %164 = vrot.lane.b32.xlu0 %v121, 64
    %v165 = vpop.permute.xlu0 %164
    %166 = vrot.lane.b32.xlu0 %v122, 64
    %v167 = vpop.permute.xlu0 %166
    %v168 = vadd.f32 %v141, %v151
    %v169 = vadd.f32 %v142, %v153
    %v170 = vadd.f32 %v143, %v155
    %v171 = vadd.f32 %v144, %v157
    %v172 = vadd.f32 %v145, %v159
    %v173 = vadd.f32 %v146, %v161
    %v174 = vadd.f32 %v147, %v163
    %v175 = vadd.f32 %v148, %v165
    %v176 = vadd.f32 %v149, %v167
    %177 = vrot.lane.b32.xlu0 %v114, 96
    %v178 = vpop.permute.xlu0 %177
    %179 = vrot.lane.b32.xlu0 %v115, 96
    %v180 = vpop.permute.xlu0 %179
    %181 = vrot.lane.b32.xlu0 %v116, 96
    %v182 = vpop.permute.xlu0 %181
    %183 = vrot.lane.b32.xlu0 %v117, 96
    %v184 = vpop.permute.xlu0 %183
    %185 = vrot.lane.b32.xlu0 %v118, 96
    %v186 = vpop.permute.xlu0 %185
    %187 = vrot.lane.b32.xlu0 %v119, 96
    %v188 = vpop.permute.xlu0 %187
    %189 = vrot.lane.b32.xlu0 %v120, 96
    %v190 = vpop.permute.xlu0 %189
    %191 = vrot.lane.b32.xlu0 %v121, 96
    %v192 = vpop.permute.xlu0 %191
    %193 = vrot.lane.b32.xlu0 %v122, 96
    %v194 = vpop.permute.xlu0 %193
    %v195 = vadd.f32 %v168, %v178
    %v196 = vadd.f32 %v169, %v180
    %v197 = vadd.f32 %v170, %v182
    %v198 = vadd.f32 %v171, %v184
    %v199 = vadd.f32 %v172, %v186
    %v200 = vadd.f32 %v173, %v188
    %v201 = vadd.f32 %v174, %v190
    %v202 = vadd.f32 %v175, %v192
    %v203 = vadd.f32 %v176, %v194
    %204 = vst [vmem:[#allocation2] sm:$0xff] %v195
    %205 = vst [vmem:[#allocation2 + $0x8] sm:$0xff] %v196
    %206 = vst [vmem:[#allocation2 + $0x10] sm:$0xff] %v197
    %207 = vst [vmem:[#allocation2 + $0x18] sm:$0xff] %v198
    %208 = vst [vmem:[#allocation2 + $0x20] sm:$0xff] %v199
    %209 = vst [vmem:[#allocation2 + $0x28] sm:$0xff] %v200
    %210 = vst [vmem:[#allocation2 + $0x30] sm:$0xff] %v201
    %211 = vst [vmem:[#allocation2 + $0x38] sm:$0xff] %v202
    %212 = vst [vmem:[#allocation2 + $0x40] sm:$0xff] %v203
    %v213 = vld [vmem:[#allocation2] sm:$0xff]
    %v214 = vld [vmem:[#allocation2 + $0x8] sm:$0xff]
    %v215 = vld [vmem:[#allocation2 + $0x10] sm:$0xff]
    %v216 = vld [vmem:[#allocation2 + $0x18] sm:$0xff]
    %v217 = vld [vmem:[#allocation2 + $0x20] sm:$0xff]
    %v218 = vld [vmem:[#allocation2 + $0x28] sm:$0xff]
    %v219 = vld [vmem:[#allocation2 + $0x30] sm:$0xff]
    %v220 = vld [vmem:[#allocation2 + $0x38] sm:$0xff]
    %v221 = vld [vmem:[%s1] sm:$0x1]
    %v222 = vlaneseq
    %v223 = vshrl.u32 %v222, 7
    %v224 = vsub.s32 0, %v223
    %v225 = vrot.slane %v221, %v224
    %v226 = vmul.f32 %v213, %v225
    %v227 = vmul.f32 %v214, %v225
    %v228 = vmul.f32 %v215, %v225
    %v229 = vmul.f32 %v216, %v225
    %v230 = vmul.f32 %v217, %v225
    %v231 = vmul.f32 %v218, %v225
    %v232 = vmul.f32 %v219, %v225
    %v233 = vmul.f32 %v220, %v225
    %v234 = vadd.f32 %v226, 0.0
    %v235 = vadd.f32 %v227, 0.0
    %v236 = vadd.f32 %v228, 0.0
    %v237 = vadd.f32 %v229, 0.0
    %v238 = vadd.f32 %v230, 0.0
    %v239 = vadd.f32 %v231, 0.0
    %v240 = vadd.f32 %v232, 0.0
    %v241 = vadd.f32 %v233, 0.0
    %242 = vrot.lane.b32.xlu0 %v213, 127
    %v243 = vpop.permute.xlu0 %242
    %244 = vrot.lane.b32.xlu0 %v214, 127
    %v245 = vpop.permute.xlu0 %244
    %246 = vrot.lane.b32.xlu0 %v215, 127
    %v247 = vpop.permute.xlu0 %246
    %248 = vrot.lane.b32.xlu0 %v216, 127
    %v249 = vpop.permute.xlu0 %248
    %250 = vrot.lane.b32.xlu0 %v217, 127
    %v251 = vpop.permute.xlu0 %250
    %252 = vrot.lane.b32.xlu0 %v218, 127
    %v253 = vpop.permute.xlu0 %252
    %254 = vrot.lane.b32.xlu0 %v219, 127
    %v255 = vpop.permute.xlu0 %254
    %256 = vrot.lane.b32.xlu0 %v220, 127
    %v257 = vpop.permute.xlu0 %256
    %v258 = vld [vmem:[%s1 + $0x1] sm:$0x1]
    %v259 = vlaneseq
    %v260 = vshrl.u32 %v259, 7
    %v261 = vsub.s32 0, %v260
    %v262 = vrot.slane %v258, %v261
    %v263 = vmul.f32 %v243, %v262
    %v264 = vmul.f32 %v245, %v262
    %v265 = vmul.f32 %v247, %v262
    %v266 = vmul.f32 %v249, %v262
    %v267 = vmul.f32 %v251, %v262
    %v268 = vmul.f32 %v253, %v262
    %v269 = vmul.f32 %v255, %v262
    %v270 = vmul.f32 %v257, %v262
    %v271 = vadd.f32 %v234, %v263
    %v272 = vadd.f32 %v235, %v264
    %v273 = vadd.f32 %v236, %v265
    %v274 = vadd.f32 %v237, %v266
    %v275 = vadd.f32 %v238, %v267
    %v276 = vadd.f32 %v239, %v268
    %v277 = vadd.f32 %v240, %v269
    %v278 = vadd.f32 %v241, %v270
    %279 = vrot.lane.b32.xlu0 %v213, 126
    %v280 = vpop.permute.xlu0 %279
    %281 = vrot.lane.b32.xlu0 %v214, 126
    %v282 = vpop.permute.xlu0 %281
    %283 = vrot.lane.b32.xlu0 %v215, 126
    %v284 = vpop.permute.xlu0 %283
    %285 = vrot.lane.b32.xlu0 %v216, 126
    %v286 = vpop.permute.xlu0 %285
    %287 = vrot.lane.b32.xlu0 %v217, 126
    %v288 = vpop.permute.xlu0 %287
    %289 = vrot.lane.b32.xlu0 %v218, 126
    %v290 = vpop.permute.xlu0 %289
    %291 = vrot.lane.b32.xlu0 %v219, 126
    %v292 = vpop.permute.xlu0 %291
    %293 = vrot.lane.b32.xlu0 %v220, 126
    %v294 = vpop.permute.xlu0 %293
    %v295 = vld [vmem:[%s1 + $0x2] sm:$0x1]
    %v296 = vlaneseq
    %v297 = vshrl.u32 %v296, 7
    %v298 = vsub.s32 0, %v297
    %v299 = vrot.slane %v295, %v298
    %v300 = vmul.f32 %v280, %v299
    %v301 = vmul.f32 %v282, %v299
    %v302 = vmul.f32 %v284, %v299
    %v303 = vmul.f32 %v286, %v299
    %v304 = vmul.f32 %v288, %v299
    %v305 = vmul.f32 %v290, %v299
    %v306 = vmul.f32 %v292, %v299
    %v307 = vmul.f32 %v294, %v299
    %v308 = vadd.f32 %v271, %v300
    %v309 = vadd.f32 %v272, %v301
    %v310 = vadd.f32 %v273, %v302
    %v311 = vadd.f32 %v274, %v303
    %v312 = vadd.f32 %v275, %v304
    %v313 = vadd.f32 %v276, %v305
    %v314 = vadd.f32 %v277, %v306
    %v315 = vadd.f32 %v278, %v307
    %v316 = vld [vmem:[#allocation2 + $0x1] sm:$0xff]
    %v317 = vld [vmem:[#allocation2 + $0x9] sm:$0xff]
    %v318 = vld [vmem:[#allocation2 + $0x11] sm:$0xff]
    %v319 = vld [vmem:[#allocation2 + $0x19] sm:$0xff]
    %v320 = vld [vmem:[#allocation2 + $0x21] sm:$0xff]
    %v321 = vld [vmem:[#allocation2 + $0x29] sm:$0xff]
    %v322 = vld [vmem:[#allocation2 + $0x31] sm:$0xff]
    %v323 = vld [vmem:[#allocation2 + $0x39] sm:$0xff]
    %v324 = vld [vmem:[%s1 + $0x3] sm:$0x1]
    %v325 = vlaneseq
    %v326 = vshrl.u32 %v325, 7
    %v327 = vsub.s32 0, %v326
    %v328 = vrot.slane %v324, %v327
    %v329 = vmul.f32 %v316, %v328
    %v330 = vmul.f32 %v317, %v328
    %v331 = vmul.f32 %v318, %v328
    %v332 = vmul.f32 %v319, %v328
    %v333 = vmul.f32 %v320, %v328
    %v334 = vmul.f32 %v321, %v328
    %v335 = vmul.f32 %v322, %v328
    %v336 = vmul.f32 %v323, %v328
    %v337 = vadd.f32 %v308, %v329
    %v338 = vadd.f32 %v309, %v330
    %v339 = vadd.f32 %v310, %v331
    %v340 = vadd.f32 %v311, %v332
    %v341 = vadd.f32 %v312, %v333
    %v342 = vadd.f32 %v313, %v334
    %v343 = vadd.f32 %v314, %v335
    %v344 = vadd.f32 %v315, %v336
    %345 = vrot.lane.b32.xlu0 %v316, 127
    %v346 = vpop.permute.xlu0 %345
    %347 = vrot.lane.b32.xlu0 %v317, 127
    %v348 = vpop.permute.xlu0 %347
    %349 = vrot.lane.b32.xlu0 %v318, 127
    %v350 = vpop.permute.xlu0 %349
    %351 = vrot.lane.b32.xlu0 %v319, 127
    %v352 = vpop.permute.xlu0 %351
    %353 = vrot.lane.b32.xlu0 %v320, 127
    %v354 = vpop.permute.xlu0 %353
    %355 = vrot.lane.b32.xlu0 %v321, 127
    %v356 = vpop.permute.xlu0 %355
    %357 = vrot.lane.b32.xlu0 %v322, 127
    %v358 = vpop.permute.xlu0 %357
    %359 = vrot.lane.b32.xlu0 %v323, 127
    %v360 = vpop.permute.xlu0 %359
    %v361 = vld [vmem:[%s1 + $0x4] sm:$0x1]
    %v362 = vlaneseq
    %v363 = vshrl.u32 %v362, 7
    %v364 = vsub.s32 0, %v363
    %v365 = vrot.slane %v361, %v364
    %v366 = vmul.f32 %v346, %v365
    %v367 = vmul.f32 %v348, %v365
    %v368 = vmul.f32 %v350, %v365
    %v369 = vmul.f32 %v352, %v365
    %v370 = vmul.f32 %v354, %v365
    %v371 = vmul.f32 %v356, %v365
    %v372 = vmul.f32 %v358, %v365
    %v373 = vmul.f32 %v360, %v365
    %v374 = vadd.f32 %v337, %v366
    %v375 = vadd.f32 %v338, %v367
    %v376 = vadd.f32 %v339, %v368
    %v377 = vadd.f32 %v340, %v369
    %v378 = vadd.f32 %v341, %v370
    %v379 = vadd.f32 %v342, %v371
    %v380 = vadd.f32 %v343, %v372
    %v381 = vadd.f32 %v344, %v373
    %382 = vrot.lane.b32.xlu0 %v316, 126
    %v383 = vpop.permute.xlu0 %382
    %384 = vrot.lane.b32.xlu0 %v317, 126
    %v385 = vpop.permute.xlu0 %384
    %386 = vrot.lane.b32.xlu0 %v318, 126
    %v387 = vpop.permute.xlu0 %386
    %388 = vrot.lane.b32.xlu0 %v319, 126
    %v389 = vpop.permute.xlu0 %388
    %390 = vrot.lane.b32.xlu0 %v320, 126
    %v391 = vpop.permute.xlu0 %390
    %392 = vrot.lane.b32.xlu0 %v321, 126
    %v393 = vpop.permute.xlu0 %392
    %394 = vrot.lane.b32.xlu0 %v322, 126
    %v395 = vpop.permute.xlu0 %394
    %396 = vrot.lane.b32.xlu0 %v323, 126
    %v397 = vpop.permute.xlu0 %396
    %v398 = vld [vmem:[%s1 + $0x5] sm:$0x1]
    %v399 = vlaneseq
    %v400 = vshrl.u32 %v399, 7
    %v401 = vsub.s32 0, %v400
    %v402 = vrot.slane %v398, %v401
    %v403 = vmul.f32 %v383, %v402
    %v404 = vmul.f32 %v385, %v402
    %v405 = vmul.f32 %v387, %v402
    %v406 = vmul.f32 %v389, %v402
    %v407 = vmul.f32 %v391, %v402
    %v408 = vmul.f32 %v393, %v402
    %v409 = vmul.f32 %v395, %v402
    %v410 = vmul.f32 %v397, %v402
    %v411 = vadd.f32 %v374, %v403
    %v412 = vadd.f32 %v375, %v404
    %v413 = vadd.f32 %v376, %v405
    %v414 = vadd.f32 %v377, %v406
    %v415 = vadd.f32 %v378, %v407
    %v416 = vadd.f32 %v379, %v408
    %v417 = vadd.f32 %v380, %v409
    %v418 = vadd.f32 %v381, %v410
    %v419 = vld [vmem:[#allocation2 + $0x2] sm:$0xff]
    %v420 = vld [vmem:[#allocation2 + $0xa] sm:$0xff]
    %v421 = vld [vmem:[#allocation2 + $0x12] sm:$0xff]
    %v422 = vld [vmem:[#allocation2 + $0x1a] sm:$0xff]
    %v423 = vld [vmem:[#allocation2 + $0x22] sm:$0xff]
    %v424 = vld [vmem:[#allocation2 + $0x2a] sm:$0xff]
    %v425 = vld [vmem:[#allocation2 + $0x32] sm:$0xff]
    %v426 = vld [vmem:[#allocation2 + $0x3a] sm:$0xff]
    %v427 = vld [vmem:[%s1 + $0x6] sm:$0x1]
    %v428 = vlaneseq
    %v429 = vshrl.u32 %v428, 7
    %v430 = vsub.s32 0, %v429
    %v431 = vrot.slane %v427, %v430
    %v432 = vmul.f32 %v419, %v431
    %v433 = vmul.f32 %v420, %v431
    %v434 = vmul.f32 %v421, %v431
    %v435 = vmul.f32 %v422, %v431
    %v436 = vmul.f32 %v423, %v431
    %v437 = vmul.f32 %v424, %v431
    %v438 = vmul.f32 %v425, %v431
    %v439 = vmul.f32 %v426, %v431
    %v440 = vadd.f32 %v411, %v432
    %v441 = vadd.f32 %v412, %v433
    %v442 = vadd.f32 %v413, %v434
    %v443 = vadd.f32 %v414, %v435
    %v444 = vadd.f32 %v415, %v436
    %v445 = vadd.f32 %v416, %v437
    %v446 = vadd.f32 %v417, %v438
    %v447 = vadd.f32 %v418, %v439
    %448 = vrot.lane.b32.xlu0 %v419, 127
    %v449 = vpop.permute.xlu0 %448
    %450 = vrot.lane.b32.xlu0 %v420, 127
    %v451 = vpop.permute.xlu0 %450
    %452 = vrot.lane.b32.xlu0 %v421, 127
    %v453 = vpop.permute.xlu0 %452
    %454 = vrot.lane.b32.xlu0 %v422, 127
    %v455 = vpop.permute.xlu0 %454
    %456 = vrot.lane.b32.xlu0 %v423, 127
    %v457 = vpop.permute.xlu0 %456
    %458 = vrot.lane.b32.xlu0 %v424, 127
    %v459 = vpop.permute.xlu0 %458
    %460 = vrot.lane.b32.xlu0 %v425, 127
    %v461 = vpop.permute.xlu0 %460
    %462 = vrot.lane.b32.xlu0 %v426, 127
    %v463 = vpop.permute.xlu0 %462
    %v464 = vld [vmem:[%s1 + $0x7] sm:$0x1]
    %v465 = vlaneseq
    %v466 = vshrl.u32 %v465, 7
    %v467 = vsub.s32 0, %v466
    %v468 = vrot.slane %v464, %v467
    %v469 = vmul.f32 %v449, %v468
    %v470 = vmul.f32 %v451, %v468
    %v471 = vmul.f32 %v453, %v468
    %v472 = vmul.f32 %v455, %v468
    %v473 = vmul.f32 %v457, %v468
    %v474 = vmul.f32 %v459, %v468
    %v475 = vmul.f32 %v461, %v468
    %v476 = vmul.f32 %v463, %v468
    %v477 = vadd.f32 %v440, %v469
    %v478 = vadd.f32 %v441, %v470
    %v479 = vadd.f32 %v442, %v471
    %v480 = vadd.f32 %v443, %v472
    %v481 = vadd.f32 %v444, %v473
    %v482 = vadd.f32 %v445, %v474
    %v483 = vadd.f32 %v446, %v475
    %v484 = vadd.f32 %v447, %v476
    %485 = vrot.lane.b32.xlu0 %v419, 126
    %v486 = vpop.permute.xlu0 %485
    %487 = vrot.lane.b32.xlu0 %v420, 126
    %v488 = vpop.permute.xlu0 %487
    %489 = vrot.lane.b32.xlu0 %v421, 126
    %v490 = vpop.permute.xlu0 %489
    %491 = vrot.lane.b32.xlu0 %v422, 126
    %v492 = vpop.permute.xlu0 %491
    %493 = vrot.lane.b32.xlu0 %v423, 126
    %v494 = vpop.permute.xlu0 %493
    %495 = vrot.lane.b32.xlu0 %v424, 126
    %v496 = vpop.permute.xlu0 %495
    %497 = vrot.lane.b32.xlu0 %v425, 126
    %v498 = vpop.permute.xlu0 %497
    %499 = vrot.lane.b32.xlu0 %v426, 126
    %v500 = vpop.permute.xlu0 %499
    %v501 = vld [vmem:[%s1 + $0x8] sm:$0x1]
    %v502 = vlaneseq
    %v503 = vshrl.u32 %v502, 7
    %v504 = vsub.s32 0, %v503
    %v505 = vrot.slane %v501, %v504
    %v506 = vmul.f32 %v486, %v505
    %v507 = vmul.f32 %v488, %v505
    %v508 = vmul.f32 %v490, %v505
    %v509 = vmul.f32 %v492, %v505
    %v510 = vmul.f32 %v494, %v505
    %v511 = vmul.f32 %v496, %v505
    %v512 = vmul.f32 %v498, %v505
    %v513 = vmul.f32 %v500, %v505
    %v514 = vadd.f32 %v477, %v506
    %v515 = vadd.f32 %v478, %v507
    %v516 = vadd.f32 %v479, %v508
    %v517 = vadd.f32 %v480, %v509
    %v518 = vadd.f32 %v481, %v510
    %v519 = vadd.f32 %v482, %v511
    %v520 = vadd.f32 %v483, %v512
    %v521 = vadd.f32 %v484, %v513
    %v522 = vld [vmem:[%s2] sm:$0x1]
    %v524 = vlaneseq
    %v525 = vshrl.u32 %v524, 7
    %v526 = vsub.s32 0, %v525
    %v527 = vrot.slane %v522, %v526
    %v529 = vadd.f32 %v514, %v527
    %v530 = vadd.f32 %v515, %v527
    %v531 = vadd.f32 %v516, %v527
    %v532 = vadd.f32 %v517, %v527
    %v533 = vadd.f32 %v518, %v527
    %v534 = vadd.f32 %v519, %v527
    %v535 = vadd.f32 %v520, %v527
    %v536 = vadd.f32 %v521, %v527
    %vm537 = vcmp.ge.f32.partialorder %v529, 0.0
    %vm538 = vcmp.ge.f32.partialorder %v530, 0.0
    %vm539 = vcmp.ge.f32.partialorder %v531, 0.0
    %vm540 = vcmp.ge.f32.partialorder %v532, 0.0
    %vm541 = vcmp.ge.f32.partialorder %v533, 0.0
    %vm542 = vcmp.ge.f32.partialorder %v534, 0.0
    %vm543 = vcmp.ge.f32.partialorder %v535, 0.0
    %vm544 = vcmp.ge.f32.partialorder %v536, 0.0
    %v545 = vmul.f32 %v529, 0.02
    %v546 = vmul.f32 %v530, 0.02
    %v547 = vmul.f32 %v531, 0.02
    %v548 = vmul.f32 %v532, 0.02
    %v549 = vmul.f32 %v533, 0.02
    %v550 = vmul.f32 %v534, 0.02
    %v551 = vmul.f32 %v535, 0.02
    %v552 = vmul.f32 %v536, 0.02
    %v553 = vsel %vm537, %v529, %v545
    %v554 = vsel %vm538, %v530, %v546
    %v555 = vsel %vm539, %v531, %v547
    %v556 = vsel %vm540, %v532, %v548
    %v557 = vsel %vm541, %v533, %v549
    %v558 = vsel %vm542, %v534, %v550
    %v559 = vsel %vm543, %v535, %v551
    %v560 = vsel %vm544, %v536, %v552
    %561 = vst [vmem:[#allocation3] sm:$0xff] %v553
    %562 = vst [vmem:[#allocation3 + $0x8] sm:$0xff] %v554
    %563 = vst [vmem:[#allocation3 + $0x10] sm:$0xff] %v555
    %564 = vst [vmem:[#allocation3 + $0x18] sm:$0xff] %v556
    %565 = vst [vmem:[#allocation3 + $0x20] sm:$0xff] %v557
    %566 = vst [vmem:[#allocation3 + $0x28] sm:$0xff] %v558
    %567 = vst [vmem:[#allocation3 + $0x30] sm:$0xff] %v559
    %568 = vst [vmem:[#allocation3 + $0x38] sm:$0xff] %v560
    %v569 = vld [vmem:[#allocation3] ss:$2 sm:$0xff]
    %s570 = scalar_lea.vmem [#allocation3], 16
    %v571 = vld [vmem:[%s570] ss:$2 sm:$0xff]
    %s572 = scalar_lea.vmem [#allocation3], 32
    %v573 = vld [vmem:[%s572] ss:$2 sm:$0xff]
    %s574 = scalar_lea.vmem [#allocation3], 48
    %v575 = vld [vmem:[%s574] ss:$2 sm:$0xff]
    %s576 = scalar_lea.vmem [#allocation3], 1
    %v577 = vld [vmem:[%s576] ss:$2 sm:$0xff]
    %s578 = scalar_lea.vmem [#allocation3], 17
    %v579 = vld [vmem:[%s578] ss:$2 sm:$0xff]
    %s580 = scalar_lea.vmem [#allocation3], 33
    %v581 = vld [vmem:[%s580] ss:$2 sm:$0xff]
    %s582 = scalar_lea.vmem [#allocation3], 49
    %v583 = vld [vmem:[%s582] ss:$2 sm:$0xff]
    %v584 = vmax.f32 %v569, %v577
    %v585 = vmax.f32 %v571, %v579
    %v586 = vmax.f32 %v573, %v581
    %v587 = vmax.f32 %v575, %v583
    %588 = vrot.lane.b32.xlu0 %v584, 127
    %v589 = vpop.permute.xlu0 %588
    %590 = vrot.lane.b32.xlu0 %v585, 127
    %v591 = vpop.permute.xlu0 %590
    %592 = vrot.lane.b32.xlu0 %v586, 127
    %v593 = vpop.permute.xlu0 %592
    %594 = vrot.lane.b32.xlu0 %v587, 127
    %v595 = vpop.permute.xlu0 %594
    %v596 = vmax.f32 %v584, %v589
    %v597 = vmax.f32 %v585, %v591
    %v598 = vmax.f32 %v586, %v593
    %v599 = vmax.f32 %v587, %v595
    %600 = vst [vmem:[#allocation4] sm:$0xff] 0.0
    %601 = vst [vmem:[#allocation4 + $0x8] sm:$0xff] 0.0
    %602 = vst [vmem:[#allocation4 + $0x10] sm:$0xff] 0.0
    %603 = vst [vmem:[#allocation4 + $0x18] sm:$0xff] 0.0
    %604 = vst [vmem:[#allocation4 + $0x20] sm:$0xff] 0.0
    %605 = vst [vmem:[#allocation4 + $0x28] sm:$0xff] 0.0
    %606 = vst [vmem:[#allocation4 + $0x30] sm:$0xff] 0.0
    %607 = vst [vmem:[#allocation4 + $0x38] sm:$0xff] 0.0
    %608 = vst [vmem:[#allocation4 + $0x40] sm:$0xff] 0.0
    %609 = vst [vmem:[#allocation4 + $0x48] sm:$0xff] 0.0
    %610 = vst [vmem:[#allocation4 + $0x50] sm:$0xff] 0.0
    %611 = vst [vmem:[#allocation4 + $0x58] sm:$0xff] 0.0
    %612 = vst [vmem:[#allocation4 + $0x60] sm:$0xff] 0.0
    %613 = vst [vmem:[#allocation4 + $0x68] sm:$0xff] 0.0
    %614 = vst [vmem:[#allocation4 + $0x70] sm:$0xff] 0.0
    %615 = vst [vmem:[#allocation4 + $0x78] sm:$0xff] 0.0
    %616 = vst [vmem:[#allocation4 + $0x80] sm:$0xff] 0.0
    %617 = vst [vmem:[#allocation4 + $0x88] sm:$0xff] 0.0
    %618 = vst [vmem:[#allocation4 + $0x90] sm:$0xff] 0.0
    %619 = vst [vmem:[#allocation4 + $0x98] sm:$0xff] 0.0
    %620 = vst [vmem:[#allocation4 + $0xa0] sm:$0xff] 0.0
    %621 = vst [vmem:[#allocation4 + $0xa8] sm:$0xff] 0.0
    %622 = vst [vmem:[#allocation4 + $0xb0] sm:$0xff] 0.0
    %623 = vst [vmem:[#allocation4 + $0xb8] sm:$0xff] 0.0
    %624 = vst [vmem:[#allocation4 + $0xc0] sm:$0xff] 0.0
    %625 = vst [vmem:[#allocation4 + $0xc8] sm:$0xff] 0.0
    %626 = vst [vmem:[#allocation4 + $0xd0] sm:$0xff] 0.0
    %627 = vst [vmem:[#allocation4 + $0xd8] sm:$0xff] 0.0
    %628 = vst [vmem:[#allocation4 + $0xe0] sm:$0xff] 0.0
    %629 = vst [vmem:[#allocation4 + $0xe8] sm:$0xff] 0.0
    %630 = vst [vmem:[#allocation4 + $0xf0] sm:$0xff] 0.0
    %631 = vst [vmem:[#allocation4 + $0xf8] sm:$0xff] 0.0
    %632 = vst [vmem:[#allocation4 + $0x100] sm:$0xff] 0.0
    %v633 = vld [vmem:[%s5] sm:$0xff]
    %v634 = vld [vmem:[%s5 + $0x8] sm:$0xff]
    %v635 = vld [vmem:[%s5 + $0x10] sm:$0xff]
    %v636 = vld [vmem:[%s5 + $0x18] sm:$0xff]
    %v637 = vld [vmem:[%s5 + $0x20] sm:$0xff]
    %v638 = vld [vmem:[%s5 + $0x28] sm:$0xff]
    %v639 = vld [vmem:[%s5 + $0x30] sm:$0xff]
    %v640 = vld [vmem:[%s5 + $0x38] sm:$0xff]
    %v641 = vld [vmem:[%s5 + $0x40] sm:$0xff]
    %v642 = vld [vmem:[%s5 + $0x48] sm:$0xff]
    %v643 = vld [vmem:[%s5 + $0x50] sm:$0xff]
    %v644 = vld [vmem:[%s5 + $0x58] sm:$0xff]
    %v645 = vld [vmem:[%s5 + $0x60] sm:$0xff]
    %v646 = vld [vmem:[%s5 + $0x68] sm:$0xff]
    %v647 = vld [vmem:[%s5 + $0x70] sm:$0xff]
    %v648 = vld [vmem:[%s5 + $0x78] sm:$0xff]
    %649 = vmatprep.subr.mxu0 0.0
    %650 = vmatpush1.msra.mxu0 %v633
    %651 = vmatprep.subr.mxu0 0.0
    %652 = vmatpush1.msra.mxu0 %v634
    %653 = vmatprep.subr.mxu0 0.0
    %654 = vmatpush1.msra.mxu0 %v635
    %655 = vmatprep.subr.mxu0 0.0
    %656 = vmatpush1.msra.mxu0 %v636
    %657 = vmatprep.subr.mxu0 0.0
    %658 = vmatpush1.msra.mxu0 %v637
    %659 = vmatprep.subr.mxu0 0.0
    %660 = vmatpush1.msra.mxu0 %v638
    %661 = vmatprep.subr.mxu0 0.0
    %662 = vmatpush1.msra.mxu0 %v639
    %663 = vmatprep.subr.mxu0 0.0
    %664 = vmatpush1.msra.mxu0 %v640
    %665 = vmatprep.subr.mxu0 0.0
    %666 = vmatpush1.msra.mxu0 %v641
    %667 = vmatprep.subr.mxu0 0.0
    %668 = vmatpush1.msra.mxu0 %v642
    %669 = vmatprep.subr.mxu0 0.0
    %670 = vmatpush1.msra.mxu0 %v643
    %671 = vmatprep.subr.mxu0 0.0
    %672 = vmatpush1.msra.mxu0 %v644
    %673 = vmatprep.subr.mxu0 0.0
    %674 = vmatpush1.msra.mxu0 %v645
    %675 = vmatprep.subr.mxu0 0.0
    %676 = vmatpush1.msra.mxu0 %v646
    %677 = vmatprep.subr.mxu0 0.0
    %678 = vmatpush1.msra.mxu0 %v647
    %679 = vmatprep.subr.mxu0 0.0
    %680 = vmatpush1.msra.mxu0 %v648
    %681 = vmatprep.subr.mxu0 0.0
    %682 = vmatpush1.msra.mxu0 0.0
    %683 = vmatprep.subr.mxu0 0.0
    %684 = vmatpush1.msra.mxu0 0.0
    %685 = vmatprep.subr.mxu0 0.0
    %686 = vmatpush1.msra.mxu0 0.0
    %687 = vmatprep.subr.mxu0 0.0
    %688 = vmatpush1.msra.mxu0 0.0
    %689 = vmatprep.subr.mxu0 0.0
    %690 = vmatpush1.msra.mxu0 0.0
    %691 = vmatprep.subr.mxu0 0.0
    %692 = vmatpush1.msra.mxu0 0.0
    %693 = vmatprep.subr.mxu0 0.0
    %694 = vmatpush1.msra.mxu0 0.0
    %695 = vmatprep.subr.mxu0 0.0
    %696 = vmatpush1.msra.mxu0 0.0
    %697 = vmatprep.subr.mxu0 0.0
    %698 = vmatpush1.msra.mxu0 0.0
    %699 = vmatprep.subr.mxu0 0.0
    %700 = vmatpush1.msra.mxu0 0.0
    %701 = vmatprep.subr.mxu0 0.0
    %702 = vmatpush1.msra.mxu0 0.0
    %703 = vmatprep.subr.mxu0 0.0
    %704 = vmatpush1.msra.mxu0 0.0
    %705 = vmatprep.subr.mxu0 0.0
    %706 = vmatpush1.msra.mxu0 0.0
    %707 = vmatprep.subr.mxu0 0.0
    %708 = vmatpush1.msra.mxu0 0.0
    %709 = vmatprep.subr.mxu0 0.0
    %710 = vmatpush1.msra.mxu0 0.0
    %711 = vmatprep.subr.mxu0 0.0
    %712 = vmatpush1.msra.mxu0 0.0
    %713 = vmatprep.mubr.f32.mxu0 0.0
    %714 = vmatmul.mubr.f32.gmra.mrb[0].mxu0 %v596
    %v715 = vpop.f32.mrb[0].mxu0
    %v716 = vadd.f32 0.0, %v715
    %v717 = vpop.f32.mrb[0].mxu0
    %718 = vmatprep.mubr.f32.mxu0 0.0
    %719 = vmatmul.mubr.f32.gmra.mrb[0].mxu0 %v597
    %v720 = vpop.f32.mrb[0].mxu0
    %v721 = vadd.f32 0.0, %v720
    %v722 = vpop.f32.mrb[0].mxu0
    %723 = vmatprep.mubr.f32.mxu0 0.0
    %724 = vmatmul.mubr.f32.gmra.mrb[0].mxu0 %v598
    %v725 = vpop.f32.mrb[0].mxu0
    %v726 = vadd.f32 0.0, %v725
    %v727 = vpop.f32.mrb[0].mxu0
    %728 = vmatprep.mubr.f32.mxu0 0.0
    %729 = vmatmul.mubr.f32.gmra.mrb[0].mxu0 %v599
    %v730 = vpop.f32.mrb[0].mxu0
    %v731 = vadd.f32 0.0, %v730
    %v732 = vpop.f32.mrb[0].mxu0
    %733 = vdwg.mxu0
    %734 = vst [vmem:[#allocation4 + $0x2] sm:$0xff] %v716
    %735 = vst [vmem:[#allocation4 + $0xa] sm:$0x3f] %v721
    %736 = vst [vmem:[#allocation4 + $0x22] sm:$0xff] %v726
    %737 = vst [vmem:[#allocation4 + $0x2a] sm:$0x3f] %v731
    %s738 = scalar_lea.vmem %s5, 128
    %v739 = vld [vmem:[%s738] sm:$0xff]
    %v740 = vld [vmem:[%s738 + $0x8] sm:$0xff]
    %v741 = vld [vmem:[%s738 + $0x10] sm:$0xff]
    %v742 = vld [vmem:[%s738 + $0x18] sm:$0xff]
    %v743 = vld [vmem:[%s738 + $0x20] sm:$0xff]
    %v744 = vld [vmem:[%s738 + $0x28] sm:$0xff]
    %v745 = vld [vmem:[%s738 + $0x30] sm:$0xff]
    %v746 = vld [vmem:[%s738 + $0x38] sm:$0xff]
    %v747 = vld [vmem:[%s738 + $0x40] sm:$0xff]
    %v748 = vld [vmem:[%s738 + $0x48] sm:$0xff]
    %v749 = vld [vmem:[%s738 + $0x50] sm:$0xff]
    %v750 = vld [vmem:[%s738 + $0x58] sm:$0xff]
    %v751 = vld [vmem:[%s738 + $0x60] sm:$0xff]
    %v752 = vld [vmem:[%s738 + $0x68] sm:$0xff]
    %v753 = vld [vmem:[%s738 + $0x70] sm:$0xff]
    %v754 = vld [vmem:[%s738 + $0x78] sm:$0xff]
    %755 = vmatprep.subr.mxu0 0.0
    %756 = vmatpush1.msra.mxu0 %v739
    %757 = vmatprep.subr.mxu0 0.0
    %758 = vmatpush1.msra.mxu0 %v740
    %759 = vmatprep.subr.mxu0 0.0
    %760 = vmatpush1.msra.mxu0 %v741
    %761 = vmatprep.subr.mxu0 0.0
    %762 = vmatpush1.msra.mxu0 %v742
    %763 = vmatprep.subr.mxu0 0.0
    %764 = vmatpush1.msra.mxu0 %v743
    %765 = vmatprep.subr.mxu0 0.0
    %766 = vmatpush1.msra.mxu0 %v744
    %767 = vmatprep.subr.mxu0 0.0
    %768 = vmatpush1.msra.mxu0 %v745
    %769 = vmatprep.subr.mxu0 0.0
    %770 = vmatpush1.msra.mxu0 %v746
    %771 = vmatprep.subr.mxu0 0.0
    %772 = vmatpush1.msra.mxu0 %v747
    %773 = vmatprep.subr.mxu0 0.0
    %774 = vmatpush1.msra.mxu0 %v748
    %775 = vmatprep.subr.mxu0 0.0
    %776 = vmatpush1.msra.mxu0 %v749
    %777 = vmatprep.subr.mxu0 0.0
    %778 = vmatpush1.msra.mxu0 %v750
    %779 = vmatprep.subr.mxu0 0.0
    %780 = vmatpush1.msra.mxu0 %v751
    %781 = vmatprep.subr.mxu0 0.0
    %782 = vmatpush1.msra.mxu0 %v752
    %783 = vmatprep.subr.mxu0 0.0
    %784 = vmatpush1.msra.mxu0 %v753
    %785 = vmatprep.subr.mxu0 0.0
    %786 = vmatpush1.msra.mxu0 %v754
    %787 = vmatprep.subr.mxu0 0.0
    %788 = vmatpush1.msra.mxu0 0.0
    %789 = vmatprep.subr.mxu0 0.0
    %790 = vmatpush1.msra.mxu0 0.0
    %791 = vmatprep.subr.mxu0 0.0
    %792 = vmatpush1.msra.mxu0 0.0
    %793 = vmatprep.subr.mxu0 0.0
    %794 = vmatpush1.msra.mxu0 0.0
    %795 = vmatprep.subr.mxu0 0.0
    %796 = vmatpush1.msra.mxu0 0.0
    %797 = vmatprep.subr.mxu0 0.0
    %798 = vmatpush1.msra.mxu0 0.0
    %799 = vmatprep.subr.mxu0 0.0
    %800 = vmatpush1.msra.mxu0 0.0
    %801 = vmatprep.subr.mxu0 0.0
    %802 = vmatpush1.msra.mxu0 0.0
    %803 = vmatprep.subr.mxu0 0.0
    %804 = vmatpush1.msra.mxu0 0.0
    %805 = vmatprep.subr.mxu0 0.0
    %806 = vmatpush1.msra.mxu0 0.0
    %807 = vmatprep.subr.mxu0 0.0
    %808 = vmatpush1.msra.mxu0 0.0
    %809 = vmatprep.subr.mxu0 0.0
    %810 = vmatpush1.msra.mxu0 0.0
    %811 = vmatprep.subr.mxu0 0.0
    %812 = vmatpush1.msra.mxu0 0.0
    %813 = vmatprep.subr.mxu0 0.0
    %814 = vmatpush1.msra.mxu0 0.0
    %815 = vmatprep.subr.mxu0 0.0
    %816 = vmatpush1.msra.mxu0 0.0
    %817 = vmatprep.subr.mxu0 0.0
    %818 = vmatpush1.msra.mxu0 0.0
    %819 = vmatprep.mubr.f32.mxu0 0.0
    %820 = vmatmul.mubr.f32.gmra.mrb[0].mxu0 %v596
    %v821 = vpop.f32.mrb[0].mxu0
    %v822 = vadd.f32 0.0, %v821
    %v823 = vpop.f32.mrb[0].mxu0
    %824 = vmatprep.mubr.f32.mxu0 0.0
    %825 = vmatmul.mubr.f32.gmra.mrb[0].mxu0 %v597
    %v826 = vpop.f32.mrb[0].mxu0
    %v827 = vadd.f32 0.0, %v826
    %v828 = vpop.f32.mrb[0].mxu0
    %829 = vmatprep.mubr.f32.mxu0 0.0
    %830 = vmatmul.mubr.f32.gmra.mrb[0].mxu0 %v598
    %v831 = vpop.f32.mrb[0].mxu0
    %v832 = vadd.f32 0.0, %v831
    %v833 = vpop.f32.mrb[0].mxu0
    %834 = vmatprep.mubr.f32.mxu0 0.0
    %835 = vmatmul.mubr.f32.gmra.mrb[0].mxu0 %v599
    %v836 = vpop.f32.mrb[0].mxu0
    %v837 = vadd.f32 0.0, %v836
    %v838 = vpop.f32.mrb[0].mxu0
    %839 = vdwg.mxu0
    %840 = vst [vmem:[#allocation4 + $0x42] sm:$0xff] %v822
    %841 = vst [vmem:[#allocation4 + $0x4a] sm:$0x3f] %v827
    %842 = vst [vmem:[#allocation4 + $0x62] sm:$0xff] %v832
    %843 = vst [vmem:[#allocation4 + $0x6a] sm:$0x3f] %v837
    %s844 = scalar_lea.vmem %s5, 256
    %v845 = vld [vmem:[%s844] sm:$0xff]
    %v846 = vld [vmem:[%s844 + $0x8] sm:$0xff]
    %v847 = vld [vmem:[%s844 + $0x10] sm:$0xff]
    %v848 = vld [vmem:[%s844 + $0x18] sm:$0xff]
    %v849 = vld [vmem:[%s844 + $0x20] sm:$0xff]
    %v850 = vld [vmem:[%s844 + $0x28] sm:$0xff]
    %v851 = vld [vmem:[%s844 + $0x30] sm:$0xff]
    %v852 = vld [vmem:[%s844 + $0x38] sm:$0xff]
    %v853 = vld [vmem:[%s844 + $0x40] sm:$0xff]
    %v854 = vld [vmem:[%s844 + $0x48] sm:$0xff]
    %v855 = vld [vmem:[%s844 + $0x50] sm:$0xff]
    %v856 = vld [vmem:[%s844 + $0x58] sm:$0xff]
    %v857 = vld [vmem:[%s844 + $0x60] sm:$0xff]
    %v858 = vld [vmem:[%s844 + $0x68] sm:$0xff]
    %v859 = vld [vmem:[%s844 + $0x70] sm:$0xff]
    %v860 = vld [vmem:[%s844 + $0x78] sm:$0xff]
    %861 = vmatprep.subr.mxu0 0.0
    %862 = vmatpush1.msra.mxu0 %v845
    %863 = vmatprep.subr.mxu0 0.0
    %864 = vmatpush1.msra.mxu0 %v846
    %865 = vmatprep.subr.mxu0 0.0
    %866 = vmatpush1.msra.mxu0 %v847
    %867 = vmatprep.subr.mxu0 0.0
    %868 = vmatpush1.msra.mxu0 %v848
    %869 = vmatprep.subr.mxu0 0.0
    %870 = vmatpush1.msra.mxu0 %v849
    %871 = vmatprep.subr.mxu0 0.0
    %872 = vmatpush1.msra.mxu0 %v850
    %873 = vmatprep.subr.mxu0 0.0
    %874 = vmatpush1.msra.mxu0 %v851
    %875 = vmatprep.subr.mxu0 0.0
    %876 = vmatpush1.msra.mxu0 %v852
    %877 = vmatprep.subr.mxu0 0.0
    %878 = vmatpush1.msra.mxu0 %v853
    %879 = vmatprep.subr.mxu0 0.0
    %880 = vmatpush1.msra.mxu0 %v854
    %881 = vmatprep.subr.mxu0 0.0
    %882 = vmatpush1.msra.mxu0 %v855
    %883 = vmatprep.subr.mxu0 0.0
    %884 = vmatpush1.msra.mxu0 %v856
    %885 = vmatprep.subr.mxu0 0.0
    %886 = vmatpush1.msra.mxu0 %v857
    %887 = vmatprep.subr.mxu0 0.0
    %888 = vmatpush1.msra.mxu0 %v858
    %889 = vmatprep.subr.mxu0 0.0
    %890 = vmatpush1.msra.mxu0 %v859
    %891 = vmatprep.subr.mxu0 0.0
    %892 = vmatpush1.msra.mxu0 %v860
    %893 = vmatprep.subr.mxu0 0.0
    %894 = vmatpush1.msra.mxu0 0.0
    %895 = vmatprep.subr.mxu0 0.0
    %896 = vmatpush1.msra.mxu0 0.0
    %897 = vmatprep.subr.mxu0 0.0
    %898 = vmatpush1.msra.mxu0 0.0
    %899 = vmatprep.subr.mxu0 0.0
    %900 = vmatpush1.msra.mxu0 0.0
    %901 = vmatprep.subr.mxu0 0.0
    %902 = vmatpush1.msra.mxu0 0.0
    %903 = vmatprep.subr.mxu0 0.0
    %904 = vmatpush1.msra.mxu0 0.0
    %905 = vmatprep.subr.mxu0 0.0
    %906 = vmatpush1.msra.mxu0 0.0
    %907 = vmatprep.subr.mxu0 0.0
    %908 = vmatpush1.msra.mxu0 0.0
    %909 = vmatprep.subr.mxu0 0.0
    %910 = vmatpush1.msra.mxu0 0.0
    %911 = vmatprep.subr.mxu0 0.0
    %912 = vmatpush1.msra.mxu0 0.0
    %913 = vmatprep.subr.mxu0 0.0
    %914 = vmatpush1.msra.mxu0 0.0
    %915 = vmatprep.subr.mxu0 0.0
    %916 = vmatpush1.msra.mxu0 0.0
    %917 = vmatprep.subr.mxu0 0.0
    %918 = vmatpush1.msra.mxu0 0.0
    %919 = vmatprep.subr.mxu0 0.0
    %920 = vmatpush1.msra.mxu0 0.0
    %921 = vmatprep.subr.mxu0 0.0
    %922 = vmatpush1.msra.mxu0 0.0
    %923 = vmatprep.subr.mxu0 0.0
    %924 = vmatpush1.msra.mxu0 0.0
    %925 = vmatprep.mubr.f32.mxu0 0.0
    %926 = vmatmul.mubr.f32.gmra.mrb[0].mxu0 %v596
    %v927 = vpop.f32.mrb[0].mxu0
    %v928 = vadd.f32 0.0, %v927
    %v929 = vpop.f32.mrb[0].mxu0
    %930 = vmatprep.mubr.f32.mxu0 0.0
    %931 = vmatmul.mubr.f32.gmra.mrb[0].mxu0 %v597
    %v932 = vpop.f32.mrb[0].mxu0
    %v933 = vadd.f32 0.0, %v932
    %v934 = vpop.f32.mrb[0].mxu0
    %935 = vmatprep.mubr.f32.mxu0 0.0
    %936 = vmatmul.mubr.f32.gmra.mrb[0].mxu0 %v598
    %v937 = vpop.f32.mrb[0].mxu0
    %v938 = vadd.f32 0.0, %v937
    %v939 = vpop.f32.mrb[0].mxu0
    %940 = vmatprep.mubr.f32.mxu0 0.0
    %941 = vmatmul.mubr.f32.gmra.mrb[0].mxu0 %v599
    %v942 = vpop.f32.mrb[0].mxu0
    %v943 = vadd.f32 0.0, %v942
    %v944 = vpop.f32.mrb[0].mxu0
    %945 = vdwg.mxu0
    %946 = vst [vmem:[#allocation4 + $0x82] sm:$0xff] %v928
    %947 = vst [vmem:[#allocation4 + $0x8a] sm:$0x3f] %v933
    %948 = vst [vmem:[#allocation4 + $0xa2] sm:$0xff] %v938
    %949 = vst [vmem:[#allocation4 + $0xaa] sm:$0x3f] %v943
    %s950 = scalar_lea.vmem %s5, 384
    %v951 = vld [vmem:[%s950] sm:$0xff]
    %v952 = vld [vmem:[%s950 + $0x8] sm:$0xff]
    %v953 = vld [vmem:[%s950 + $0x10] sm:$0xff]
    %v954 = vld [vmem:[%s950 + $0x18] sm:$0xff]
    %v955 = vld [vmem:[%s950 + $0x20] sm:$0xff]
    %v956 = vld [vmem:[%s950 + $0x28] sm:$0xff]
    %v957 = vld [vmem:[%s950 + $0x30] sm:$0xff]
    %v958 = vld [vmem:[%s950 + $0x38] sm:$0xff]
    %v959 = vld [vmem:[%s950 + $0x40] sm:$0xff]
    %v960 = vld [vmem:[%s950 + $0x48] sm:$0xff]
    %v961 = vld [vmem:[%s950 + $0x50] sm:$0xff]
    %v962 = vld [vmem:[%s950 + $0x58] sm:$0xff]
    %v963 = vld [vmem:[%s950 + $0x60] sm:$0xff]
    %v964 = vld [vmem:[%s950 + $0x68] sm:$0xff]
    %v965 = vld [vmem:[%s950 + $0x70] sm:$0xff]
    %v966 = vld [vmem:[%s950 + $0x78] sm:$0xff]
    %967 = vmatprep.subr.mxu0 0.0
    %968 = vmatpush1.msra.mxu0 %v951
    %969 = vmatprep.subr.mxu0 0.0
    %970 = vmatpush1.msra.mxu0 %v952
    %971 = vmatprep.subr.mxu0 0.0
    %972 = vmatpush1.msra.mxu0 %v953
    %973 = vmatprep.subr.mxu0 0.0
    %974 = vmatpush1.msra.mxu0 %v954
    %975 = vmatprep.subr.mxu0 0.0
    %976 = vmatpush1.msra.mxu0 %v955
    %977 = vmatprep.subr.mxu0 0.0
    %978 = vmatpush1.msra.mxu0 %v956
    %979 = vmatprep.subr.mxu0 0.0
    %980 = vmatpush1.msra.mxu0 %v957
    %981 = vmatprep.subr.mxu0 0.0
    %982 = vmatpush1.msra.mxu0 %v958
    %983 = vmatprep.subr.mxu0 0.0
    %984 = vmatpush1.msra.mxu0 %v959
    %985 = vmatprep.subr.mxu0 0.0
    %986 = vmatpush1.msra.mxu0 %v960
    %987 = vmatprep.subr.mxu0 0.0
    %988 = vmatpush1.msra.mxu0 %v961
    %989 = vmatprep.subr.mxu0 0.0
    %990 = vmatpush1.msra.mxu0 %v962
    %991 = vmatprep.subr.mxu0 0.0
    %992 = vmatpush1.msra.mxu0 %v963
    %993 = vmatprep.subr.mxu0 0.0
    %994 = vmatpush1.msra.mxu0 %v964
    %995 = vmatprep.subr.mxu0 0.0
    %996 = vmatpush1.msra.mxu0 %v965
    %997 = vmatprep.subr.mxu0 0.0
    %998 = vmatpush1.msra.mxu0 %v966
    %999 = vmatprep.subr.mxu0 0.0
    %1000 = vmatpush1.msra.mxu0 0.0
    %1001 = vmatprep.subr.mxu0 0.0
    %1002 = vmatpush1.msra.mxu0 0.0
    %1003 = vmatprep.subr.mxu0 0.0
    %1004 = vmatpush1.msra.mxu0 0.0
    %1005 = vmatprep.subr.mxu0 0.0
    %1006 = vmatpush1.msra.mxu0 0.0
    %1007 = vmatprep.subr.mxu0 0.0
    %1008 = vmatpush1.msra.mxu0 0.0
    %1009 = vmatprep.subr.mxu0 0.0
    %1010 = vmatpush1.msra.mxu0 0.0
    %1011 = vmatprep.subr.mxu0 0.0
    %1012 = vmatpush1.msra.mxu0 0.0
    %1013 = vmatprep.subr.mxu0 0.0
    %1014 = vmatpush1.msra.mxu0 0.0
    %1015 = vmatprep.subr.mxu0 0.0
    %1016 = vmatpush1.msra.mxu0 0.0
    %1017 = vmatprep.subr.mxu0 0.0
    %1018 = vmatpush1.msra.mxu0 0.0
    %1019 = vmatprep.subr.mxu0 0.0
    %1020 = vmatpush1.msra.mxu0 0.0
    %1021 = vmatprep.subr.mxu0 0.0
    %1022 = vmatpush1.msra.mxu0 0.0
    %1023 = vmatprep.subr.mxu0 0.0
    %1024 = vmatpush1.msra.mxu0 0.0
    %1025 = vmatprep.subr.mxu0 0.0
    %1026 = vmatpush1.msra.mxu0 0.0
    %1027 = vmatprep.subr.mxu0 0.0
    %1028 = vmatpush1.msra.mxu0 0.0
    %1029 = vmatprep.subr.mxu0 0.0
    %1030 = vmatpush1.msra.mxu0 0.0
    %1031 = vmatprep.mubr.f32.mxu0 0.0
    %1032 = vmatmul.mubr.f32.gmra.mrb[0].mxu0 %v596
    %v1033 = vpop.f32.mrb[0].mxu0
    %v1034 = vadd.f32 0.0, %v1033
    %v1035 = vpop.f32.mrb[0].mxu0
    %1036 = vmatprep.mubr.f32.mxu0 0.0
    %1037 = vmatmul.mubr.f32.gmra.mrb[0].mxu0 %v597
    %v1038 = vpop.f32.mrb[0].mxu0
    %v1039 = vadd.f32 0.0, %v1038
    %v1040 = vpop.f32.mrb[0].mxu0
    %1041 = vmatprep.mubr.f32.mxu0 0.0
    %1042 = vmatmul.mubr.f32.gmra.mrb[0].mxu0 %v598
    %v1043 = vpop.f32.mrb[0].mxu0
    %v1044 = vadd.f32 0.0, %v1043
    %v1045 = vpop.f32.mrb[0].mxu0
    %1046 = vmatprep.mubr.f32.mxu0 0.0
    %1047 = vmatmul.mubr.f32.gmra.mrb[0].mxu0 %v599
    %v1048 = vpop.f32.mrb[0].mxu0
    %v1049 = vadd.f32 0.0, %v1048
    %v1050 = vpop.f32.mrb[0].mxu0
    %1051 = vdwg.mxu0
    %1052 = vst [vmem:[#allocation4 + $0xc2] sm:$0xff] %v1034
    %1053 = vst [vmem:[#allocation4 + $0xca] sm:$0x3f] %v1039
    %1054 = vst [vmem:[#allocation4 + $0xe2] sm:$0xff] %v1044
    %1055 = vst [vmem:[#allocation4 + $0xea] sm:$0x3f] %v1049
    %v1056 = vld [vmem:[#allocation4] sm:$0xff]
    %v1057 = vld [vmem:[#allocation4 + $0x8] sm:$0xff]
    %v1058 = vld [vmem:[#allocation4 + $0x10] sm:$0xff]
    %v1059 = vld [vmem:[#allocation4 + $0x18] sm:$0xff]
    %v1060 = vld [vmem:[#allocation4 + $0x20] sm:$0xff]
    %v1061 = vld [vmem:[#allocation4 + $0x28] sm:$0xff]
    %v1062 = vld [vmem:[#allocation4 + $0x30] sm:$0xff]
    %v1063 = vld [vmem:[#allocation4 + $0x38] sm:$0xff]
    %v1064 = vld [vmem:[%s3] sm:$0x1]
    %v1065 = vlaneseq
    %v1066 = vshrl.u32 %v1065, 7
    %v1067 = vsub.s32 0, %v1066
    %v1068 = vrot.slane %v1064, %v1067
    %v1069 = vmul.f32 %v1056, %v1068
    %v1070 = vmul.f32 %v1057, %v1068
    %v1071 = vmul.f32 %v1058, %v1068
    %v1072 = vmul.f32 %v1059, %v1068
    %v1073 = vmul.f32 %v1060, %v1068
    %v1074 = vmul.f32 %v1061, %v1068
    %v1075 = vmul.f32 %v1062, %v1068
    %v1076 = vmul.f32 %v1063, %v1068
    %v1077 = vadd.f32 %v1069, 0.0
    %v1078 = vadd.f32 %v1070, 0.0
    %v1079 = vadd.f32 %v1071, 0.0
    %v1080 = vadd.f32 %v1072, 0.0
    %v1081 = vadd.f32 %v1073, 0.0
    %v1082 = vadd.f32 %v1074, 0.0
    %v1083 = vadd.f32 %v1075, 0.0
    %v1084 = vadd.f32 %v1076, 0.0
    %1085 = vrot.lane.b32.xlu0 %v1056, 127
    %v1086 = vpop.permute.xlu0 %1085
    %1087 = vrot.lane.b32.xlu0 %v1057, 127
    %v1088 = vpop.permute.xlu0 %1087
    %1089 = vrot.lane.b32.xlu0 %v1058, 127
    %v1090 = vpop.permute.xlu0 %1089
    %1091 = vrot.lane.b32.xlu0 %v1059, 127
    %v1092 = vpop.permute.xlu0 %1091
    %1093 = vrot.lane.b32.xlu0 %v1060, 127
    %v1094 = vpop.permute.xlu0 %1093
    %1095 = vrot.lane.b32.xlu0 %v1061, 127
    %v1096 = vpop.permute.xlu0 %1095
    %1097 = vrot.lane.b32.xlu0 %v1062, 127
    %v1098 = vpop.permute.xlu0 %1097
    %1099 = vrot.lane.b32.xlu0 %v1063, 127
    %v1100 = vpop.permute.xlu0 %1099
    %v1101 = vld [vmem:[%s3 + $0x1] sm:$0x1]
    %v1102 = vlaneseq
    %v1103 = vshrl.u32 %v1102, 7
    %v1104 = vsub.s32 0, %v1103
    %v1105 = vrot.slane %v1101, %v1104
    %v1106 = vmul.f32 %v1086, %v1105
    %v1107 = vmul.f32 %v1088, %v1105
    %v1108 = vmul.f32 %v1090, %v1105
    %v1109 = vmul.f32 %v1092, %v1105
    %v1110 = vmul.f32 %v1094, %v1105
    %v1111 = vmul.f32 %v1096, %v1105
    %v1112 = vmul.f32 %v1098, %v1105
    %v1113 = vmul.f32 %v1100, %v1105
    %v1114 = vadd.f32 %v1077, %v1106
    %v1115 = vadd.f32 %v1078, %v1107
    %v1116 = vadd.f32 %v1079, %v1108
    %v1117 = vadd.f32 %v1080, %v1109
    %v1118 = vadd.f32 %v1081, %v1110
    %v1119 = vadd.f32 %v1082, %v1111
    %v1120 = vadd.f32 %v1083, %v1112
    %v1121 = vadd.f32 %v1084, %v1113
    %1122 = vrot.lane.b32.xlu0 %v1056, 126
    %v1123 = vpop.permute.xlu0 %1122
    %1124 = vrot.lane.b32.xlu0 %v1057, 126
    %v1125 = vpop.permute.xlu0 %1124
    %1126 = vrot.lane.b32.xlu0 %v1058, 126
    %v1127 = vpop.permute.xlu0 %1126
    %1128 = vrot.lane.b32.xlu0 %v1059, 126
    %v1129 = vpop.permute.xlu0 %1128
    %1130 = vrot.lane.b32.xlu0 %v1060, 126
    %v1131 = vpop.permute.xlu0 %1130
    %1132 = vrot.lane.b32.xlu0 %v1061, 126
    %v1133 = vpop.permute.xlu0 %1132
    %1134 = vrot.lane.b32.xlu0 %v1062, 126
    %v1135 = vpop.permute.xlu0 %1134
    %1136 = vrot.lane.b32.xlu0 %v1063, 126
    %v1137 = vpop.permute.xlu0 %1136
    %v1138 = vld [vmem:[%s3 + $0x2] sm:$0x1]
    %v1139 = vlaneseq
    %v1140 = vshrl.u32 %v1139, 7
    %v1141 = vsub.s32 0, %v1140
    %v1142 = vrot.slane %v1138, %v1141
    %v1143 = vmul.f32 %v1123, %v1142
    %v1144 = vmul.f32 %v1125, %v1142
    %v1145 = vmul.f32 %v1127, %v1142
    %v1146 = vmul.f32 %v1129, %v1142
    %v1147 = vmul.f32 %v1131, %v1142
    %v1148 = vmul.f32 %v1133, %v1142
    %v1149 = vmul.f32 %v1135, %v1142
    %v1150 = vmul.f32 %v1137, %v1142
    %v1151 = vadd.f32 %v1114, %v1143
    %v1152 = vadd.f32 %v1115, %v1144
    %v1153 = vadd.f32 %v1116, %v1145
    %v1154 = vadd.f32 %v1117, %v1146
    %v1155 = vadd.f32 %v1118, %v1147
    %v1156 = vadd.f32 %v1119, %v1148
    %v1157 = vadd.f32 %v1120, %v1149
    %v1158 = vadd.f32 %v1121, %v1150
    %v1159 = vld [vmem:[#allocation4 + $0x1] sm:$0xff]
    %v1160 = vld [vmem:[#allocation4 + $0x9] sm:$0xff]
    %v1161 = vld [vmem:[#allocation4 + $0x11] sm:$0xff]
    %v1162 = vld [vmem:[#allocation4 + $0x19] sm:$0xff]
    %v1163 = vld [vmem:[#allocation4 + $0x21] sm:$0xff]
    %v1164 = vld [vmem:[#allocation4 + $0x29] sm:$0xff]
    %v1165 = vld [vmem:[#allocation4 + $0x31] sm:$0xff]
    %v1166 = vld [vmem:[#allocation4 + $0x39] sm:$0xff]
    %v1167 = vld [vmem:[%s3 + $0x3] sm:$0x1]
    %v1168 = vlaneseq
    %v1169 = vshrl.u32 %v1168, 7
    %v1170 = vsub.s32 0, %v1169
    %v1171 = vrot.slane %v1167, %v1170
    %v1172 = vmul.f32 %v1159, %v1171
    %v1173 = vmul.f32 %v1160, %v1171
    %v1174 = vmul.f32 %v1161, %v1171
    %v1175 = vmul.f32 %v1162, %v1171
    %v1176 = vmul.f32 %v1163, %v1171
    %v1177 = vmul.f32 %v1164, %v1171
    %v1178 = vmul.f32 %v1165, %v1171
    %v1179 = vmul.f32 %v1166, %v1171
    %v1180 = vadd.f32 %v1151, %v1172
    %v1181 = vadd.f32 %v1152, %v1173
    %v1182 = vadd.f32 %v1153, %v1174
    %v1183 = vadd.f32 %v1154, %v1175
    %v1184 = vadd.f32 %v1155, %v1176
    %v1185 = vadd.f32 %v1156, %v1177
    %v1186 = vadd.f32 %v1157, %v1178
    %v1187 = vadd.f32 %v1158, %v1179
    %1188 = vrot.lane.b32.xlu0 %v1159, 127
    %v1189 = vpop.permute.xlu0 %1188
    %1190 = vrot.lane.b32.xlu0 %v1160, 127
    %v1191 = vpop.permute.xlu0 %1190
    %1192 = vrot.lane.b32.xlu0 %v1161, 127
    %v1193 = vpop.permute.xlu0 %1192
    %1194 = vrot.lane.b32.xlu0 %v1162, 127
    %v1195 = vpop.permute.xlu0 %1194
    %1196 = vrot.lane.b32.xlu0 %v1163, 127
    %v1197 = vpop.permute.xlu0 %1196
    %1198 = vrot.lane.b32.xlu0 %v1164, 127
    %v1199 = vpop.permute.xlu0 %1198
    %1200 = vrot.lane.b32.xlu0 %v1165, 127
    %v1201 = vpop.permute.xlu0 %1200
    %1202 = vrot.lane.b32.xlu0 %v1166, 127
    %v1203 = vpop.permute.xlu0 %1202
    %v1204 = vld [vmem:[%s3 + $0x4] sm:$0x1]
    %v1205 = vlaneseq
    %v1206 = vshrl.u32 %v1205, 7
    %v1207 = vsub.s32 0, %v1206
    %v1208 = vrot.slane %v1204, %v1207
    %v1209 = vmul.f32 %v1189, %v1208
    %v1210 = vmul.f32 %v1191, %v1208
    %v1211 = vmul.f32 %v1193, %v1208
    %v1212 = vmul.f32 %v1195, %v1208
    %v1213 = vmul.f32 %v1197, %v1208
    %v1214 = vmul.f32 %v1199, %v1208
    %v1215 = vmul.f32 %v1201, %v1208
    %v1216 = vmul.f32 %v1203, %v1208
    %v1217 = vadd.f32 %v1180, %v1209
    %v1218 = vadd.f32 %v1181, %v1210
    %v1219 = vadd.f32 %v1182, %v1211
    %v1220 = vadd.f32 %v1183, %v1212
    %v1221 = vadd.f32 %v1184, %v1213
    %v1222 = vadd.f32 %v1185, %v1214
    %v1223 = vadd.f32 %v1186, %v1215
    %v1224 = vadd.f32 %v1187, %v1216
    %1225 = vrot.lane.b32.xlu0 %v1159, 126
    %v1226 = vpop.permute.xlu0 %1225
    %1227 = vrot.lane.b32.xlu0 %v1160, 126
    %v1228 = vpop.permute.xlu0 %1227
    %1229 = vrot.lane.b32.xlu0 %v1161, 126
    %v1230 = vpop.permute.xlu0 %1229
    %1231 = vrot.lane.b32.xlu0 %v1162, 126
    %v1232 = vpop.permute.xlu0 %1231
    %1233 = vrot.lane.b32.xlu0 %v1163, 126
    %v1234 = vpop.permute.xlu0 %1233
    %1235 = vrot.lane.b32.xlu0 %v1164, 126
    %v1236 = vpop.permute.xlu0 %1235
    %1237 = vrot.lane.b32.xlu0 %v1165, 126
    %v1238 = vpop.permute.xlu0 %1237
    %1239 = vrot.lane.b32.xlu0 %v1166, 126
    %v1240 = vpop.permute.xlu0 %1239
    %v1241 = vld [vmem:[%s3 + $0x5] sm:$0x1]
    %v1242 = vlaneseq
    %v1243 = vshrl.u32 %v1242, 7
    %v1244 = vsub.s32 0, %v1243
    %v1245 = vrot.slane %v1241, %v1244
    %v1246 = vmul.f32 %v1226, %v1245
    %v1247 = vmul.f32 %v1228, %v1245
    %v1248 = vmul.f32 %v1230, %v1245
    %v1249 = vmul.f32 %v1232, %v1245
    %v1250 = vmul.f32 %v1234, %v1245
    %v1251 = vmul.f32 %v1236, %v1245
    %v1252 = vmul.f32 %v1238, %v1245
    %v1253 = vmul.f32 %v1240, %v1245
    %v1254 = vadd.f32 %v1217, %v1246
    %v1255 = vadd.f32 %v1218, %v1247
    %v1256 = vadd.f32 %v1219, %v1248
    %v1257 = vadd.f32 %v1220, %v1249
    %v1258 = vadd.f32 %v1221, %v1250
    %v1259 = vadd.f32 %v1222, %v1251
    %v1260 = vadd.f32 %v1223, %v1252
    %v1261 = vadd.f32 %v1224, %v1253
    %v1262 = vld [vmem:[#allocation4 + $0x2] sm:$0xff]
    %v1263 = vld [vmem:[#allocation4 + $0xa] sm:$0xff]
    %v1264 = vld [vmem:[#allocation4 + $0x12] sm:$0xff]
    %v1265 = vld [vmem:[#allocation4 + $0x1a] sm:$0xff]
    %v1266 = vld [vmem:[#allocation4 + $0x22] sm:$0xff]
    %v1267 = vld [vmem:[#allocation4 + $0x2a] sm:$0xff]
    %v1268 = vld [vmem:[#allocation4 + $0x32] sm:$0xff]
    %v1269 = vld [vmem:[#allocation4 + $0x3a] sm:$0xff]
    %v1270 = vld [vmem:[%s3 + $0x6] sm:$0x1]
    %v1271 = vlaneseq
    %v1272 = vshrl.u32 %v1271, 7
    %v1273 = vsub.s32 0, %v1272
    %v1274 = vrot.slane %v1270, %v1273
    %v1275 = vmul.f32 %v1262, %v1274
    %v1276 = vmul.f32 %v1263, %v1274
    %v1277 = vmul.f32 %v1264, %v1274
    %v1278 = vmul.f32 %v1265, %v1274
    %v1279 = vmul.f32 %v1266, %v1274
    %v1280 = vmul.f32 %v1267, %v1274
    %v1281 = vmul.f32 %v1268, %v1274
    %v1282 = vmul.f32 %v1269, %v1274
    %v1283 = vadd.f32 %v1254, %v1275
    %v1284 = vadd.f32 %v1255, %v1276
    %v1285 = vadd.f32 %v1256, %v1277
    %v1286 = vadd.f32 %v1257, %v1278
    %v1287 = vadd.f32 %v1258, %v1279
    %v1288 = vadd.f32 %v1259, %v1280
    %v1289 = vadd.f32 %v1260, %v1281
    %v1290 = vadd.f32 %v1261, %v1282
    %1291 = vrot.lane.b32.xlu0 %v1262, 127
    %v1292 = vpop.permute.xlu0 %1291
    %1293 = vrot.lane.b32.xlu0 %v1263, 127
    %v1294 = vpop.permute.xlu0 %1293
    %1295 = vrot.lane.b32.xlu0 %v1264, 127
    %v1296 = vpop.permute.xlu0 %1295
    %1297 = vrot.lane.b32.xlu0 %v1265, 127
    %v1298 = vpop.permute.xlu0 %1297
    %1299 = vrot.lane.b32.xlu0 %v1266, 127
    %v1300 = vpop.permute.xlu0 %1299
    %1301 = vrot.lane.b32.xlu0 %v1267, 127
    %v1302 = vpop.permute.xlu0 %1301
    %1303 = vrot.lane.b32.xlu0 %v1268, 127
    %v1304 = vpop.permute.xlu0 %1303
    %1305 = vrot.lane.b32.xlu0 %v1269, 127
    %v1306 = vpop.permute.xlu0 %1305
    %v1307 = vld [vmem:[%s3 + $0x7] sm:$0x1]
    %v1308 = vlaneseq
    %v1309 = vshrl.u32 %v1308, 7
    %v1310 = vsub.s32 0, %v1309
    %v1311 = vrot.slane %v1307, %v1310
    %v1312 = vmul.f32 %v1292, %v1311
    %v1313 = vmul.f32 %v1294, %v1311
    %v1314 = vmul.f32 %v1296, %v1311
    %v1315 = vmul.f32 %v1298, %v1311
    %v1316 = vmul.f32 %v1300, %v1311
    %v1317 = vmul.f32 %v1302, %v1311
    %v1318 = vmul.f32 %v1304, %v1311
    %v1319 = vmul.f32 %v1306, %v1311
    %v1320 = vadd.f32 %v1283, %v1312
    %v1321 = vadd.f32 %v1284, %v1313
    %v1322 = vadd.f32 %v1285, %v1314
    %v1323 = vadd.f32 %v1286, %v1315
    %v1324 = vadd.f32 %v1287, %v1316
    %v1325 = vadd.f32 %v1288, %v1317
    %v1326 = vadd.f32 %v1289, %v1318
    %v1327 = vadd.f32 %v1290, %v1319
    %1328 = vrot.lane.b32.xlu0 %v1262, 126
    %v1329 = vpop.permute.xlu0 %1328
    %1330 = vrot.lane.b32.xlu0 %v1263, 126
    %v1331 = vpop.permute.xlu0 %1330
    %1332 = vrot.lane.b32.xlu0 %v1264, 126
    %v1333 = vpop.permute.xlu0 %1332
    %1334 = vrot.lane.b32.xlu0 %v1265, 126
    %v1335 = vpop.permute.xlu0 %1334
    %1336 = vrot.lane.b32.xlu0 %v1266, 126
    %v1337 = vpop.permute.xlu0 %1336
    %1338 = vrot.lane.b32.xlu0 %v1267, 126
    %v1339 = vpop.permute.xlu0 %1338
    %1340 = vrot.lane.b32.xlu0 %v1268, 126
    %v1341 = vpop.permute.xlu0 %1340
    %1342 = vrot.lane.b32.xlu0 %v1269, 126
    %v1343 = vpop.permute.xlu0 %1342
    %v1344 = vld [vmem:[%s3 + $0x8] sm:$0x1]
    %v1345 = vlaneseq
    %v1346 = vshrl.u32 %v1345, 7
    %v1347 = vsub.s32 0, %v1346
    %v1348 = vrot.slane %v1344, %v1347
    %v1349 = vmul.f32 %v1329, %v1348
    %v1350 = vmul.f32 %v1331, %v1348
    %v1351 = vmul.f32 %v1333, %v1348
    %v1352 = vmul.f32 %v1335, %v1348
    %v1353 = vmul.f32 %v1337, %v1348
    %v1354 = vmul.f32 %v1339, %v1348
    %v1355 = vmul.f32 %v1341, %v1348
    %v1356 = vmul.f32 %v1343, %v1348
    %v1357 = vadd.f32 %v1320, %v1349
    %v1358 = vadd.f32 %v1321, %v1350
    %v1359 = vadd.f32 %v1322, %v1351
    %v1360 = vadd.f32 %v1323, %v1352
    %v1361 = vadd.f32 %v1324, %v1353
    %v1362 = vadd.f32 %v1325, %v1354
    %v1363 = vadd.f32 %v1326, %v1355
    %v1364 = vadd.f32 %v1327, %v1356
    %v1365 = vld [vmem:[#allocation4 + $0x40] sm:$0xff]
    %v1366 = vld [vmem:[#allocation4 + $0x48] sm:$0xff]
    %v1367 = vld [vmem:[#allocation4 + $0x50] sm:$0xff]
    %v1368 = vld [vmem:[#allocation4 + $0x58] sm:$0xff]
    %v1369 = vld [vmem:[#allocation4 + $0x60] sm:$0xff]
    %v1370 = vld [vmem:[#allocation4 + $0x68] sm:$0xff]
    %v1371 = vld [vmem:[#allocation4 + $0x70] sm:$0xff]
    %v1372 = vld [vmem:[#allocation4 + $0x78] sm:$0xff]
    %v1373 = vld [vmem:[%s3 + $0x9] sm:$0x1]
    %v1374 = vlaneseq
    %v1375 = vshrl.u32 %v1374, 7
    %v1376 = vsub.s32 0, %v1375
    %v1377 = vrot.slane %v1373, %v1376
    %v1378 = vmul.f32 %v1365, %v1377
    %v1379 = vmul.f32 %v1366, %v1377
    %v1380 = vmul.f32 %v1367, %v1377
    %v1381 = vmul.f32 %v1368, %v1377
    %v1382 = vmul.f32 %v1369, %v1377
    %v1383 = vmul.f32 %v1370, %v1377
    %v1384 = vmul.f32 %v1371, %v1377
    %v1385 = vmul.f32 %v1372, %v1377
    %v1386 = vadd.f32 %v1357, %v1378
    %v1387 = vadd.f32 %v1358, %v1379
    %v1388 = vadd.f32 %v1359, %v1380
    %v1389 = vadd.f32 %v1360, %v1381
    %v1390 = vadd.f32 %v1361, %v1382
    %v1391 = vadd.f32 %v1362, %v1383
    %v1392 = vadd.f32 %v1363, %v1384
    %v1393 = vadd.f32 %v1364, %v1385
    %1394 = vrot.lane.b32.xlu0 %v1365, 127
    %v1395 = vpop.permute.xlu0 %1394
    %1396 = vrot.lane.b32.xlu0 %v1366, 127
    %v1397 = vpop.permute.xlu0 %1396
    %1398 = vrot.lane.b32.xlu0 %v1367, 127
    %v1399 = vpop.permute.xlu0 %1398
    %1400 = vrot.lane.b32.xlu0 %v1368, 127
    %v1401 = vpop.permute.xlu0 %1400
    %1402 = vrot.lane.b32.xlu0 %v1369, 127
    %v1403 = vpop.permute.xlu0 %1402
    %1404 = vrot.lane.b32.xlu0 %v1370, 127
    %v1405 = vpop.permute.xlu0 %1404
    %1406 = vrot.lane.b32.xlu0 %v1371, 127
    %v1407 = vpop.permute.xlu0 %1406
    %1408 = vrot.lane.b32.xlu0 %v1372, 127
    %v1409 = vpop.permute.xlu0 %1408
    %v1410 = vld [vmem:[%s3 + $0xa] sm:$0x1]
    %v1411 = vlaneseq
    %v1412 = vshrl.u32 %v1411, 7
    %v1413 = vsub.s32 0, %v1412
    %v1414 = vrot.slane %v1410, %v1413
    %v1415 = vmul.f32 %v1395, %v1414
    %v1416 = vmul.f32 %v1397, %v1414
    %v1417 = vmul.f32 %v1399, %v1414
    %v1418 = vmul.f32 %v1401, %v1414
    %v1419 = vmul.f32 %v1403, %v1414
    %v1420 = vmul.f32 %v1405, %v1414
    %v1421 = vmul.f32 %v1407, %v1414
    %v1422 = vmul.f32 %v1409, %v1414
    %v1423 = vadd.f32 %v1386, %v1415
    %v1424 = vadd.f32 %v1387, %v1416
    %v1425 = vadd.f32 %v1388, %v1417
    %v1426 = vadd.f32 %v1389, %v1418
    %v1427 = vadd.f32 %v1390, %v1419
    %v1428 = vadd.f32 %v1391, %v1420
    %v1429 = vadd.f32 %v1392, %v1421
    %v1430 = vadd.f32 %v1393, %v1422
    %1431 = vrot.lane.b32.xlu0 %v1365, 126
    %v1432 = vpop.permute.xlu0 %1431
    %1433 = vrot.lane.b32.xlu0 %v1366, 126
    %v1434 = vpop.permute.xlu0 %1433
    %1435 = vrot.lane.b32.xlu0 %v1367, 126
    %v1436 = vpop.permute.xlu0 %1435
    %1437 = vrot.lane.b32.xlu0 %v1368, 126
    %v1438 = vpop.permute.xlu0 %1437
    %1439 = vrot.lane.b32.xlu0 %v1369, 126
    %v1440 = vpop.permute.xlu0 %1439
    %1441 = vrot.lane.b32.xlu0 %v1370, 126
    %v1442 = vpop.permute.xlu0 %1441
    %1443 = vrot.lane.b32.xlu0 %v1371, 126
    %v1444 = vpop.permute.xlu0 %1443
    %1445 = vrot.lane.b32.xlu0 %v1372, 126
    %v1446 = vpop.permute.xlu0 %1445
    %v1447 = vld [vmem:[%s3 + $0xb] sm:$0x1]
    %v1448 = vlaneseq
    %v1449 = vshrl.u32 %v1448, 7
    %v1450 = vsub.s32 0, %v1449
    %v1451 = vrot.slane %v1447, %v1450
    %v1452 = vmul.f32 %v1432, %v1451
    %v1453 = vmul.f32 %v1434, %v1451
    %v1454 = vmul.f32 %v1436, %v1451
    %v1455 = vmul.f32 %v1438, %v1451
    %v1456 = vmul.f32 %v1440, %v1451
    %v1457 = vmul.f32 %v1442, %v1451
    %v1458 = vmul.f32 %v1444, %v1451
    %v1459 = vmul.f32 %v1446, %v1451
    %v1460 = vadd.f32 %v1423, %v1452
    %v1461 = vadd.f32 %v1424, %v1453
    %v1462 = vadd.f32 %v1425, %v1454
    %v1463 = vadd.f32 %v1426, %v1455
    %v1464 = vadd.f32 %v1427, %v1456
    %v1465 = vadd.f32 %v1428, %v1457
    %v1466 = vadd.f32 %v1429, %v1458
    %v1467 = vadd.f32 %v1430, %v1459
    %v1468 = vld [vmem:[#allocation4 + $0x41] sm:$0xff]
    %v1469 = vld [vmem:[#allocation4 + $0x49] sm:$0xff]
    %v1470 = vld [vmem:[#allocation4 + $0x51] sm:$0xff]
    %v1471 = vld [vmem:[#allocation4 + $0x59] sm:$0xff]
    %v1472 = vld [vmem:[#allocation4 + $0x61] sm:$0xff]
    %v1473 = vld [vmem:[#allocation4 + $0x69] sm:$0xff]
    %v1474 = vld [vmem:[#allocation4 + $0x71] sm:$0xff]
    %v1475 = vld [vmem:[#allocation4 + $0x79] sm:$0xff]
    %v1476 = vld [vmem:[%s3 + $0xc] sm:$0x1]
    %v1477 = vlaneseq
    %v1478 = vshrl.u32 %v1477, 7
    %v1479 = vsub.s32 0, %v1478
    %v1480 = vrot.slane %v1476, %v1479
    %v1481 = vmul.f32 %v1468, %v1480
    %v1482 = vmul.f32 %v1469, %v1480
    %v1483 = vmul.f32 %v1470, %v1480
    %v1484 = vmul.f32 %v1471, %v1480
    %v1485 = vmul.f32 %v1472, %v1480
    %v1486 = vmul.f32 %v1473, %v1480
    %v1487 = vmul.f32 %v1474, %v1480
    %v1488 = vmul.f32 %v1475, %v1480
    %v1489 = vadd.f32 %v1460, %v1481
    %v1490 = vadd.f32 %v1461, %v1482
    %v1491 = vadd.f32 %v1462, %v1483
    %v1492 = vadd.f32 %v1463, %v1484
    %v1493 = vadd.f32 %v1464, %v1485
    %v1494 = vadd.f32 %v1465, %v1486
    %v1495 = vadd.f32 %v1466, %v1487
    %v1496 = vadd.f32 %v1467, %v1488
    %1497 = vrot.lane.b32.xlu0 %v1468, 127
    %v1498 = vpop.permute.xlu0 %1497
    %1499 = vrot.lane.b32.xlu0 %v1469, 127
    %v1500 = vpop.permute.xlu0 %1499
    %1501 = vrot.lane.b32.xlu0 %v1470, 127
    %v1502 = vpop.permute.xlu0 %1501
    %1503 = vrot.lane.b32.xlu0 %v1471, 127
    %v1504 = vpop.permute.xlu0 %1503
    %1505 = vrot.lane.b32.xlu0 %v1472, 127
    %v1506 = vpop.permute.xlu0 %1505
    %1507 = vrot.lane.b32.xlu0 %v1473, 127
    %v1508 = vpop.permute.xlu0 %1507
    %1509 = vrot.lane.b32.xlu0 %v1474, 127
    %v1510 = vpop.permute.xlu0 %1509
    %1511 = vrot.lane.b32.xlu0 %v1475, 127
    %v1512 = vpop.permute.xlu0 %1511
    %v1513 = vld [vmem:[%s3 + $0xd] sm:$0x1]
    %v1514 = vlaneseq
    %v1515 = vshrl.u32 %v1514, 7
    %v1516 = vsub.s32 0, %v1515
    %v1517 = vrot.slane %v1513, %v1516
    %v1518 = vmul.f32 %v1498, %v1517
    %v1519 = vmul.f32 %v1500, %v1517
    %v1520 = vmul.f32 %v1502, %v1517
    %v1521 = vmul.f32 %v1504, %v1517
    %v1522 = vmul.f32 %v1506, %v1517
    %v1523 = vmul.f32 %v1508, %v1517
    %v1524 = vmul.f32 %v1510, %v1517
    %v1525 = vmul.f32 %v1512, %v1517
    %v1526 = vadd.f32 %v1489, %v1518
    %v1527 = vadd.f32 %v1490, %v1519
    %v1528 = vadd.f32 %v1491, %v1520
    %v1529 = vadd.f32 %v1492, %v1521
    %v1530 = vadd.f32 %v1493, %v1522
    %v1531 = vadd.f32 %v1494, %v1523
    %v1532 = vadd.f32 %v1495, %v1524
    %v1533 = vadd.f32 %v1496, %v1525
    %1534 = vrot.lane.b32.xlu0 %v1468, 126
    %v1535 = vpop.permute.xlu0 %1534
    %1536 = vrot.lane.b32.xlu0 %v1469, 126
    %v1537 = vpop.permute.xlu0 %1536
    %1538 = vrot.lane.b32.xlu0 %v1470, 126
    %v1539 = vpop.permute.xlu0 %1538
    %1540 = vrot.lane.b32.xlu0 %v1471, 126
    %v1541 = vpop.permute.xlu0 %1540
    %1542 = vrot.lane.b32.xlu0 %v1472, 126
    %v1543 = vpop.permute.xlu0 %1542
    %1544 = vrot.lane.b32.xlu0 %v1473, 126
    %v1545 = vpop.permute.xlu0 %1544
    %1546 = vrot.lane.b32.xlu0 %v1474, 126
    %v1547 = vpop.permute.xlu0 %1546
    %1548 = vrot.lane.b32.xlu0 %v1475, 126
    %v1549 = vpop.permute.xlu0 %1548
    %v1550 = vld [vmem:[%s3 + $0xe] sm:$0x1]
    %v1551 = vlaneseq
    %v1552 = vshrl.u32 %v1551, 7
    %v1553 = vsub.s32 0, %v1552
    %v1554 = vrot.slane %v1550, %v1553
    %v1555 = vmul.f32 %v1535, %v1554
    %v1556 = vmul.f32 %v1537, %v1554
    %v1557 = vmul.f32 %v1539, %v1554
    %v1558 = vmul.f32 %v1541, %v1554
    %v1559 = vmul.f32 %v1543, %v1554
    %v1560 = vmul.f32 %v1545, %v1554
    %v1561 = vmul.f32 %v1547, %v1554
    %v1562 = vmul.f32 %v1549, %v1554
    %v1563 = vadd.f32 %v1526, %v1555
    %v1564 = vadd.f32 %v1527, %v1556
    %v1565 = vadd.f32 %v1528, %v1557
    %v1566 = vadd.f32 %v1529, %v1558
    %v1567 = vadd.f32 %v1530, %v1559
    %v1568 = vadd.f32 %v1531, %v1560
    %v1569 = vadd.f32 %v1532, %v1561
    %v1570 = vadd.f32 %v1533, %v1562
    %v1571 = vld [vmem:[#allocation4 + $0x42] sm:$0xff]
    %v1572 = vld [vmem:[#allocation4 + $0x4a] sm:$0xff]
    %v1573 = vld [vmem:[#allocation4 + $0x52] sm:$0xff]
    %v1574 = vld [vmem:[#allocation4 + $0x5a] sm:$0xff]
    %v1575 = vld [vmem:[#allocation4 + $0x62] sm:$0xff]
    %v1576 = vld [vmem:[#allocation4 + $0x6a] sm:$0xff]
    %v1577 = vld [vmem:[#allocation4 + $0x72] sm:$0xff]
    %v1578 = vld [vmem:[#allocation4 + $0x7a] sm:$0xff]
    %v1579 = vld [vmem:[%s3 + $0xf] sm:$0x1]
    %v1580 = vlaneseq
    %v1581 = vshrl.u32 %v1580, 7
    %v1582 = vsub.s32 0, %v1581
    %v1583 = vrot.slane %v1579, %v1582
    %v1584 = vmul.f32 %v1571, %v1583
    %v1585 = vmul.f32 %v1572, %v1583
    %v1586 = vmul.f32 %v1573, %v1583
    %v1587 = vmul.f32 %v1574, %v1583
    %v1588 = vmul.f32 %v1575, %v1583
    %v1589 = vmul.f32 %v1576, %v1583
    %v1590 = vmul.f32 %v1577, %v1583
    %v1591 = vmul.f32 %v1578, %v1583
    %v1592 = vadd.f32 %v1563, %v1584
    %v1593 = vadd.f32 %v1564, %v1585
    %v1594 = vadd.f32 %v1565, %v1586
    %v1595 = vadd.f32 %v1566, %v1587
    %v1596 = vadd.f32 %v1567, %v1588
    %v1597 = vadd.f32 %v1568, %v1589
    %v1598 = vadd.f32 %v1569, %v1590
    %v1599 = vadd.f32 %v1570, %v1591
    %1600 = vrot.lane.b32.xlu0 %v1571, 127
    %v1601 = vpop.permute.xlu0 %1600
    %1602 = vrot.lane.b32.xlu0 %v1572, 127
    %v1603 = vpop.permute.xlu0 %1602
    %1604 = vrot.lane.b32.xlu0 %v1573, 127
    %v1605 = vpop.permute.xlu0 %1604
    %1606 = vrot.lane.b32.xlu0 %v1574, 127
    %v1607 = vpop.permute.xlu0 %1606
    %1608 = vrot.lane.b32.xlu0 %v1575, 127
    %v1609 = vpop.permute.xlu0 %1608
    %1610 = vrot.lane.b32.xlu0 %v1576, 127
    %v1611 = vpop.permute.xlu0 %1610
    %1612 = vrot.lane.b32.xlu0 %v1577, 127
    %v1613 = vpop.permute.xlu0 %1612
    %1614 = vrot.lane.b32.xlu0 %v1578, 127
    %v1615 = vpop.permute.xlu0 %1614
    %v1616 = vld [vmem:[%s3 + $0x10] sm:$0x1]
    %v1617 = vlaneseq
    %v1618 = vshrl.u32 %v1617, 7
    %v1619 = vsub.s32 0, %v1618
    %v1620 = vrot.slane %v1616, %v1619
    %v1621 = vmul.f32 %v1601, %v1620
    %v1622 = vmul.f32 %v1603, %v1620
    %v1623 = vmul.f32 %v1605, %v1620
    %v1624 = vmul.f32 %v1607, %v1620
    %v1625 = vmul.f32 %v1609, %v1620
    %v1626 = vmul.f32 %v1611, %v1620
    %v1627 = vmul.f32 %v1613, %v1620
    %v1628 = vmul.f32 %v1615, %v1620
    %v1629 = vadd.f32 %v1592, %v1621
    %v1630 = vadd.f32 %v1593, %v1622
    %v1631 = vadd.f32 %v1594, %v1623
    %v1632 = vadd.f32 %v1595, %v1624
    %v1633 = vadd.f32 %v1596, %v1625
    %v1634 = vadd.f32 %v1597, %v1626
    %v1635 = vadd.f32 %v1598, %v1627
    %v1636 = vadd.f32 %v1599, %v1628
    %1637 = vrot.lane.b32.xlu0 %v1571, 126
    %v1638 = vpop.permute.xlu0 %1637
    %1639 = vrot.lane.b32.xlu0 %v1572, 126
    %v1640 = vpop.permute.xlu0 %1639
    %1641 = vrot.lane.b32.xlu0 %v1573, 126
    %v1642 = vpop.permute.xlu0 %1641
    %1643 = vrot.lane.b32.xlu0 %v1574, 126
    %v1644 = vpop.permute.xlu0 %1643
    %1645 = vrot.lane.b32.xlu0 %v1575, 126
    %v1646 = vpop.permute.xlu0 %1645
    %1647 = vrot.lane.b32.xlu0 %v1576, 126
    %v1648 = vpop.permute.xlu0 %1647
    %1649 = vrot.lane.b32.xlu0 %v1577, 126
    %v1650 = vpop.permute.xlu0 %1649
    %1651 = vrot.lane.b32.xlu0 %v1578, 126
    %v1652 = vpop.permute.xlu0 %1651
    %v1653 = vld [vmem:[%s3 + $0x11] sm:$0x1]
    %v1654 = vlaneseq
    %v1655 = vshrl.u32 %v1654, 7
    %v1656 = vsub.s32 0, %v1655
    %v1657 = vrot.slane %v1653, %v1656
    %v1658 = vmul.f32 %v1638, %v1657
    %v1659 = vmul.f32 %v1640, %v1657
    %v1660 = vmul.f32 %v1642, %v1657
    %v1661 = vmul.f32 %v1644, %v1657
    %v1662 = vmul.f32 %v1646, %v1657
    %v1663 = vmul.f32 %v1648, %v1657
    %v1664 = vmul.f32 %v1650, %v1657
    %v1665 = vmul.f32 %v1652, %v1657
    %v1666 = vadd.f32 %v1629, %v1658
    %v1667 = vadd.f32 %v1630, %v1659
    %v1668 = vadd.f32 %v1631, %v1660
    %v1669 = vadd.f32 %v1632, %v1661
    %v1670 = vadd.f32 %v1633, %v1662
    %v1671 = vadd.f32 %v1634, %v1663
    %v1672 = vadd.f32 %v1635, %v1664
    %v1673 = vadd.f32 %v1636, %v1665
    %v1674 = vld [vmem:[#allocation4 + $0x80] sm:$0xff]
    %v1675 = vld [vmem:[#allocation4 + $0x88] sm:$0xff]
    %v1676 = vld [vmem:[#allocation4 + $0x90] sm:$0xff]
    %v1677 = vld [vmem:[#allocation4 + $0x98] sm:$0xff]
    %v1678 = vld [vmem:[#allocation4 + $0xa0] sm:$0xff]
    %v1679 = vld [vmem:[#allocation4 + $0xa8] sm:$0xff]
    %v1680 = vld [vmem:[#allocation4 + $0xb0] sm:$0xff]
    %v1681 = vld [vmem:[#allocation4 + $0xb8] sm:$0xff]
    %v1682 = vld [vmem:[%s3 + $0x12] sm:$0x1]
    %v1683 = vlaneseq
    %v1684 = vshrl.u32 %v1683, 7
    %v1685 = vsub.s32 0, %v1684
    %v1686 = vrot.slane %v1682, %v1685
    %v1687 = vmul.f32 %v1674, %v1686
    %v1688 = vmul.f32 %v1675, %v1686
    %v1689 = vmul.f32 %v1676, %v1686
    %v1690 = vmul.f32 %v1677, %v1686
    %v1691 = vmul.f32 %v1678, %v1686
    %v1692 = vmul.f32 %v1679, %v1686
    %v1693 = vmul.f32 %v1680, %v1686
    %v1694 = vmul.f32 %v1681, %v1686
    %v1695 = vadd.f32 %v1666, %v1687
    %v1696 = vadd.f32 %v1667, %v1688
    %v1697 = vadd.f32 %v1668, %v1689
    %v1698 = vadd.f32 %v1669, %v1690
    %v1699 = vadd.f32 %v1670, %v1691
    %v1700 = vadd.f32 %v1671, %v1692
    %v1701 = vadd.f32 %v1672, %v1693
    %v1702 = vadd.f32 %v1673, %v1694
    %1703 = vrot.lane.b32.xlu0 %v1674, 127
    %v1704 = vpop.permute.xlu0 %1703
    %1705 = vrot.lane.b32.xlu0 %v1675, 127
    %v1706 = vpop.permute.xlu0 %1705
    %1707 = vrot.lane.b32.xlu0 %v1676, 127
    %v1708 = vpop.permute.xlu0 %1707
    %1709 = vrot.lane.b32.xlu0 %v1677, 127
    %v1710 = vpop.permute.xlu0 %1709
    %1711 = vrot.lane.b32.xlu0 %v1678, 127
    %v1712 = vpop.permute.xlu0 %1711
    %1713 = vrot.lane.b32.xlu0 %v1679, 127
    %v1714 = vpop.permute.xlu0 %1713
    %1715 = vrot.lane.b32.xlu0 %v1680, 127
    %v1716 = vpop.permute.xlu0 %1715
    %1717 = vrot.lane.b32.xlu0 %v1681, 127
    %v1718 = vpop.permute.xlu0 %1717
    %v1719 = vld [vmem:[%s3 + $0x13] sm:$0x1]
    %v1720 = vlaneseq
    %v1721 = vshrl.u32 %v1720, 7
    %v1722 = vsub.s32 0, %v1721
    %v1723 = vrot.slane %v1719, %v1722
    %v1724 = vmul.f32 %v1704, %v1723
    %v1725 = vmul.f32 %v1706, %v1723
    %v1726 = vmul.f32 %v1708, %v1723
    %v1727 = vmul.f32 %v1710, %v1723
    %v1728 = vmul.f32 %v1712, %v1723
    %v1729 = vmul.f32 %v1714, %v1723
    %v1730 = vmul.f32 %v1716, %v1723
    %v1731 = vmul.f32 %v1718, %v1723
    %v1732 = vadd.f32 %v1695, %v1724
    %v1733 = vadd.f32 %v1696, %v1725
    %v1734 = vadd.f32 %v1697, %v1726
    %v1735 = vadd.f32 %v1698, %v1727
    %v1736 = vadd.f32 %v1699, %v1728
    %v1737 = vadd.f32 %v1700, %v1729
    %v1738 = vadd.f32 %v1701, %v1730
    %v1739 = vadd.f32 %v1702, %v1731
    %1740 = vrot.lane.b32.xlu0 %v1674, 126
    %v1741 = vpop.permute.xlu0 %1740
    %1742 = vrot.lane.b32.xlu0 %v1675, 126
    %v1743 = vpop.permute.xlu0 %1742
    %1744 = vrot.lane.b32.xlu0 %v1676, 126
    %v1745 = vpop.permute.xlu0 %1744
    %1746 = vrot.lane.b32.xlu0 %v1677, 126
    %v1747 = vpop.permute.xlu0 %1746
    %1748 = vrot.lane.b32.xlu0 %v1678, 126
    %v1749 = vpop.permute.xlu0 %1748
    %1750 = vrot.lane.b32.xlu0 %v1679, 126
    %v1751 = vpop.permute.xlu0 %1750
    %1752 = vrot.lane.b32.xlu0 %v1680, 126
    %v1753 = vpop.permute.xlu0 %1752
    %1754 = vrot.lane.b32.xlu0 %v1681, 126
    %v1755 = vpop.permute.xlu0 %1754
    %v1756 = vld [vmem:[%s3 + $0x14] sm:$0x1]
    %v1757 = vlaneseq
    %v1758 = vshrl.u32 %v1757, 7
    %v1759 = vsub.s32 0, %v1758
    %v1760 = vrot.slane %v1756, %v1759
    %v1761 = vmul.f32 %v1741, %v1760
    %v1762 = vmul.f32 %v1743, %v1760
    %v1763 = vmul.f32 %v1745, %v1760
    %v1764 = vmul.f32 %v1747, %v1760
    %v1765 = vmul.f32 %v1749, %v1760
    %v1766 = vmul.f32 %v1751, %v1760
    %v1767 = vmul.f32 %v1753, %v1760
    %v1768 = vmul.f32 %v1755, %v1760
    %v1769 = vadd.f32 %v1732, %v1761
    %v1770 = vadd.f32 %v1733, %v1762
    %v1771 = vadd.f32 %v1734, %v1763
    %v1772 = vadd.f32 %v1735, %v1764
    %v1773 = vadd.f32 %v1736, %v1765
    %v1774 = vadd.f32 %v1737, %v1766
    %v1775 = vadd.f32 %v1738, %v1767
    %v1776 = vadd.f32 %v1739, %v1768
    %v1777 = vld [vmem:[#allocation4 + $0x81] sm:$0xff]
    %v1778 = vld [vmem:[#allocation4 + $0x89] sm:$0xff]
    %v1779 = vld [vmem:[#allocation4 + $0x91] sm:$0xff]
    %v1780 = vld [vmem:[#allocation4 + $0x99] sm:$0xff]
    %v1781 = vld [vmem:[#allocation4 + $0xa1] sm:$0xff]
    %v1782 = vld [vmem:[#allocation4 + $0xa9] sm:$0xff]
    %v1783 = vld [vmem:[#allocation4 + $0xb1] sm:$0xff]
    %v1784 = vld [vmem:[#allocation4 + $0xb9] sm:$0xff]
    %v1785 = vld [vmem:[%s3 + $0x15] sm:$0x1]
    %v1786 = vlaneseq
    %v1787 = vshrl.u32 %v1786, 7
    %v1788 = vsub.s32 0, %v1787
    %v1789 = vrot.slane %v1785, %v1788
    %v1790 = vmul.f32 %v1777, %v1789
    %v1791 = vmul.f32 %v1778, %v1789
    %v1792 = vmul.f32 %v1779, %v1789
    %v1793 = vmul.f32 %v1780, %v1789
    %v1794 = vmul.f32 %v1781, %v1789
    %v1795 = vmul.f32 %v1782, %v1789
    %v1796 = vmul.f32 %v1783, %v1789
    %v1797 = vmul.f32 %v1784, %v1789
    %v1798 = vadd.f32 %v1769, %v1790
    %v1799 = vadd.f32 %v1770, %v1791
    %v1800 = vadd.f32 %v1771, %v1792
    %v1801 = vadd.f32 %v1772, %v1793
    %v1802 = vadd.f32 %v1773, %v1794
    %v1803 = vadd.f32 %v1774, %v1795
    %v1804 = vadd.f32 %v1775, %v1796
    %v1805 = vadd.f32 %v1776, %v1797
    %1806 = vrot.lane.b32.xlu0 %v1777, 127
    %v1807 = vpop.permute.xlu0 %1806
    %1808 = vrot.lane.b32.xlu0 %v1778, 127
    %v1809 = vpop.permute.xlu0 %1808
    %1810 = vrot.lane.b32.xlu0 %v1779, 127
    %v1811 = vpop.permute.xlu0 %1810
    %1812 = vrot.lane.b32.xlu0 %v1780, 127
    %v1813 = vpop.permute.xlu0 %1812
    %1814 = vrot.lane.b32.xlu0 %v1781, 127
    %v1815 = vpop.permute.xlu0 %1814
    %1816 = vrot.lane.b32.xlu0 %v1782, 127
    %v1817 = vpop.permute.xlu0 %1816
    %1818 = vrot.lane.b32.xlu0 %v1783, 127
    %v1819 = vpop.permute.xlu0 %1818
    %1820 = vrot.lane.b32.xlu0 %v1784, 127
    %v1821 = vpop.permute.xlu0 %1820
    %v1822 = vld [vmem:[%s3 + $0x16] sm:$0x1]
    %v1823 = vlaneseq
    %v1824 = vshrl.u32 %v1823, 7
    %v1825 = vsub.s32 0, %v1824
    %v1826 = vrot.slane %v1822, %v1825
    %v1827 = vmul.f32 %v1807, %v1826
    %v1828 = vmul.f32 %v1809, %v1826
    %v1829 = vmul.f32 %v1811, %v1826
    %v1830 = vmul.f32 %v1813, %v1826
    %v1831 = vmul.f32 %v1815, %v1826
    %v1832 = vmul.f32 %v1817, %v1826
    %v1833 = vmul.f32 %v1819, %v1826
    %v1834 = vmul.f32 %v1821, %v1826
    %v1835 = vadd.f32 %v1798, %v1827
    %v1836 = vadd.f32 %v1799, %v1828
    %v1837 = vadd.f32 %v1800, %v1829
    %v1838 = vadd.f32 %v1801, %v1830
    %v1839 = vadd.f32 %v1802, %v1831
    %v1840 = vadd.f32 %v1803, %v1832
    %v1841 = vadd.f32 %v1804, %v1833
    %v1842 = vadd.f32 %v1805, %v1834
    %1843 = vrot.lane.b32.xlu0 %v1777, 126
    %v1844 = vpop.permute.xlu0 %1843
    %1845 = vrot.lane.b32.xlu0 %v1778, 126
    %v1846 = vpop.permute.xlu0 %1845
    %1847 = vrot.lane.b32.xlu0 %v1779, 126
    %v1848 = vpop.permute.xlu0 %1847
    %1849 = vrot.lane.b32.xlu0 %v1780, 126
    %v1850 = vpop.permute.xlu0 %1849
    %1851 = vrot.lane.b32.xlu0 %v1781, 126
    %v1852 = vpop.permute.xlu0 %1851
    %1853 = vrot.lane.b32.xlu0 %v1782, 126
    %v1854 = vpop.permute.xlu0 %1853
    %1855 = vrot.lane.b32.xlu0 %v1783, 126
    %v1856 = vpop.permute.xlu0 %1855
    %1857 = vrot.lane.b32.xlu0 %v1784, 126
    %v1858 = vpop.permute.xlu0 %1857
    %v1859 = vld [vmem:[%s3 + $0x17] sm:$0x1]
    %v1860 = vlaneseq
    %v1861 = vshrl.u32 %v1860, 7
    %v1862 = vsub.s32 0, %v1861
    %v1863 = vrot.slane %v1859, %v1862
    %v1864 = vmul.f32 %v1844, %v1863
    %v1865 = vmul.f32 %v1846, %v1863
    %v1866 = vmul.f32 %v1848, %v1863
    %v1867 = vmul.f32 %v1850, %v1863
    %v1868 = vmul.f32 %v1852, %v1863
    %v1869 = vmul.f32 %v1854, %v1863
    %v1870 = vmul.f32 %v1856, %v1863
    %v1871 = vmul.f32 %v1858, %v1863
    %v1872 = vadd.f32 %v1835, %v1864
    %v1873 = vadd.f32 %v1836, %v1865
    %v1874 = vadd.f32 %v1837, %v1866
    %v1875 = vadd.f32 %v1838, %v1867
    %v1876 = vadd.f32 %v1839, %v1868
    %v1877 = vadd.f32 %v1840, %v1869
    %v1878 = vadd.f32 %v1841, %v1870
    %v1879 = vadd.f32 %v1842, %v1871
    %v1880 = vld [vmem:[#allocation4 + $0x82] sm:$0xff]
    %v1881 = vld [vmem:[#allocation4 + $0x8a] sm:$0xff]
    %v1882 = vld [vmem:[#allocation4 + $0x92] sm:$0xff]
    %v1883 = vld [vmem:[#allocation4 + $0x9a] sm:$0xff]
    %v1884 = vld [vmem:[#allocation4 + $0xa2] sm:$0xff]
    %v1885 = vld [vmem:[#allocation4 + $0xaa] sm:$0xff]
    %v1886 = vld [vmem:[#allocation4 + $0xb2] sm:$0xff]
    %v1887 = vld [vmem:[#allocation4 + $0xba] sm:$0xff]
    %v1888 = vld [vmem:[%s3 + $0x18] sm:$0x1]
    %v1889 = vlaneseq
    %v1890 = vshrl.u32 %v1889, 7
    %v1891 = vsub.s32 0, %v1890
    %v1892 = vrot.slane %v1888, %v1891
    %v1893 = vmul.f32 %v1880, %v1892
    %v1894 = vmul.f32 %v1881, %v1892
    %v1895 = vmul.f32 %v1882, %v1892
    %v1896 = vmul.f32 %v1883, %v1892
    %v1897 = vmul.f32 %v1884, %v1892
    %v1898 = vmul.f32 %v1885, %v1892
    %v1899 = vmul.f32 %v1886, %v1892
    %v1900 = vmul.f32 %v1887, %v1892
    %v1901 = vadd.f32 %v1872, %v1893
    %v1902 = vadd.f32 %v1873, %v1894
    %v1903 = vadd.f32 %v1874, %v1895
    %v1904 = vadd.f32 %v1875, %v1896
    %v1905 = vadd.f32 %v1876, %v1897
    %v1906 = vadd.f32 %v1877, %v1898
    %v1907 = vadd.f32 %v1878, %v1899
    %v1908 = vadd.f32 %v1879, %v1900
    %1909 = vrot.lane.b32.xlu0 %v1880, 127
    %v1910 = vpop.permute.xlu0 %1909
    %1911 = vrot.lane.b32.xlu0 %v1881, 127
    %v1912 = vpop.permute.xlu0 %1911
    %1913 = vrot.lane.b32.xlu0 %v1882, 127
    %v1914 = vpop.permute.xlu0 %1913
    %1915 = vrot.lane.b32.xlu0 %v1883, 127
    %v1916 = vpop.permute.xlu0 %1915
    %1917 = vrot.lane.b32.xlu0 %v1884, 127
    %v1918 = vpop.permute.xlu0 %1917
    %1919 = vrot.lane.b32.xlu0 %v1885, 127
    %v1920 = vpop.permute.xlu0 %1919
    %1921 = vrot.lane.b32.xlu0 %v1886, 127
    %v1922 = vpop.permute.xlu0 %1921
    %1923 = vrot.lane.b32.xlu0 %v1887, 127
    %v1924 = vpop.permute.xlu0 %1923
    %v1925 = vld [vmem:[%s3 + $0x19] sm:$0x1]
    %v1926 = vlaneseq
    %v1927 = vshrl.u32 %v1926, 7
    %v1928 = vsub.s32 0, %v1927
    %v1929 = vrot.slane %v1925, %v1928
    %v1930 = vmul.f32 %v1910, %v1929
    %v1931 = vmul.f32 %v1912, %v1929
    %v1932 = vmul.f32 %v1914, %v1929
    %v1933 = vmul.f32 %v1916, %v1929
    %v1934 = vmul.f32 %v1918, %v1929
    %v1935 = vmul.f32 %v1920, %v1929
    %v1936 = vmul.f32 %v1922, %v1929
    %v1937 = vmul.f32 %v1924, %v1929
    %v1938 = vadd.f32 %v1901, %v1930
    %v1939 = vadd.f32 %v1902, %v1931
    %v1940 = vadd.f32 %v1903, %v1932
    %v1941 = vadd.f32 %v1904, %v1933
    %v1942 = vadd.f32 %v1905, %v1934
    %v1943 = vadd.f32 %v1906, %v1935
    %v1944 = vadd.f32 %v1907, %v1936
    %v1945 = vadd.f32 %v1908, %v1937
    %1946 = vrot.lane.b32.xlu0 %v1880, 126
    %v1947 = vpop.permute.xlu0 %1946
    %1948 = vrot.lane.b32.xlu0 %v1881, 126
    %v1949 = vpop.permute.xlu0 %1948
    %1950 = vrot.lane.b32.xlu0 %v1882, 126
    %v1951 = vpop.permute.xlu0 %1950
    %1952 = vrot.lane.b32.xlu0 %v1883, 126
    %v1953 = vpop.permute.xlu0 %1952
    %1954 = vrot.lane.b32.xlu0 %v1884, 126
    %v1955 = vpop.permute.xlu0 %1954
    %1956 = vrot.lane.b32.xlu0 %v1885, 126
    %v1957 = vpop.permute.xlu0 %1956
    %1958 = vrot.lane.b32.xlu0 %v1886, 126
    %v1959 = vpop.permute.xlu0 %1958
    %1960 = vrot.lane.b32.xlu0 %v1887, 126
    %v1961 = vpop.permute.xlu0 %1960
    %v1962 = vld [vmem:[%s3 + $0x1a] sm:$0x1]
    %v1963 = vlaneseq
    %v1964 = vshrl.u32 %v1963, 7
    %v1965 = vsub.s32 0, %v1964
    %v1966 = vrot.slane %v1962, %v1965
    %v1967 = vmul.f32 %v1947, %v1966
    %v1968 = vmul.f32 %v1949, %v1966
    %v1969 = vmul.f32 %v1951, %v1966
    %v1970 = vmul.f32 %v1953, %v1966
    %v1971 = vmul.f32 %v1955, %v1966
    %v1972 = vmul.f32 %v1957, %v1966
    %v1973 = vmul.f32 %v1959, %v1966
    %v1974 = vmul.f32 %v1961, %v1966
    %v1975 = vadd.f32 %v1938, %v1967
    %v1976 = vadd.f32 %v1939, %v1968
    %v1977 = vadd.f32 %v1940, %v1969
    %v1978 = vadd.f32 %v1941, %v1970
    %v1979 = vadd.f32 %v1942, %v1971
    %v1980 = vadd.f32 %v1943, %v1972
    %v1981 = vadd.f32 %v1944, %v1973
    %v1982 = vadd.f32 %v1945, %v1974
    %v1983 = vld [vmem:[#allocation4 + $0xc0] sm:$0xff]
    %v1984 = vld [vmem:[#allocation4 + $0xc8] sm:$0xff]
    %v1985 = vld [vmem:[#allocation4 + $0xd0] sm:$0xff]
    %v1986 = vld [vmem:[#allocation4 + $0xd8] sm:$0xff]
    %v1987 = vld [vmem:[#allocation4 + $0xe0] sm:$0xff]
    %v1988 = vld [vmem:[#allocation4 + $0xe8] sm:$0xff]
    %v1989 = vld [vmem:[#allocation4 + $0xf0] sm:$0xff]
    %v1990 = vld [vmem:[#allocation4 + $0xf8] sm:$0xff]
    %v1991 = vld [vmem:[%s3 + $0x1b] sm:$0x1]
    %v1992 = vlaneseq
    %v1993 = vshrl.u32 %v1992, 7
    %v1994 = vsub.s32 0, %v1993
    %v1995 = vrot.slane %v1991, %v1994
    %v1996 = vmul.f32 %v1983, %v1995
    %v1997 = vmul.f32 %v1984, %v1995
    %v1998 = vmul.f32 %v1985, %v1995
    %v1999 = vmul.f32 %v1986, %v1995
    %v2000 = vmul.f32 %v1987, %v1995
    %v2001 = vmul.f32 %v1988, %v1995
    %v2002 = vmul.f32 %v1989, %v1995
    %v2003 = vmul.f32 %v1990, %v1995
    %v2004 = vadd.f32 %v1975, %v1996
    %v2005 = vadd.f32 %v1976, %v1997
    %v2006 = vadd.f32 %v1977, %v1998
    %v2007 = vadd.f32 %v1978, %v1999
    %v2008 = vadd.f32 %v1979, %v2000
    %v2009 = vadd.f32 %v1980, %v2001
    %v2010 = vadd.f32 %v1981, %v2002
    %v2011 = vadd.f32 %v1982, %v2003
    %2012 = vrot.lane.b32.xlu0 %v1983, 127
    %v2013 = vpop.permute.xlu0 %2012
    %2014 = vrot.lane.b32.xlu0 %v1984, 127
    %v2015 = vpop.permute.xlu0 %2014
    %2016 = vrot.lane.b32.xlu0 %v1985, 127
    %v2017 = vpop.permute.xlu0 %2016
    %2018 = vrot.lane.b32.xlu0 %v1986, 127
    %v2019 = vpop.permute.xlu0 %2018
    %2020 = vrot.lane.b32.xlu0 %v1987, 127
    %v2021 = vpop.permute.xlu0 %2020
    %2022 = vrot.lane.b32.xlu0 %v1988, 127
    %v2023 = vpop.permute.xlu0 %2022
    %2024 = vrot.lane.b32.xlu0 %v1989, 127
    %v2025 = vpop.permute.xlu0 %2024
    %2026 = vrot.lane.b32.xlu0 %v1990, 127
    %v2027 = vpop.permute.xlu0 %2026
    %v2028 = vld [vmem:[%s3 + $0x1c] sm:$0x1]
    %v2029 = vlaneseq
    %v2030 = vshrl.u32 %v2029, 7
    %v2031 = vsub.s32 0, %v2030
    %v2032 = vrot.slane %v2028, %v2031
    %v2033 = vmul.f32 %v2013, %v2032
    %v2034 = vmul.f32 %v2015, %v2032
    %v2035 = vmul.f32 %v2017, %v2032
    %v2036 = vmul.f32 %v2019, %v2032
    %v2037 = vmul.f32 %v2021, %v2032
    %v2038 = vmul.f32 %v2023, %v2032
    %v2039 = vmul.f32 %v2025, %v2032
    %v2040 = vmul.f32 %v2027, %v2032
    %v2041 = vadd.f32 %v2004, %v2033
    %v2042 = vadd.f32 %v2005, %v2034
    %v2043 = vadd.f32 %v2006, %v2035
    %v2044 = vadd.f32 %v2007, %v2036
    %v2045 = vadd.f32 %v2008, %v2037
    %v2046 = vadd.f32 %v2009, %v2038
    %v2047 = vadd.f32 %v2010, %v2039
    %v2048 = vadd.f32 %v2011, %v2040
    %2049 = vrot.lane.b32.xlu0 %v1983, 126
    %v2050 = vpop.permute.xlu0 %2049
    %2051 = vrot.lane.b32.xlu0 %v1984, 126
    %v2052 = vpop.permute.xlu0 %2051
    %2053 = vrot.lane.b32.xlu0 %v1985, 126
    %v2054 = vpop.permute.xlu0 %2053
    %2055 = vrot.lane.b32.xlu0 %v1986, 126
    %v2056 = vpop.permute.xlu0 %2055
    %2057 = vrot.lane.b32.xlu0 %v1987, 126
    %v2058 = vpop.permute.xlu0 %2057
    %2059 = vrot.lane.b32.xlu0 %v1988, 126
    %v2060 = vpop.permute.xlu0 %2059
    %2061 = vrot.lane.b32.xlu0 %v1989, 126
    %v2062 = vpop.permute.xlu0 %2061
    %2063 = vrot.lane.b32.xlu0 %v1990, 126
    %v2064 = vpop.permute.xlu0 %2063
    %v2065 = vld [vmem:[%s3 + $0x1d] sm:$0x1]
    %v2066 = vlaneseq
    %v2067 = vshrl.u32 %v2066, 7
    %v2068 = vsub.s32 0, %v2067
    %v2069 = vrot.slane %v2065, %v2068
    %v2070 = vmul.f32 %v2050, %v2069
    %v2071 = vmul.f32 %v2052, %v2069
    %v2072 = vmul.f32 %v2054, %v2069
    %v2073 = vmul.f32 %v2056, %v2069
    %v2074 = vmul.f32 %v2058, %v2069
    %v2075 = vmul.f32 %v2060, %v2069
    %v2076 = vmul.f32 %v2062, %v2069
    %v2077 = vmul.f32 %v2064, %v2069
    %v2078 = vadd.f32 %v2041, %v2070
    %v2079 = vadd.f32 %v2042, %v2071
    %v2080 = vadd.f32 %v2043, %v2072
    %v2081 = vadd.f32 %v2044, %v2073
    %v2082 = vadd.f32 %v2045, %v2074
    %v2083 = vadd.f32 %v2046, %v2075
    %v2084 = vadd.f32 %v2047, %v2076
    %v2085 = vadd.f32 %v2048, %v2077
    %v2086 = vld [vmem:[#allocation4 + $0xc1] sm:$0xff]
    %v2087 = vld [vmem:[#allocation4 + $0xc9] sm:$0xff]
    %v2088 = vld [vmem:[#allocation4 + $0xd1] sm:$0xff]
    %v2089 = vld [vmem:[#allocation4 + $0xd9] sm:$0xff]
    %v2090 = vld [vmem:[#allocation4 + $0xe1] sm:$0xff]
    %v2091 = vld [vmem:[#allocation4 + $0xe9] sm:$0xff]
    %v2092 = vld [vmem:[#allocation4 + $0xf1] sm:$0xff]
    %v2093 = vld [vmem:[#allocation4 + $0xf9] sm:$0xff]
    %v2094 = vld [vmem:[%s3 + $0x1e] sm:$0x1]
    %v2095 = vlaneseq
    %v2096 = vshrl.u32 %v2095, 7
    %v2097 = vsub.s32 0, %v2096
    %v2098 = vrot.slane %v2094, %v2097
    %v2099 = vmul.f32 %v2086, %v2098
    %v2100 = vmul.f32 %v2087, %v2098
    %v2101 = vmul.f32 %v2088, %v2098
    %v2102 = vmul.f32 %v2089, %v2098
    %v2103 = vmul.f32 %v2090, %v2098
    %v2104 = vmul.f32 %v2091, %v2098
    %v2105 = vmul.f32 %v2092, %v2098
    %v2106 = vmul.f32 %v2093, %v2098
    %v2107 = vadd.f32 %v2078, %v2099
    %v2108 = vadd.f32 %v2079, %v2100
    %v2109 = vadd.f32 %v2080, %v2101
    %v2110 = vadd.f32 %v2081, %v2102
    %v2111 = vadd.f32 %v2082, %v2103
    %v2112 = vadd.f32 %v2083, %v2104
    %v2113 = vadd.f32 %v2084, %v2105
    %v2114 = vadd.f32 %v2085, %v2106
    %2115 = vrot.lane.b32.xlu0 %v2086, 127
    %v2116 = vpop.permute.xlu0 %2115
    %2117 = vrot.lane.b32.xlu0 %v2087, 127
    %v2118 = vpop.permute.xlu0 %2117
    %2119 = vrot.lane.b32.xlu0 %v2088, 127
    %v2120 = vpop.permute.xlu0 %2119
    %2121 = vrot.lane.b32.xlu0 %v2089, 127
    %v2122 = vpop.permute.xlu0 %2121
    %2123 = vrot.lane.b32.xlu0 %v2090, 127
    %v2124 = vpop.permute.xlu0 %2123
    %2125 = vrot.lane.b32.xlu0 %v2091, 127
    %v2126 = vpop.permute.xlu0 %2125
    %2127 = vrot.lane.b32.xlu0 %v2092, 127
    %v2128 = vpop.permute.xlu0 %2127
    %2129 = vrot.lane.b32.xlu0 %v2093, 127
    %v2130 = vpop.permute.xlu0 %2129
    %v2131 = vld [vmem:[%s3 + $0x1f] sm:$0x1]
    %v2132 = vlaneseq
    %v2133 = vshrl.u32 %v2132, 7
    %v2134 = vsub.s32 0, %v2133
    %v2135 = vrot.slane %v2131, %v2134
    %v2136 = vmul.f32 %v2116, %v2135
    %v2137 = vmul.f32 %v2118, %v2135
    %v2138 = vmul.f32 %v2120, %v2135
    %v2139 = vmul.f32 %v2122, %v2135
    %v2140 = vmul.f32 %v2124, %v2135
    %v2141 = vmul.f32 %v2126, %v2135
    %v2142 = vmul.f32 %v2128, %v2135
    %v2143 = vmul.f32 %v2130, %v2135
    %v2144 = vadd.f32 %v2107, %v2136
    %v2145 = vadd.f32 %v2108, %v2137
    %v2146 = vadd.f32 %v2109, %v2138
    %v2147 = vadd.f32 %v2110, %v2139
    %v2148 = vadd.f32 %v2111, %v2140
    %v2149 = vadd.f32 %v2112, %v2141
    %v2150 = vadd.f32 %v2113, %v2142
    %v2151 = vadd.f32 %v2114, %v2143
    %2152 = vrot.lane.b32.xlu0 %v2086, 126
    %v2153 = vpop.permute.xlu0 %2152
    %2154 = vrot.lane.b32.xlu0 %v2087, 126
    %v2155 = vpop.permute.xlu0 %2154
    %2156 = vrot.lane.b32.xlu0 %v2088, 126
    %v2157 = vpop.permute.xlu0 %2156
    %2158 = vrot.lane.b32.xlu0 %v2089, 126
    %v2159 = vpop.permute.xlu0 %2158
    %2160 = vrot.lane.b32.xlu0 %v2090, 126
    %v2161 = vpop.permute.xlu0 %2160
    %2162 = vrot.lane.b32.xlu0 %v2091, 126
    %v2163 = vpop.permute.xlu0 %2162
    %2164 = vrot.lane.b32.xlu0 %v2092, 126
    %v2165 = vpop.permute.xlu0 %2164
    %2166 = vrot.lane.b32.xlu0 %v2093, 126
    %v2167 = vpop.permute.xlu0 %2166
    %v2168 = vld [vmem:[%s3 + $0x20] sm:$0x1]
    %v2169 = vlaneseq
    %v2170 = vshrl.u32 %v2169, 7
    %v2171 = vsub.s32 0, %v2170
    %v2172 = vrot.slane %v2168, %v2171
    %v2173 = vmul.f32 %v2153, %v2172
    %v2174 = vmul.f32 %v2155, %v2172
    %v2175 = vmul.f32 %v2157, %v2172
    %v2176 = vmul.f32 %v2159, %v2172
    %v2177 = vmul.f32 %v2161, %v2172
    %v2178 = vmul.f32 %v2163, %v2172
    %v2179 = vmul.f32 %v2165, %v2172
    %v2180 = vmul.f32 %v2167, %v2172
    %v2181 = vadd.f32 %v2144, %v2173
    %v2182 = vadd.f32 %v2145, %v2174
    %v2183 = vadd.f32 %v2146, %v2175
    %v2184 = vadd.f32 %v2147, %v2176
    %v2185 = vadd.f32 %v2148, %v2177
    %v2186 = vadd.f32 %v2149, %v2178
    %v2187 = vadd.f32 %v2150, %v2179
    %v2188 = vadd.f32 %v2151, %v2180
    %v2189 = vld [vmem:[#allocation4 + $0xc2] sm:$0xff]
    %v2190 = vld [vmem:[#allocation4 + $0xca] sm:$0xff]
    %v2191 = vld [vmem:[#allocation4 + $0xd2] sm:$0xff]
    %v2192 = vld [vmem:[#allocation4 + $0xda] sm:$0xff]
    %v2193 = vld [vmem:[#allocation4 + $0xe2] sm:$0xff]
    %v2194 = vld [vmem:[#allocation4 + $0xea] sm:$0xff]
    %v2195 = vld [vmem:[#allocation4 + $0xf2] sm:$0xff]
    %v2196 = vld [vmem:[#allocation4 + $0xfa] sm:$0xff]
    %v2197 = vld [vmem:[%s3 + $0x21] sm:$0x1]
    %v2198 = vlaneseq
    %v2199 = vshrl.u32 %v2198, 7
    %v2200 = vsub.s32 0, %v2199
    %v2201 = vrot.slane %v2197, %v2200
    %v2202 = vmul.f32 %v2189, %v2201
    %v2203 = vmul.f32 %v2190, %v2201
    %v2204 = vmul.f32 %v2191, %v2201
    %v2205 = vmul.f32 %v2192, %v2201
    %v2206 = vmul.f32 %v2193, %v2201
    %v2207 = vmul.f32 %v2194, %v2201
    %v2208 = vmul.f32 %v2195, %v2201
    %v2209 = vmul.f32 %v2196, %v2201
    %v2210 = vadd.f32 %v2181, %v2202
    %v2211 = vadd.f32 %v2182, %v2203
    %v2212 = vadd.f32 %v2183, %v2204
    %v2213 = vadd.f32 %v2184, %v2205
    %v2214 = vadd.f32 %v2185, %v2206
    %v2215 = vadd.f32 %v2186, %v2207
    %v2216 = vadd.f32 %v2187, %v2208
    %v2217 = vadd.f32 %v2188, %v2209
    %2218 = vrot.lane.b32.xlu0 %v2189, 127
    %v2219 = vpop.permute.xlu0 %2218
    %2220 = vrot.lane.b32.xlu0 %v2190, 127
    %v2221 = vpop.permute.xlu0 %2220
    %2222 = vrot.lane.b32.xlu0 %v2191, 127
    %v2223 = vpop.permute.xlu0 %2222
    %2224 = vrot.lane.b32.xlu0 %v2192, 127
    %v2225 = vpop.permute.xlu0 %2224
    %2226 = vrot.lane.b32.xlu0 %v2193, 127
    %v2227 = vpop.permute.xlu0 %2226
    %2228 = vrot.lane.b32.xlu0 %v2194, 127
    %v2229 = vpop.permute.xlu0 %2228
    %2230 = vrot.lane.b32.xlu0 %v2195, 127
    %v2231 = vpop.permute.xlu0 %2230
    %2232 = vrot.lane.b32.xlu0 %v2196, 127
    %v2233 = vpop.permute.xlu0 %2232
    %v2234 = vld [vmem:[%s3 + $0x22] sm:$0x1]
    %v2235 = vlaneseq
    %v2236 = vshrl.u32 %v2235, 7
    %v2237 = vsub.s32 0, %v2236
    %v2238 = vrot.slane %v2234, %v2237
    %v2239 = vmul.f32 %v2219, %v2238
    %v2240 = vmul.f32 %v2221, %v2238
    %v2241 = vmul.f32 %v2223, %v2238
    %v2242 = vmul.f32 %v2225, %v2238
    %v2243 = vmul.f32 %v2227, %v2238
    %v2244 = vmul.f32 %v2229, %v2238
    %v2245 = vmul.f32 %v2231, %v2238
    %v2246 = vmul.f32 %v2233, %v2238
    %v2247 = vadd.f32 %v2210, %v2239
    %v2248 = vadd.f32 %v2211, %v2240
    %v2249 = vadd.f32 %v2212, %v2241
    %v2250 = vadd.f32 %v2213, %v2242
    %v2251 = vadd.f32 %v2214, %v2243
    %v2252 = vadd.f32 %v2215, %v2244
    %v2253 = vadd.f32 %v2216, %v2245
    %v2254 = vadd.f32 %v2217, %v2246
    %2255 = vrot.lane.b32.xlu0 %v2189, 126
    %v2256 = vpop.permute.xlu0 %2255
    %2257 = vrot.lane.b32.xlu0 %v2190, 126
    %v2258 = vpop.permute.xlu0 %2257
    %2259 = vrot.lane.b32.xlu0 %v2191, 126
    %v2260 = vpop.permute.xlu0 %2259
    %2261 = vrot.lane.b32.xlu0 %v2192, 126
    %v2262 = vpop.permute.xlu0 %2261
    %2263 = vrot.lane.b32.xlu0 %v2193, 126
    %v2264 = vpop.permute.xlu0 %2263
    %2265 = vrot.lane.b32.xlu0 %v2194, 126
    %v2266 = vpop.permute.xlu0 %2265
    %2267 = vrot.lane.b32.xlu0 %v2195, 126
    %v2268 = vpop.permute.xlu0 %2267
    %2269 = vrot.lane.b32.xlu0 %v2196, 126
    %v2270 = vpop.permute.xlu0 %2269
    %v2271 = vld [vmem:[%s3 + $0x23] sm:$0x1]
    %v2272 = vlaneseq
    %v2273 = vshrl.u32 %v2272, 7
    %v2274 = vsub.s32 0, %v2273
    %v2275 = vrot.slane %v2271, %v2274
    %v2276 = vmul.f32 %v2256, %v2275
    %v2277 = vmul.f32 %v2258, %v2275
    %v2278 = vmul.f32 %v2260, %v2275
    %v2279 = vmul.f32 %v2262, %v2275
    %v2280 = vmul.f32 %v2264, %v2275
    %v2281 = vmul.f32 %v2266, %v2275
    %v2282 = vmul.f32 %v2268, %v2275
    %v2283 = vmul.f32 %v2270, %v2275
    %v2284 = vadd.f32 %v2247, %v2276
    %v2285 = vadd.f32 %v2248, %v2277
    %v2286 = vadd.f32 %v2249, %v2278
    %v2287 = vadd.f32 %v2250, %v2279
    %v2288 = vadd.f32 %v2251, %v2280
    %v2289 = vadd.f32 %v2252, %v2281
    %v2290 = vadd.f32 %v2253, %v2282
    %v2291 = vadd.f32 %v2254, %v2283
    %v2292 = vld [vmem:[%s4] sm:$0x1]
    %v2294 = vlaneseq
    %v2295 = vshrl.u32 %v2294, 7
    %v2296 = vsub.s32 0, %v2295
    %v2297 = vrot.slane %v2292, %v2296
    %v2299 = vadd.f32 %v2284, %v2297
    %v2300 = vadd.f32 %v2285, %v2297
    %v2301 = vadd.f32 %v2286, %v2297
    %v2302 = vadd.f32 %v2287, %v2297
    %v2303 = vadd.f32 %v2288, %v2297
    %v2304 = vadd.f32 %v2289, %v2297
    %v2305 = vadd.f32 %v2290, %v2297
    %v2306 = vadd.f32 %v2291, %v2297
    %vm2307 = vcmp.ge.f32.partialorder %v2299, 0.0
    %vm2308 = vcmp.ge.f32.partialorder %v2300, 0.0
    %vm2309 = vcmp.ge.f32.partialorder %v2301, 0.0
    %vm2310 = vcmp.ge.f32.partialorder %v2302, 0.0
    %vm2311 = vcmp.ge.f32.partialorder %v2303, 0.0
    %vm2312 = vcmp.ge.f32.partialorder %v2304, 0.0
    %vm2313 = vcmp.ge.f32.partialorder %v2305, 0.0
    %vm2314 = vcmp.ge.f32.partialorder %v2306, 0.0
    %v2315 = vmul.f32 %v2299, 0.02
    %v2316 = vmul.f32 %v2300, 0.02
    %v2317 = vmul.f32 %v2301, 0.02
    %v2318 = vmul.f32 %v2302, 0.02
    %v2319 = vmul.f32 %v2303, 0.02
    %v2320 = vmul.f32 %v2304, 0.02
    %v2321 = vmul.f32 %v2305, 0.02
    %v2322 = vmul.f32 %v2306, 0.02
    %v2323 = vsel %vm2307, %v2299, %v2315
    %v2324 = vsel %vm2308, %v2300, %v2316
    %v2325 = vsel %vm2309, %v2301, %v2317
    %v2326 = vsel %vm2310, %v2302, %v2318
    %v2327 = vsel %vm2311, %v2303, %v2319
    %v2328 = vsel %vm2312, %v2304, %v2320
    %v2329 = vsel %vm2313, %v2305, %v2321
    %v2330 = vsel %vm2314, %v2306, %v2322
    %2331 = vst [vmem:[#allocation5] sm:$0xff] %v2323
    %2332 = vst [vmem:[#allocation5 + $0x8] sm:$0xff] %v2324
    %2333 = vst [vmem:[#allocation5 + $0x10] sm:$0xff] %v2325
    %2334 = vst [vmem:[#allocation5 + $0x18] sm:$0xff] %v2326
    %2335 = vst [vmem:[#allocation5 + $0x20] sm:$0xff] %v2327
    %2336 = vst [vmem:[#allocation5 + $0x28] sm:$0xff] %v2328
    %2337 = vst [vmem:[#allocation5 + $0x30] sm:$0xff] %v2329
    %2338 = vst [vmem:[#allocation5 + $0x38] sm:$0xff] %v2330
    %v2339 = vld [vmem:[#allocation5] ss:$2 sm:$0xff]
    %s2340 = scalar_lea.vmem [#allocation5], 16
    %v2341 = vld [vmem:[%s2340] ss:$2 sm:$0xff]
    %s2342 = scalar_lea.vmem [#allocation5], 32
    %v2343 = vld [vmem:[%s2342] ss:$2 sm:$0xff]
    %s2344 = scalar_lea.vmem [#allocation5], 48
    %v2345 = vld [vmem:[%s2344] ss:$2 sm:$0xff]
    %s2346 = scalar_lea.vmem [#allocation5], 1
    %v2347 = vld [vmem:[%s2346] ss:$2 sm:$0xff]
    %s2348 = scalar_lea.vmem [#allocation5], 17
    %v2349 = vld [vmem:[%s2348] ss:$2 sm:$0xff]
    %s2350 = scalar_lea.vmem [#allocation5], 33
    %v2351 = vld [vmem:[%s2350] ss:$2 sm:$0xff]
    %s2352 = scalar_lea.vmem [#allocation5], 49
    %v2353 = vld [vmem:[%s2352] ss:$2 sm:$0xff]
    %v2354 = vmax.f32 %v2339, %v2347
    %v2355 = vmax.f32 %v2341, %v2349
    %v2356 = vmax.f32 %v2343, %v2351
    %v2357 = vmax.f32 %v2345, %v2353
    %2358 = vrot.lane.b32.xlu0 %v2354, 127
    %v2359 = vpop.permute.xlu0 %2358
    %2360 = vrot.lane.b32.xlu0 %v2355, 127
    %v2361 = vpop.permute.xlu0 %2360
    %2362 = vrot.lane.b32.xlu0 %v2356, 127
    %v2363 = vpop.permute.xlu0 %2362
    %2364 = vrot.lane.b32.xlu0 %v2357, 127
    %v2365 = vpop.permute.xlu0 %2364
    %v2366 = vmax.f32 %v2354, %v2359
    %v2367 = vmax.f32 %v2355, %v2361
    %v2368 = vmax.f32 %v2356, %v2363
    %v2369 = vmax.f32 %v2357, %v2365
    %v2370 = vld [vmem:[%s6] sm:$0xff]
    %v2371 = vld [vmem:[%s6 + $0x8] sm:$0xff]
    %v2372 = vld [vmem:[%s6 + $0x10] sm:$0xff]
    %v2373 = vld [vmem:[%s6 + $0x18] sm:$0xff]
    %v2374 = vld [vmem:[%s6 + $0x20] sm:$0xff]
    %v2375 = vld [vmem:[%s6 + $0x28] sm:$0xff]
    %v2376 = vld [vmem:[%s6 + $0x30] sm:$0xff]
    %v2377 = vld [vmem:[%s6 + $0x38] sm:$0xff]
    %v2378 = vld [vmem:[%s6 + $0x40] sm:$0xff]
    %v2379 = vld [vmem:[%s6 + $0x48] sm:$0xff]
    %v2380 = vld [vmem:[%s6 + $0x50] sm:$0xff]
    %v2381 = vld [vmem:[%s6 + $0x58] sm:$0xff]
    %v2382 = vld [vmem:[%s6 + $0x60] sm:$0xff]
    %v2383 = vld [vmem:[%s6 + $0x68] sm:$0xff]
    %v2384 = vld [vmem:[%s6 + $0x70] sm:$0xff]
    %v2385 = vld [vmem:[%s6 + $0x78] sm:$0xff]
    %2386 = vmatprep.subr.mxu0 0.0
    %2387 = vmatpush1.msra.mxu0 %v2370
    %2388 = vmatprep.subr.mxu0 0.0
    %2389 = vmatpush1.msra.mxu0 %v2371
    %2390 = vmatprep.subr.mxu0 0.0
    %2391 = vmatpush1.msra.mxu0 %v2372
    %2392 = vmatprep.subr.mxu0 0.0
    %2393 = vmatpush1.msra.mxu0 %v2373
    %2394 = vmatprep.subr.mxu0 0.0
    %2395 = vmatpush1.msra.mxu0 %v2374
    %2396 = vmatprep.subr.mxu0 0.0
    %2397 = vmatpush1.msra.mxu0 %v2375
    %2398 = vmatprep.subr.mxu0 0.0
    %2399 = vmatpush1.msra.mxu0 %v2376
    %2400 = vmatprep.subr.mxu0 0.0
    %2401 = vmatpush1.msra.mxu0 %v2377
    %2402 = vmatprep.subr.mxu0 0.0
    %2403 = vmatpush1.msra.mxu0 %v2378
    %2404 = vmatprep.subr.mxu0 0.0
    %2405 = vmatpush1.msra.mxu0 %v2379
    %2406 = vmatprep.subr.mxu0 0.0
    %2407 = vmatpush1.msra.mxu0 %v2380
    %2408 = vmatprep.subr.mxu0 0.0
    %2409 = vmatpush1.msra.mxu0 %v2381
    %2410 = vmatprep.subr.mxu0 0.0
    %2411 = vmatpush1.msra.mxu0 %v2382
    %2412 = vmatprep.subr.mxu0 0.0
    %2413 = vmatpush1.msra.mxu0 %v2383
    %2414 = vmatprep.subr.mxu0 0.0
    %2415 = vmatpush1.msra.mxu0 %v2384
    %2416 = vmatprep.subr.mxu0 0.0
    %2417 = vmatpush1.msra.mxu0 %v2385
    %2418 = vmatprep.subr.mxu0 0.0
    %2419 = vmatpush1.msra.mxu0 0.0
    %2420 = vmatprep.subr.mxu0 0.0
    %2421 = vmatpush1.msra.mxu0 0.0
    %2422 = vmatprep.subr.mxu0 0.0
    %2423 = vmatpush1.msra.mxu0 0.0
    %2424 = vmatprep.subr.mxu0 0.0
    %2425 = vmatpush1.msra.mxu0 0.0
    %2426 = vmatprep.subr.mxu0 0.0
    %2427 = vmatpush1.msra.mxu0 0.0
    %2428 = vmatprep.subr.mxu0 0.0
    %2429 = vmatpush1.msra.mxu0 0.0
    %2430 = vmatprep.subr.mxu0 0.0
    %2431 = vmatpush1.msra.mxu0 0.0
    %2432 = vmatprep.subr.mxu0 0.0
    %2433 = vmatpush1.msra.mxu0 0.0
    %2434 = vmatprep.subr.mxu0 0.0
    %2435 = vmatpush1.msra.mxu0 0.0
    %2436 = vmatprep.subr.mxu0 0.0
    %2437 = vmatpush1.msra.mxu0 0.0
    %2438 = vmatprep.subr.mxu0 0.0
    %2439 = vmatpush1.msra.mxu0 0.0
    %2440 = vmatprep.subr.mxu0 0.0
    %2441 = vmatpush1.msra.mxu0 0.0
    %2442 = vmatprep.subr.mxu0 0.0
    %2443 = vmatpush1.msra.mxu0 0.0
    %2444 = vmatprep.subr.mxu0 0.0
    %2445 = vmatpush1.msra.mxu0 0.0
    %2446 = vmatprep.subr.mxu0 0.0
    %2447 = vmatpush1.msra.mxu0 0.0
    %2448 = vmatprep.subr.mxu0 0.0
    %2449 = vmatpush1.msra.mxu0 0.0
    %2450 = vmatprep.mubr.f32.mxu0 0.0
    %2451 = vmatmul.mubr.f32.gmra.mrb[0].mxu0 %v2366
    %v2452 = vpop.f32.mrb[0].mxu0
    %v2453 = vadd.f32 0.0, %v2452
    %v2454 = vpop.f32.mrb[0].mxu0
    %2455 = vmatprep.mubr.f32.mxu0 0.0
    %2456 = vmatmul.mubr.f32.gmra.mrb[0].mxu0 %v2367
    %v2457 = vpop.f32.mrb[0].mxu0
    %v2458 = vadd.f32 0.0, %v2457
    %v2459 = vpop.f32.mrb[0].mxu0
    %2460 = vmatprep.mubr.f32.mxu0 0.0
    %2461 = vmatmul.mubr.f32.gmra.mrb[0].mxu0 %v2368
    %v2462 = vpop.f32.mrb[0].mxu0
    %v2463 = vadd.f32 0.0, %v2462
    %v2464 = vpop.f32.mrb[0].mxu0
    %2465 = vmatprep.mubr.f32.mxu0 0.0
    %2466 = vmatmul.mubr.f32.gmra.mrb[0].mxu0 %v2369
    %v2467 = vpop.f32.mrb[0].mxu0
    %v2468 = vadd.f32 0.0, %v2467
    %v2469 = vpop.f32.mrb[0].mxu0
    %2470 = vdwg.mxu0
    %vm2471 = vcmask 261120
    %2472 = vst.msk [vmem:[#allocation6] sm:$0xff] %vm2471, %v2453
    %2473 = vst.msk [vmem:[#allocation6 + $0x8] sm:$0xff] %vm2471, %v2458
    %2474 = vst.msk [vmem:[#allocation6 + $0x10] sm:$0xff] %vm2471, %v2463
    %2475 = vst.msk [vmem:[#allocation6 + $0x18] sm:$0xff] %vm2471, %v2468
    %v2476 = vld [vmem:[#allocation6] ss:$16 sm:$0x3]
    %v2477 = vpack.c.bf16 %v2476, %v2476
    %v2478 = vld [vmem:[#allocation7] sm:$0xff]
    %v2479 = vld [vmem:[#allocation7 + $0x8] sm:$0xff]
    %v2480 = vld [vmem:[#allocation7 + $0x10] sm:$0xff]
    %v2481 = vld [vmem:[#allocation7 + $0x18] sm:$0xff]
    %v2482 = vld [vmem:[#allocation7 + $0x20] sm:$0xff]
    %v2483 = vld [vmem:[#allocation7 + $0x28] sm:$0xff]
    %v2484 = vld [vmem:[#allocation7 + $0x30] sm:$0xff]
    %v2485 = vld [vmem:[#allocation7 + $0x38] sm:$0xff]
    %s2486 = scalar_lea.vmem [#allocation6], 1
    %v2487 = vld [vmem:[%s2486] ss:$16 sm:$0x3]
    %v2488 = vpack.c.bf16 %v2487, %v2487
    %s2489 = scalar_lea.vmem [#allocation7], 64
    %v2490 = vld [vmem:[%s2489] sm:$0xff]
    %v2491 = vld [vmem:[%s2489 + $0x8] sm:$0xff]
    %v2492 = vld [vmem:[%s2489 + $0x10] sm:$0xff]
    %v2493 = vld [vmem:[%s2489 + $0x18] sm:$0xff]
    %v2494 = vld [vmem:[%s2489 + $0x20] sm:$0xff]
    %v2495 = vld [vmem:[%s2489 + $0x28] sm:$0xff]
    %v2496 = vld [vmem:[%s2489 + $0x30] sm:$0xff]
    %v2497 = vld [vmem:[%s2489 + $0x38] sm:$0xff]
    %v2506 = vunpack.c.l.b16 %v2490
    %v2507 = vunpack.c.h.b16 %v2490
    %v2508 = vunpack.c.l.b16 %v2491
    %v2509 = vunpack.c.h.b16 %v2491
    %v2510 = vunpack.c.l.b16 %v2492
    %v2511 = vunpack.c.h.b16 %v2492
    %v2512 = vunpack.c.l.b16 %v2493
    %v2513 = vunpack.c.h.b16 %v2493
    %v2514 = vunpack.c.l.b16 %v2494
    %v2515 = vunpack.c.h.b16 %v2494
    %v2516 = vunpack.c.l.b16 %v2495
    %v2517 = vunpack.c.h.b16 %v2495
    %v2518 = vunpack.c.l.b16 %v2496
    %v2519 = vunpack.c.h.b16 %v2496
    %v2520 = vunpack.c.l.b16 %v2497
    %v2521 = vunpack.c.h.b16 %v2497
    %v2522 = vpack.c.b16 %v2510, %v2506
    %v2523 = vpack.c.b16 %v2511, %v2507
    %v2524 = vpack.c.b16 %v2512, %v2508
    %v2525 = vpack.c.b16 %v2513, %v2509
    %v2526 = vpack.c.b16 %v2518, %v2514
    %v2527 = vpack.c.b16 %v2519, %v2515
    %v2528 = vpack.c.b16 %v2520, %v2516
    %v2529 = vpack.c.b16 %v2521, %v2517
    %v2539 = vsel %vm2471, %v2488, 0
    %2541 = vmatprep.subr.bf16.mxu0 %v2523
    %2542 = vmatpush1.bf16.msra.mxu0 %v2522
    %2543 = vmatprep.subr.bf16.mxu0 %v2527
    %2544 = vmatpush1.bf16.msra.mxu0 %v2526
    %2545 = vmatprep.subr.bf16.mxu0 0
    %2546 = vmatpush1.bf16.msra.mxu0 0
    %2547 = vmatprep.subr.bf16.mxu0 0
    %2548 = vmatpush1.bf16.msra.mxu0 0
    %2549 = vmatprep.subr.bf16.mxu0 0
    %2550 = vmatpush1.bf16.msra.mxu0 0
    %2551 = vmatprep.subr.bf16.mxu0 0
    %2552 = vmatpush1.bf16.msra.mxu0 0
    %2553 = vmatprep.subr.bf16.mxu0 0
    %2554 = vmatpush1.bf16.msra.mxu0 0
    %2555 = vmatprep.subr.bf16.mxu0 0
    %2556 = vmatpush1.bf16.msra.mxu0 0
    %2557 = vmatprep.subr.bf16.mxu0 0
    %2558 = vmatpush1.bf16.msra.mxu0 0
    %2559 = vmatprep.subr.bf16.mxu0 0
    %2560 = vmatpush1.bf16.msra.mxu0 0
    %2561 = vmatprep.subr.bf16.mxu0 0
    %2562 = vmatpush1.bf16.msra.mxu0 0
    %2563 = vmatprep.subr.bf16.mxu0 0
    %2564 = vmatpush1.bf16.msra.mxu0 0
    %2565 = vmatprep.subr.bf16.mxu0 0
    %2566 = vmatpush1.bf16.msra.mxu0 0
    %2567 = vmatprep.subr.bf16.mxu0 0
    %2568 = vmatpush1.bf16.msra.mxu0 0
    %2569 = vmatprep.subr.bf16.mxu0 0
    %2570 = vmatpush1.bf16.msra.mxu0 0
    %2571 = vmatprep.subr.bf16.mxu0 0
    %2572 = vmatpush1.bf16.msra.mxu0 0
    %2573 = vmatprep.mubr.bf16.mxu0 0
    %2574 = vmatmul.mubr.bf16.gmra.mrb[0].mxu0 %v2539
    %v2575 = vpop.f32.mrb[0].mxu0
    %v2576 = vadd.f32 0.0, %v2575
    %v2577 = vpop.f32.mrb[0].mxu0
    %v2578 = vadd.f32 0.0, %v2577
    %v2579 = vpop.f32.mrb[0].mxu0
    %v2580 = vpop.f32.mrb[0].mxu0
    %2581 = vdwg.mxu0
    %2582 = vmatprep.subr.bf16.mxu0 %v2525
    %2583 = vmatpush1.bf16.msra.mxu0 %v2524
    %2584 = vmatprep.subr.bf16.mxu0 %v2529
    %2585 = vmatpush1.bf16.msra.mxu0 %v2528
    %2586 = vmatprep.subr.bf16.mxu0 0
    %2587 = vmatpush1.bf16.msra.mxu0 0
    %2588 = vmatprep.subr.bf16.mxu0 0
    %2589 = vmatpush1.bf16.msra.mxu0 0
    %2590 = vmatprep.subr.bf16.mxu0 0
    %2591 = vmatpush1.bf16.msra.mxu0 0
    %2592 = vmatprep.subr.bf16.mxu0 0
    %2593 = vmatpush1.bf16.msra.mxu0 0
    %2594 = vmatprep.subr.bf16.mxu0 0
    %2595 = vmatpush1.bf16.msra.mxu0 0
    %2596 = vmatprep.subr.bf16.mxu0 0
    %2597 = vmatpush1.bf16.msra.mxu0 0
    %2598 = vmatprep.subr.bf16.mxu0 0
    %2599 = vmatpush1.bf16.msra.mxu0 0
    %2600 = vmatprep.subr.bf16.mxu0 0
    %2601 = vmatpush1.bf16.msra.mxu0 0
    %2602 = vmatprep.subr.bf16.mxu0 0
    %2603 = vmatpush1.bf16.msra.mxu0 0
    %2604 = vmatprep.subr.bf16.mxu0 0
    %2605 = vmatpush1.bf16.msra.mxu0 0
    %2606 = vmatprep.subr.bf16.mxu0 0
    %2607 = vmatpush1.bf16.msra.mxu0 0
    %2608 = vmatprep.subr.bf16.mxu0 0
    %2609 = vmatpush1.bf16.msra.mxu0 0
    %2610 = vmatprep.subr.bf16.mxu0 0
    %2611 = vmatpush1.bf16.msra.mxu0 0
    %2612 = vmatprep.subr.bf16.mxu0 0
    %2613 = vmatpush1.bf16.msra.mxu0 0
    %2614 = vmatprep.mubr.bf16.mxu0 0
    %2615 = vmatmul.mubr.bf16.gmra.mrb[0].mxu0 %v2539
    %v2616 = vpop.f32.mrb[0].mxu0
    %v2617 = vadd.f32 0.0, %v2616
    %v2618 = vpop.f32.mrb[0].mxu0
    %v2619 = vadd.f32 0.0, %v2618
    %v2620 = vpop.f32.mrb[0].mxu0
    %v2621 = vpop.f32.mrb[0].mxu0
    %2622 = vdwg.mxu0
    %v2631 = vunpack.c.l.b16 %v2478
    %v2632 = vunpack.c.h.b16 %v2478
    %v2633 = vunpack.c.l.b16 %v2479
    %v2634 = vunpack.c.h.b16 %v2479
    %v2635 = vunpack.c.l.b16 %v2480
    %v2636 = vunpack.c.h.b16 %v2480
    %v2637 = vunpack.c.l.b16 %v2481
    %v2638 = vunpack.c.h.b16 %v2481
    %v2639 = vunpack.c.l.b16 %v2482
    %v2640 = vunpack.c.h.b16 %v2482
    %v2641 = vunpack.c.l.b16 %v2483
    %v2642 = vunpack.c.h.b16 %v2483
    %v2643 = vunpack.c.l.b16 %v2484
    %v2644 = vunpack.c.h.b16 %v2484
    %v2645 = vunpack.c.l.b16 %v2485
    %v2646 = vunpack.c.h.b16 %v2485
    %v2647 = vpack.c.b16 %v2635, %v2631
    %v2648 = vpack.c.b16 %v2636, %v2632
    %v2649 = vpack.c.b16 %v2637, %v2633
    %v2650 = vpack.c.b16 %v2638, %v2634
    %v2651 = vpack.c.b16 %v2643, %v2639
    %v2652 = vpack.c.b16 %v2644, %v2640
    %v2653 = vpack.c.b16 %v2645, %v2641
    %v2654 = vpack.c.b16 %v2646, %v2642
    %v2664 = vsel %vm2471, %v2477, 0
    %2666 = vmatprep.subr.bf16.mxu0 %v2648
    %2667 = vmatpush1.bf16.msra.mxu0 %v2647
    %2668 = vmatprep.subr.bf16.mxu0 %v2652
    %2669 = vmatpush1.bf16.msra.mxu0 %v2651
    %2670 = vmatprep.subr.bf16.mxu0 0
    %2671 = vmatpush1.bf16.msra.mxu0 0
    %2672 = vmatprep.subr.bf16.mxu0 0
    %2673 = vmatpush1.bf16.msra.mxu0 0
    %2674 = vmatprep.subr.bf16.mxu0 0
    %2675 = vmatpush1.bf16.msra.mxu0 0
    %2676 = vmatprep.subr.bf16.mxu0 0
    %2677 = vmatpush1.bf16.msra.mxu0 0
    %2678 = vmatprep.subr.bf16.mxu0 0
    %2679 = vmatpush1.bf16.msra.mxu0 0
    %2680 = vmatprep.subr.bf16.mxu0 0
    %2681 = vmatpush1.bf16.msra.mxu0 0
    %2682 = vmatprep.subr.bf16.mxu0 0
    %2683 = vmatpush1.bf16.msra.mxu0 0
    %2684 = vmatprep.subr.bf16.mxu0 0
    %2685 = vmatpush1.bf16.msra.mxu0 0
    %2686 = vmatprep.subr.bf16.mxu0 0
    %2687 = vmatpush1.bf16.msra.mxu0 0
    %2688 = vmatprep.subr.bf16.mxu0 0
    %2689 = vmatpush1.bf16.msra.mxu0 0
    %2690 = vmatprep.subr.bf16.mxu0 0
    %2691 = vmatpush1.bf16.msra.mxu0 0
    %2692 = vmatprep.subr.bf16.mxu0 0
    %2693 = vmatpush1.bf16.msra.mxu0 0
    %2694 = vmatprep.subr.bf16.mxu0 0
    %2695 = vmatpush1.bf16.msra.mxu0 0
    %2696 = vmatprep.subr.bf16.mxu0 0
    %2697 = vmatpush1.bf16.msra.mxu0 0
    %2698 = vmatprep.mubr.bf16.mxu0 0
    %2699 = vmatmul.mubr.bf16.gmra.mrb[0].mxu0 %v2664
    %v2700 = vpop.f32.mrb[0].mxu0
    %v2701 = vadd.f32 %v2576, %v2700
    %v2702 = vpop.f32.mrb[0].mxu0
    %v2703 = vadd.f32 %v2578, %v2702
    %v2704 = vpop.f32.mrb[0].mxu0
    %v2705 = vpop.f32.mrb[0].mxu0
    %2706 = vdwg.mxu0
    %2707 = vmatprep.subr.bf16.mxu0 %v2650
    %2708 = vmatpush1.bf16.msra.mxu0 %v2649
    %2709 = vmatprep.subr.bf16.mxu0 %v2654
    %2710 = vmatpush1.bf16.msra.mxu0 %v2653
    %2711 = vmatprep.subr.bf16.mxu0 0
    %2712 = vmatpush1.bf16.msra.mxu0 0
    %2713 = vmatprep.subr.bf16.mxu0 0
    %2714 = vmatpush1.bf16.msra.mxu0 0
    %2715 = vmatprep.subr.bf16.mxu0 0
    %2716 = vmatpush1.bf16.msra.mxu0 0
    %2717 = vmatprep.subr.bf16.mxu0 0
    %2718 = vmatpush1.bf16.msra.mxu0 0
    %2719 = vmatprep.subr.bf16.mxu0 0
    %2720 = vmatpush1.bf16.msra.mxu0 0
    %2721 = vmatprep.subr.bf16.mxu0 0
    %2722 = vmatpush1.bf16.msra.mxu0 0
    %2723 = vmatprep.subr.bf16.mxu0 0
    %2724 = vmatpush1.bf16.msra.mxu0 0
    %2725 = vmatprep.subr.bf16.mxu0 0
    %2726 = vmatpush1.bf16.msra.mxu0 0
    %2727 = vmatprep.subr.bf16.mxu0 0
    %2728 = vmatpush1.bf16.msra.mxu0 0
    %2729 = vmatprep.subr.bf16.mxu0 0
    %2730 = vmatpush1.bf16.msra.mxu0 0
    %2731 = vmatprep.subr.bf16.mxu0 0
    %2732 = vmatpush1.bf16.msra.mxu0 0
    %2733 = vmatprep.subr.bf16.mxu0 0
    %2734 = vmatpush1.bf16.msra.mxu0 0
    %2735 = vmatprep.subr.bf16.mxu0 0
    %2736 = vmatpush1.bf16.msra.mxu0 0
    %2737 = vmatprep.subr.bf16.mxu0 0
    %2738 = vmatpush1.bf16.msra.mxu0 0
    %2739 = vmatprep.mubr.bf16.mxu0 0
    %2740 = vmatmul.mubr.bf16.gmra.mrb[0].mxu0 %v2664
    %v2741 = vpop.f32.mrb[0].mxu0
    %v2742 = vadd.f32 %v2617, %v2741
    %v2743 = vpop.f32.mrb[0].mxu0
    %v2744 = vadd.f32 %v2619, %v2743
    %v2745 = vpop.f32.mrb[0].mxu0
    %v2746 = vpop.f32.mrb[0].mxu0
    %2747 = vdwg.mxu0
    %s2748 = scalar_lea.vmem [#allocation6], 2
    %v2749 = vld [vmem:[%s2748] ss:$16 sm:$0x3]
    %v2750 = vpack.c.bf16 %v2749, %v2749
    %s2751 = scalar_lea.vmem [#allocation7], 128
    %v2752 = vld [vmem:[%s2751] sm:$0xff]
    %v2753 = vld [vmem:[%s2751 + $0x8] sm:$0xff]
    %v2754 = vld [vmem:[%s2751 + $0x10] sm:$0xff]
    %v2755 = vld [vmem:[%s2751 + $0x18] sm:$0xff]
    %v2756 = vld [vmem:[%s2751 + $0x20] sm:$0xff]
    %v2757 = vld [vmem:[%s2751 + $0x28] sm:$0xff]
    %v2758 = vld [vmem:[%s2751 + $0x30] sm:$0xff]
    %v2759 = vld [vmem:[%s2751 + $0x38] sm:$0xff]
    %v2768 = vunpack.c.l.b16 %v2752
    %v2769 = vunpack.c.h.b16 %v2752
    %v2770 = vunpack.c.l.b16 %v2753
    %v2771 = vunpack.c.h.b16 %v2753
    %v2772 = vunpack.c.l.b16 %v2754
    %v2773 = vunpack.c.h.b16 %v2754
    %v2774 = vunpack.c.l.b16 %v2755
    %v2775 = vunpack.c.h.b16 %v2755
    %v2776 = vunpack.c.l.b16 %v2756
    %v2777 = vunpack.c.h.b16 %v2756
    %v2778 = vunpack.c.l.b16 %v2757
    %v2779 = vunpack.c.h.b16 %v2757
    %v2780 = vunpack.c.l.b16 %v2758
    %v2781 = vunpack.c.h.b16 %v2758
    %v2782 = vunpack.c.l.b16 %v2759
    %v2783 = vunpack.c.h.b16 %v2759
    %v2784 = vpack.c.b16 %v2772, %v2768
    %v2785 = vpack.c.b16 %v2773, %v2769
    %v2786 = vpack.c.b16 %v2774, %v2770
    %v2787 = vpack.c.b16 %v2775, %v2771
    %v2788 = vpack.c.b16 %v2780, %v2776
    %v2789 = vpack.c.b16 %v2781, %v2777
    %v2790 = vpack.c.b16 %v2782, %v2778
    %v2791 = vpack.c.b16 %v2783, %v2779
    %v2801 = vsel %vm2471, %v2750, 0
    %2803 = vmatprep.subr.bf16.mxu0 %v2785
    %2804 = vmatpush1.bf16.msra.mxu0 %v2784
    %2805 = vmatprep.subr.bf16.mxu0 %v2789
    %2806 = vmatpush1.bf16.msra.mxu0 %v2788
    %2807 = vmatprep.subr.bf16.mxu0 0
    %2808 = vmatpush1.bf16.msra.mxu0 0
    %2809 = vmatprep.subr.bf16.mxu0 0
    %2810 = vmatpush1.bf16.msra.mxu0 0
    %2811 = vmatprep.subr.bf16.mxu0 0
    %2812 = vmatpush1.bf16.msra.mxu0 0
    %2813 = vmatprep.subr.bf16.mxu0 0
    %2814 = vmatpush1.bf16.msra.mxu0 0
    %2815 = vmatprep.subr.bf16.mxu0 0
    %2816 = vmatpush1.bf16.msra.mxu0 0
    %2817 = vmatprep.subr.bf16.mxu0 0
    %2818 = vmatpush1.bf16.msra.mxu0 0
    %2819 = vmatprep.subr.bf16.mxu0 0
    %2820 = vmatpush1.bf16.msra.mxu0 0
    %2821 = vmatprep.subr.bf16.mxu0 0
    %2822 = vmatpush1.bf16.msra.mxu0 0
    %2823 = vmatprep.subr.bf16.mxu0 0
    %2824 = vmatpush1.bf16.msra.mxu0 0
    %2825 = vmatprep.subr.bf16.mxu0 0
    %2826 = vmatpush1.bf16.msra.mxu0 0
    %2827 = vmatprep.subr.bf16.mxu0 0
    %2828 = vmatpush1.bf16.msra.mxu0 0
    %2829 = vmatprep.subr.bf16.mxu0 0
    %2830 = vmatpush1.bf16.msra.mxu0 0
    %2831 = vmatprep.subr.bf16.mxu0 0
    %2832 = vmatpush1.bf16.msra.mxu0 0
    %2833 = vmatprep.subr.bf16.mxu0 0
    %2834 = vmatpush1.bf16.msra.mxu0 0
    %2835 = vmatprep.mubr.bf16.mxu0 0
    %2836 = vmatmul.mubr.bf16.gmra.mrb[0].mxu0 %v2801
    %v2837 = vpop.f32.mrb[0].mxu0
    %v2838 = vadd.f32 0.0, %v2837
    %v2839 = vpop.f32.mrb[0].mxu0
    %v2840 = vadd.f32 0.0, %v2839
    %v2841 = vpop.f32.mrb[0].mxu0
    %v2842 = vpop.f32.mrb[0].mxu0
    %2843 = vdwg.mxu0
    %2844 = vmatprep.subr.bf16.mxu0 %v2787
    %2845 = vmatpush1.bf16.msra.mxu0 %v2786
    %2846 = vmatprep.subr.bf16.mxu0 %v2791
    %2847 = vmatpush1.bf16.msra.mxu0 %v2790
    %2848 = vmatprep.subr.bf16.mxu0 0
    %2849 = vmatpush1.bf16.msra.mxu0 0
    %2850 = vmatprep.subr.bf16.mxu0 0
    %2851 = vmatpush1.bf16.msra.mxu0 0
    %2852 = vmatprep.subr.bf16.mxu0 0
    %2853 = vmatpush1.bf16.msra.mxu0 0
    %2854 = vmatprep.subr.bf16.mxu0 0
    %2855 = vmatpush1.bf16.msra.mxu0 0
    %2856 = vmatprep.subr.bf16.mxu0 0
    %2857 = vmatpush1.bf16.msra.mxu0 0
    %2858 = vmatprep.subr.bf16.mxu0 0
    %2859 = vmatpush1.bf16.msra.mxu0 0
    %2860 = vmatprep.subr.bf16.mxu0 0
    %2861 = vmatpush1.bf16.msra.mxu0 0
    %2862 = vmatprep.subr.bf16.mxu0 0
    %2863 = vmatpush1.bf16.msra.mxu0 0
    %2864 = vmatprep.subr.bf16.mxu0 0
    %2865 = vmatpush1.bf16.msra.mxu0 0
    %2866 = vmatprep.subr.bf16.mxu0 0
    %2867 = vmatpush1.bf16.msra.mxu0 0
    %2868 = vmatprep.subr.bf16.mxu0 0
    %2869 = vmatpush1.bf16.msra.mxu0 0
    %2870 = vmatprep.subr.bf16.mxu0 0
    %2871 = vmatpush1.bf16.msra.mxu0 0
    %2872 = vmatprep.subr.bf16.mxu0 0
    %2873 = vmatpush1.bf16.msra.mxu0 0
    %2874 = vmatprep.subr.bf16.mxu0 0
    %2875 = vmatpush1.bf16.msra.mxu0 0
    %2876 = vmatprep.mubr.bf16.mxu0 0
    %2877 = vmatmul.mubr.bf16.gmra.mrb[0].mxu0 %v2801
    %v2878 = vpop.f32.mrb[0].mxu0
    %v2879 = vadd.f32 0.0, %v2878
    %v2880 = vpop.f32.mrb[0].mxu0
    %v2881 = vadd.f32 0.0, %v2880
    %v2882 = vpop.f32.mrb[0].mxu0
    %v2883 = vpop.f32.mrb[0].mxu0
    %2884 = vdwg.mxu0
    %v2885 = vadd.f32 %v2701, %v2838
    %v2886 = vadd.f32 %v2703, %v2840
    %v2887 = vadd.f32 %v2742, %v2879
    %v2888 = vadd.f32 %v2744, %v2881
    %s2889 = scalar_lea.vmem [#allocation6], 3
    %v2890 = vld [vmem:[%s2889] ss:$16 sm:$0x3]
    %v2891 = vpack.c.bf16 %v2890, %v2890
    %s2892 = scalar_lea.vmem [#allocation7], 192
    %v2893 = vld [vmem:[%s2892] sm:$0xff]
    %v2894 = vld [vmem:[%s2892 + $0x8] sm:$0xff]
    %v2895 = vld [vmem:[%s2892 + $0x10] sm:$0xff]
    %v2896 = vld [vmem:[%s2892 + $0x18] sm:$0xff]
    %v2897 = vld [vmem:[%s2892 + $0x20] sm:$0xff]
    %v2898 = vld [vmem:[%s2892 + $0x28] sm:$0xff]
    %v2899 = vld [vmem:[%s2892 + $0x30] sm:$0xff]
    %v2900 = vld [vmem:[%s2892 + $0x38] sm:$0xff]
    %v2909 = vunpack.c.l.b16 %v2893
    %v2910 = vunpack.c.h.b16 %v2893
    %v2911 = vunpack.c.l.b16 %v2894
    %v2912 = vunpack.c.h.b16 %v2894
    %v2913 = vunpack.c.l.b16 %v2895
    %v2914 = vunpack.c.h.b16 %v2895
    %v2915 = vunpack.c.l.b16 %v2896
    %v2916 = vunpack.c.h.b16 %v2896
    %v2917 = vunpack.c.l.b16 %v2897
    %v2918 = vunpack.c.h.b16 %v2897
    %v2919 = vunpack.c.l.b16 %v2898
    %v2920 = vunpack.c.h.b16 %v2898
    %v2921 = vunpack.c.l.b16 %v2899
    %v2922 = vunpack.c.h.b16 %v2899
    %v2923 = vunpack.c.l.b16 %v2900
    %v2924 = vunpack.c.h.b16 %v2900
    %v2925 = vpack.c.b16 %v2913, %v2909
    %v2926 = vpack.c.b16 %v2914, %v2910
    %v2927 = vpack.c.b16 %v2915, %v2911
    %v2928 = vpack.c.b16 %v2916, %v2912
    %v2929 = vpack.c.b16 %v2921, %v2917
    %v2930 = vpack.c.b16 %v2922, %v2918
    %v2931 = vpack.c.b16 %v2923, %v2919
    %v2932 = vpack.c.b16 %v2924, %v2920
    %v2942 = vsel %vm2471, %v2891, 0
    %2944 = vmatprep.subr.bf16.mxu0 %v2926
    %2945 = vmatpush1.bf16.msra.mxu0 %v2925
    %2946 = vmatprep.subr.bf16.mxu0 %v2930
    %2947 = vmatpush1.bf16.msra.mxu0 %v2929
    %2948 = vmatprep.subr.bf16.mxu0 0
    %2949 = vmatpush1.bf16.msra.mxu0 0
    %2950 = vmatprep.subr.bf16.mxu0 0
    %2951 = vmatpush1.bf16.msra.mxu0 0
    %2952 = vmatprep.subr.bf16.mxu0 0
    %2953 = vmatpush1.bf16.msra.mxu0 0
    %2954 = vmatprep.subr.bf16.mxu0 0
    %2955 = vmatpush1.bf16.msra.mxu0 0
    %2956 = vmatprep.subr.bf16.mxu0 0
    %2957 = vmatpush1.bf16.msra.mxu0 0
    %2958 = vmatprep.subr.bf16.mxu0 0
    %2959 = vmatpush1.bf16.msra.mxu0 0
    %2960 = vmatprep.subr.bf16.mxu0 0
    %2961 = vmatpush1.bf16.msra.mxu0 0
    %2962 = vmatprep.subr.bf16.mxu0 0
    %2963 = vmatpush1.bf16.msra.mxu0 0
    %2964 = vmatprep.subr.bf16.mxu0 0
    %2965 = vmatpush1.bf16.msra.mxu0 0
    %2966 = vmatprep.subr.bf16.mxu0 0
    %2967 = vmatpush1.bf16.msra.mxu0 0
    %2968 = vmatprep.subr.bf16.mxu0 0
    %2969 = vmatpush1.bf16.msra.mxu0 0
    %2970 = vmatprep.subr.bf16.mxu0 0
    %2971 = vmatpush1.bf16.msra.mxu0 0
    %2972 = vmatprep.subr.bf16.mxu0 0
    %2973 = vmatpush1.bf16.msra.mxu0 0
    %2974 = vmatprep.subr.bf16.mxu0 0
    %2975 = vmatpush1.bf16.msra.mxu0 0
    %2976 = vmatprep.mubr.bf16.mxu0 0
    %2977 = vmatmul.mubr.bf16.gmra.mrb[0].mxu0 %v2942
    %v2978 = vpop.f32.mrb[0].mxu0
    %v2979 = vadd.f32 0.0, %v2978
    %v2980 = vpop.f32.mrb[0].mxu0
    %v2981 = vadd.f32 0.0, %v2980
    %v2982 = vpop.f32.mrb[0].mxu0
    %v2983 = vpop.f32.mrb[0].mxu0
    %2984 = vdwg.mxu0
    %2985 = vmatprep.subr.bf16.mxu0 %v2928
    %2986 = vmatpush1.bf16.msra.mxu0 %v2927
    %2987 = vmatprep.subr.bf16.mxu0 %v2932
    %2988 = vmatpush1.bf16.msra.mxu0 %v2931
    %2989 = vmatprep.subr.bf16.mxu0 0
    %2990 = vmatpush1.bf16.msra.mxu0 0
    %2991 = vmatprep.subr.bf16.mxu0 0
    %2992 = vmatpush1.bf16.msra.mxu0 0
    %2993 = vmatprep.subr.bf16.mxu0 0
    %2994 = vmatpush1.bf16.msra.mxu0 0
    %2995 = vmatprep.subr.bf16.mxu0 0
    %2996 = vmatpush1.bf16.msra.mxu0 0
    %2997 = vmatprep.subr.bf16.mxu0 0
    %2998 = vmatpush1.bf16.msra.mxu0 0
    %2999 = vmatprep.subr.bf16.mxu0 0
    %3000 = vmatpush1.bf16.msra.mxu0 0
    %3001 = vmatprep.subr.bf16.mxu0 0
    %3002 = vmatpush1.bf16.msra.mxu0 0
    %3003 = vmatprep.subr.bf16.mxu0 0
    %3004 = vmatpush1.bf16.msra.mxu0 0
    %3005 = vmatprep.subr.bf16.mxu0 0
    %3006 = vmatpush1.bf16.msra.mxu0 0
    %3007 = vmatprep.subr.bf16.mxu0 0
    %3008 = vmatpush1.bf16.msra.mxu0 0
    %3009 = vmatprep.subr.bf16.mxu0 0
    %3010 = vmatpush1.bf16.msra.mxu0 0
    %3011 = vmatprep.subr.bf16.mxu0 0
    %3012 = vmatpush1.bf16.msra.mxu0 0
    %3013 = vmatprep.subr.bf16.mxu0 0
    %3014 = vmatpush1.bf16.msra.mxu0 0
    %3015 = vmatprep.subr.bf16.mxu0 0
    %3016 = vmatpush1.bf16.msra.mxu0 0
    %3017 = vmatprep.mubr.bf16.mxu0 0
    %3018 = vmatmul.mubr.bf16.gmra.mrb[0].mxu0 %v2942
    %v3019 = vpop.f32.mrb[0].mxu0
    %v3020 = vadd.f32 0.0, %v3019
    %v3021 = vpop.f32.mrb[0].mxu0
    %v3022 = vadd.f32 0.0, %v3021
    %v3023 = vpop.f32.mrb[0].mxu0
    %v3024 = vpop.f32.mrb[0].mxu0
    %3025 = vdwg.mxu0
    %v3026 = vadd.f32 %v2885, %v2979
    %v3027 = vadd.f32 %v2886, %v2981
    %v3028 = vadd.f32 %v2887, %v3020
    %v3029 = vadd.f32 %v2888, %v3022
    %s3030 = scalar_lea.vmem [#allocation6], 4
    %v3031 = vld [vmem:[%s3030] ss:$16 sm:$0x3]
    %v3032 = vpack.c.bf16 %v3031, %v3031
    %s3033 = scalar_lea.vmem [#allocation7], 256
    %v3034 = vld [vmem:[%s3033] sm:$0xff]
    %v3035 = vld [vmem:[%s3033 + $0x8] sm:$0xff]
    %v3036 = vld [vmem:[%s3033 + $0x10] sm:$0xff]
    %v3037 = vld [vmem:[%s3033 + $0x18] sm:$0xff]
    %v3038 = vld [vmem:[%s3033 + $0x20] sm:$0xff]
    %v3039 = vld [vmem:[%s3033 + $0x28] sm:$0xff]
    %v3040 = vld [vmem:[%s3033 + $0x30] sm:$0xff]
    %v3041 = vld [vmem:[%s3033 + $0x38] sm:$0xff]
    %v3050 = vunpack.c.l.b16 %v3034
    %v3051 = vunpack.c.h.b16 %v3034
    %v3052 = vunpack.c.l.b16 %v3035
    %v3053 = vunpack.c.h.b16 %v3035
    %v3054 = vunpack.c.l.b16 %v3036
    %v3055 = vunpack.c.h.b16 %v3036
    %v3056 = vunpack.c.l.b16 %v3037
    %v3057 = vunpack.c.h.b16 %v3037
    %v3058 = vunpack.c.l.b16 %v3038
    %v3059 = vunpack.c.h.b16 %v3038
    %v3060 = vunpack.c.l.b16 %v3039
    %v3061 = vunpack.c.h.b16 %v3039
    %v3062 = vunpack.c.l.b16 %v3040
    %v3063 = vunpack.c.h.b16 %v3040
    %v3064 = vunpack.c.l.b16 %v3041
    %v3065 = vunpack.c.h.b16 %v3041
    %v3066 = vpack.c.b16 %v3054, %v3050
    %v3067 = vpack.c.b16 %v3055, %v3051
    %v3068 = vpack.c.b16 %v3056, %v3052
    %v3069 = vpack.c.b16 %v3057, %v3053
    %v3070 = vpack.c.b16 %v3062, %v3058
    %v3071 = vpack.c.b16 %v3063, %v3059
    %v3072 = vpack.c.b16 %v3064, %v3060
    %v3073 = vpack.c.b16 %v3065, %v3061
    %v3083 = vsel %vm2471, %v3032, 0
    %3085 = vmatprep.subr.bf16.mxu0 %v3067
    %3086 = vmatpush1.bf16.msra.mxu0 %v3066
    %3087 = vmatprep.subr.bf16.mxu0 %v3071
    %3088 = vmatpush1.bf16.msra.mxu0 %v3070
    %3089 = vmatprep.subr.bf16.mxu0 0
    %3090 = vmatpush1.bf16.msra.mxu0 0
    %3091 = vmatprep.subr.bf16.mxu0 0
    %3092 = vmatpush1.bf16.msra.mxu0 0
    %3093 = vmatprep.subr.bf16.mxu0 0
    %3094 = vmatpush1.bf16.msra.mxu0 0
    %3095 = vmatprep.subr.bf16.mxu0 0
    %3096 = vmatpush1.bf16.msra.mxu0 0
    %3097 = vmatprep.subr.bf16.mxu0 0
    %3098 = vmatpush1.bf16.msra.mxu0 0
    %3099 = vmatprep.subr.bf16.mxu0 0
    %3100 = vmatpush1.bf16.msra.mxu0 0
    %3101 = vmatprep.subr.bf16.mxu0 0
    %3102 = vmatpush1.bf16.msra.mxu0 0
    %3103 = vmatprep.subr.bf16.mxu0 0
    %3104 = vmatpush1.bf16.msra.mxu0 0
    %3105 = vmatprep.subr.bf16.mxu0 0
    %3106 = vmatpush1.bf16.msra.mxu0 0
    %3107 = vmatprep.subr.bf16.mxu0 0
    %3108 = vmatpush1.bf16.msra.mxu0 0
    %3109 = vmatprep.subr.bf16.mxu0 0
    %3110 = vmatpush1.bf16.msra.mxu0 0
    %3111 = vmatprep.subr.bf16.mxu0 0
    %3112 = vmatpush1.bf16.msra.mxu0 0
    %3113 = vmatprep.subr.bf16.mxu0 0
    %3114 = vmatpush1.bf16.msra.mxu0 0
    %3115 = vmatprep.subr.bf16.mxu0 0
    %3116 = vmatpush1.bf16.msra.mxu0 0
    %3117 = vmatprep.mubr.bf16.mxu0 0
    %3118 = vmatmul.mubr.bf16.gmra.mrb[0].mxu0 %v3083
    %v3119 = vpop.f32.mrb[0].mxu0
    %v3120 = vadd.f32 0.0, %v3119
    %v3121 = vpop.f32.mrb[0].mxu0
    %v3122 = vadd.f32 0.0, %v3121
    %v3123 = vpop.f32.mrb[0].mxu0
    %v3124 = vpop.f32.mrb[0].mxu0
    %3125 = vdwg.mxu0
    %3126 = vmatprep.subr.bf16.mxu0 %v3069
    %3127 = vmatpush1.bf16.msra.mxu0 %v3068
    %3128 = vmatprep.subr.bf16.mxu0 %v3073
    %3129 = vmatpush1.bf16.msra.mxu0 %v3072
    %3130 = vmatprep.subr.bf16.mxu0 0
    %3131 = vmatpush1.bf16.msra.mxu0 0
    %3132 = vmatprep.subr.bf16.mxu0 0
    %3133 = vmatpush1.bf16.msra.mxu0 0
    %3134 = vmatprep.subr.bf16.mxu0 0
    %3135 = vmatpush1.bf16.msra.mxu0 0
    %3136 = vmatprep.subr.bf16.mxu0 0
    %3137 = vmatpush1.bf16.msra.mxu0 0
    %3138 = vmatprep.subr.bf16.mxu0 0
    %3139 = vmatpush1.bf16.msra.mxu0 0
    %3140 = vmatprep.subr.bf16.mxu0 0
    %3141 = vmatpush1.bf16.msra.mxu0 0
    %3142 = vmatprep.subr.bf16.mxu0 0
    %3143 = vmatpush1.bf16.msra.mxu0 0
    %3144 = vmatprep.subr.bf16.mxu0 0
    %3145 = vmatpush1.bf16.msra.mxu0 0
    %3146 = vmatprep.subr.bf16.mxu0 0
    %3147 = vmatpush1.bf16.msra.mxu0 0
    %3148 = vmatprep.subr.bf16.mxu0 0
    %3149 = vmatpush1.bf16.msra.mxu0 0
    %3150 = vmatprep.subr.bf16.mxu0 0
    %3151 = vmatpush1.bf16.msra.mxu0 0
    %3152 = vmatprep.subr.bf16.mxu0 0
    %3153 = vmatpush1.bf16.msra.mxu0 0
    %3154 = vmatprep.subr.bf16.mxu0 0
    %3155 = vmatpush1.bf16.msra.mxu0 0
    %3156 = vmatprep.subr.bf16.mxu0 0
    %3157 = vmatpush1.bf16.msra.mxu0 0
    %3158 = vmatprep.mubr.bf16.mxu0 0
    %3159 = vmatmul.mubr.bf16.gmra.mrb[0].mxu0 %v3083
    %v3160 = vpop.f32.mrb[0].mxu0
    %v3161 = vadd.f32 0.0, %v3160
    %v3162 = vpop.f32.mrb[0].mxu0
    %v3163 = vadd.f32 0.0, %v3162
    %v3164 = vpop.f32.mrb[0].mxu0
    %v3165 = vpop.f32.mrb[0].mxu0
    %3166 = vdwg.mxu0
    %v3167 = vadd.f32 %v3026, %v3120
    %v3168 = vadd.f32 %v3027, %v3122
    %v3169 = vadd.f32 %v3028, %v3161
    %v3170 = vadd.f32 %v3029, %v3163
    %s3171 = scalar_lea.vmem [#allocation6], 5
    %v3172 = vld [vmem:[%s3171] ss:$16 sm:$0x3]
    %v3173 = vpack.c.bf16 %v3172, %v3172
    %s3174 = scalar_lea.vmem [#allocation7], 320
    %v3175 = vld [vmem:[%s3174] sm:$0xff]
    %v3176 = vld [vmem:[%s3174 + $0x8] sm:$0xff]
    %v3177 = vld [vmem:[%s3174 + $0x10] sm:$0xff]
    %v3178 = vld [vmem:[%s3174 + $0x18] sm:$0xff]
    %v3179 = vld [vmem:[%s3174 + $0x20] sm:$0xff]
    %v3180 = vld [vmem:[%s3174 + $0x28] sm:$0xff]
    %v3181 = vld [vmem:[%s3174 + $0x30] sm:$0xff]
    %v3182 = vld [vmem:[%s3174 + $0x38] sm:$0xff]
    %v3191 = vunpack.c.l.b16 %v3175
    %v3192 = vunpack.c.h.b16 %v3175
    %v3193 = vunpack.c.l.b16 %v3176
    %v3194 = vunpack.c.h.b16 %v3176
    %v3195 = vunpack.c.l.b16 %v3177
    %v3196 = vunpack.c.h.b16 %v3177
    %v3197 = vunpack.c.l.b16 %v3178
    %v3198 = vunpack.c.h.b16 %v3178
    %v3199 = vunpack.c.l.b16 %v3179
    %v3200 = vunpack.c.h.b16 %v3179
    %v3201 = vunpack.c.l.b16 %v3180
    %v3202 = vunpack.c.h.b16 %v3180
    %v3203 = vunpack.c.l.b16 %v3181
    %v3204 = vunpack.c.h.b16 %v3181
    %v3205 = vunpack.c.l.b16 %v3182
    %v3206 = vunpack.c.h.b16 %v3182
    %v3207 = vpack.c.b16 %v3195, %v3191
    %v3208 = vpack.c.b16 %v3196, %v3192
    %v3209 = vpack.c.b16 %v3197, %v3193
    %v3210 = vpack.c.b16 %v3198, %v3194
    %v3211 = vpack.c.b16 %v3203, %v3199
    %v3212 = vpack.c.b16 %v3204, %v3200
    %v3213 = vpack.c.b16 %v3205, %v3201
    %v3214 = vpack.c.b16 %v3206, %v3202
    %v3224 = vsel %vm2471, %v3173, 0
    %3226 = vmatprep.subr.bf16.mxu0 %v3208
    %3227 = vmatpush1.bf16.msra.mxu0 %v3207
    %3228 = vmatprep.subr.bf16.mxu0 %v3212
    %3229 = vmatpush1.bf16.msra.mxu0 %v3211
    %3230 = vmatprep.subr.bf16.mxu0 0
    %3231 = vmatpush1.bf16.msra.mxu0 0
    %3232 = vmatprep.subr.bf16.mxu0 0
    %3233 = vmatpush1.bf16.msra.mxu0 0
    %3234 = vmatprep.subr.bf16.mxu0 0
    %3235 = vmatpush1.bf16.msra.mxu0 0
    %3236 = vmatprep.subr.bf16.mxu0 0
    %3237 = vmatpush1.bf16.msra.mxu0 0
    %3238 = vmatprep.subr.bf16.mxu0 0
    %3239 = vmatpush1.bf16.msra.mxu0 0
    %3240 = vmatprep.subr.bf16.mxu0 0
    %3241 = vmatpush1.bf16.msra.mxu0 0
    %3242 = vmatprep.subr.bf16.mxu0 0
    %3243 = vmatpush1.bf16.msra.mxu0 0
    %3244 = vmatprep.subr.bf16.mxu0 0
    %3245 = vmatpush1.bf16.msra.mxu0 0
    %3246 = vmatprep.subr.bf16.mxu0 0
    %3247 = vmatpush1.bf16.msra.mxu0 0
    %3248 = vmatprep.subr.bf16.mxu0 0
    %3249 = vmatpush1.bf16.msra.mxu0 0
    %3250 = vmatprep.subr.bf16.mxu0 0
    %3251 = vmatpush1.bf16.msra.mxu0 0
    %3252 = vmatprep.subr.bf16.mxu0 0
    %3253 = vmatpush1.bf16.msra.mxu0 0
    %3254 = vmatprep.subr.bf16.mxu0 0
    %3255 = vmatpush1.bf16.msra.mxu0 0
    %3256 = vmatprep.subr.bf16.mxu0 0
    %3257 = vmatpush1.bf16.msra.mxu0 0
    %3258 = vmatprep.mubr.bf16.mxu0 0
    %3259 = vmatmul.mubr.bf16.gmra.mrb[0].mxu0 %v3224
    %v3260 = vpop.f32.mrb[0].mxu0
    %v3261 = vadd.f32 0.0, %v3260
    %v3262 = vpop.f32.mrb[0].mxu0
    %v3263 = vadd.f32 0.0, %v3262
    %v3264 = vpop.f32.mrb[0].mxu0
    %v3265 = vpop.f32.mrb[0].mxu0
    %3266 = vdwg.mxu0
    %3267 = vmatprep.subr.bf16.mxu0 %v3210
    %3268 = vmatpush1.bf16.msra.mxu0 %v3209
    %3269 = vmatprep.subr.bf16.mxu0 %v3214
    %3270 = vmatpush1.bf16.msra.mxu0 %v3213
    %3271 = vmatprep.subr.bf16.mxu0 0
    %3272 = vmatpush1.bf16.msra.mxu0 0
    %3273 = vmatprep.subr.bf16.mxu0 0
    %3274 = vmatpush1.bf16.msra.mxu0 0
    %3275 = vmatprep.subr.bf16.mxu0 0
    %3276 = vmatpush1.bf16.msra.mxu0 0
    %3277 = vmatprep.subr.bf16.mxu0 0
    %3278 = vmatpush1.bf16.msra.mxu0 0
    %3279 = vmatprep.subr.bf16.mxu0 0
    %3280 = vmatpush1.bf16.msra.mxu0 0
    %3281 = vmatprep.subr.bf16.mxu0 0
    %3282 = vmatpush1.bf16.msra.mxu0 0
    %3283 = vmatprep.subr.bf16.mxu0 0
    %3284 = vmatpush1.bf16.msra.mxu0 0
    %3285 = vmatprep.subr.bf16.mxu0 0
    %3286 = vmatpush1.bf16.msra.mxu0 0
    %3287 = vmatprep.subr.bf16.mxu0 0
    %3288 = vmatpush1.bf16.msra.mxu0 0
    %3289 = vmatprep.subr.bf16.mxu0 0
    %3290 = vmatpush1.bf16.msra.mxu0 0
    %3291 = vmatprep.subr.bf16.mxu0 0
    %3292 = vmatpush1.bf16.msra.mxu0 0
    %3293 = vmatprep.subr.bf16.mxu0 0
    %3294 = vmatpush1.bf16.msra.mxu0 0
    %3295 = vmatprep.subr.bf16.mxu0 0
    %3296 = vmatpush1.bf16.msra.mxu0 0
    %3297 = vmatprep.subr.bf16.mxu0 0
    %3298 = vmatpush1.bf16.msra.mxu0 0
    %3299 = vmatprep.mubr.bf16.mxu0 0
    %3300 = vmatmul.mubr.bf16.gmra.mrb[0].mxu0 %v3224
    %v3301 = vpop.f32.mrb[0].mxu0
    %v3302 = vadd.f32 0.0, %v3301
    %v3303 = vpop.f32.mrb[0].mxu0
    %v3304 = vadd.f32 0.0, %v3303
    %v3305 = vpop.f32.mrb[0].mxu0
    %v3306 = vpop.f32.mrb[0].mxu0
    %3307 = vdwg.mxu0
    %v3308 = vadd.f32 %v3167, %v3261
    %v3309 = vadd.f32 %v3168, %v3263
    %v3310 = vadd.f32 %v3169, %v3302
    %v3311 = vadd.f32 %v3170, %v3304
    %s3312 = scalar_lea.vmem [#allocation6], 6
    %v3313 = vld [vmem:[%s3312] ss:$16 sm:$0x3]
    %v3314 = vpack.c.bf16 %v3313, %v3313
    %s3315 = scalar_lea.vmem [#allocation7], 384
    %v3316 = vld [vmem:[%s3315] sm:$0xff]
    %v3317 = vld [vmem:[%s3315 + $0x8] sm:$0xff]
    %v3318 = vld [vmem:[%s3315 + $0x10] sm:$0xff]
    %v3319 = vld [vmem:[%s3315 + $0x18] sm:$0xff]
    %v3320 = vld [vmem:[%s3315 + $0x20] sm:$0xff]
    %v3321 = vld [vmem:[%s3315 + $0x28] sm:$0xff]
    %v3322 = vld [vmem:[%s3315 + $0x30] sm:$0xff]
    %v3323 = vld [vmem:[%s3315 + $0x38] sm:$0xff]
    %v3332 = vunpack.c.l.b16 %v3316
    %v3333 = vunpack.c.h.b16 %v3316
    %v3334 = vunpack.c.l.b16 %v3317
    %v3335 = vunpack.c.h.b16 %v3317
    %v3336 = vunpack.c.l.b16 %v3318
    %v3337 = vunpack.c.h.b16 %v3318
    %v3338 = vunpack.c.l.b16 %v3319
    %v3339 = vunpack.c.h.b16 %v3319
    %v3340 = vunpack.c.l.b16 %v3320
    %v3341 = vunpack.c.h.b16 %v3320
    %v3342 = vunpack.c.l.b16 %v3321
    %v3343 = vunpack.c.h.b16 %v3321
    %v3344 = vunpack.c.l.b16 %v3322
    %v3345 = vunpack.c.h.b16 %v3322
    %v3346 = vunpack.c.l.b16 %v3323
    %v3347 = vunpack.c.h.b16 %v3323
    %v3348 = vpack.c.b16 %v3336, %v3332
    %v3349 = vpack.c.b16 %v3337, %v3333
    %v3350 = vpack.c.b16 %v3338, %v3334
    %v3351 = vpack.c.b16 %v3339, %v3335
    %v3352 = vpack.c.b16 %v3344, %v3340
    %v3353 = vpack.c.b16 %v3345, %v3341
    %v3354 = vpack.c.b16 %v3346, %v3342
    %v3355 = vpack.c.b16 %v3347, %v3343
    %v3365 = vsel %vm2471, %v3314, 0
    %3367 = vmatprep.subr.bf16.mxu0 %v3349
    %3368 = vmatpush1.bf16.msra.mxu0 %v3348
    %3369 = vmatprep.subr.bf16.mxu0 %v3353
    %3370 = vmatpush1.bf16.msra.mxu0 %v3352
    %3371 = vmatprep.subr.bf16.mxu0 0
    %3372 = vmatpush1.bf16.msra.mxu0 0
    %3373 = vmatprep.subr.bf16.mxu0 0
    %3374 = vmatpush1.bf16.msra.mxu0 0
    %3375 = vmatprep.subr.bf16.mxu0 0
    %3376 = vmatpush1.bf16.msra.mxu0 0
    %3377 = vmatprep.subr.bf16.mxu0 0
    %3378 = vmatpush1.bf16.msra.mxu0 0
    %3379 = vmatprep.subr.bf16.mxu0 0
    %3380 = vmatpush1.bf16.msra.mxu0 0
    %3381 = vmatprep.subr.bf16.mxu0 0
    %3382 = vmatpush1.bf16.msra.mxu0 0
    %3383 = vmatprep.subr.bf16.mxu0 0
    %3384 = vmatpush1.bf16.msra.mxu0 0
    %3385 = vmatprep.subr.bf16.mxu0 0
    %3386 = vmatpush1.bf16.msra.mxu0 0
    %3387 = vmatprep.subr.bf16.mxu0 0
    %3388 = vmatpush1.bf16.msra.mxu0 0
    %3389 = vmatprep.subr.bf16.mxu0 0
    %3390 = vmatpush1.bf16.msra.mxu0 0
    %3391 = vmatprep.subr.bf16.mxu0 0
    %3392 = vmatpush1.bf16.msra.mxu0 0
    %3393 = vmatprep.subr.bf16.mxu0 0
    %3394 = vmatpush1.bf16.msra.mxu0 0
    %3395 = vmatprep.subr.bf16.mxu0 0
    %3396 = vmatpush1.bf16.msra.mxu0 0
    %3397 = vmatprep.subr.bf16.mxu0 0
    %3398 = vmatpush1.bf16.msra.mxu0 0
    %3399 = vmatprep.mubr.bf16.mxu0 0
    %3400 = vmatmul.mubr.bf16.gmra.mrb[0].mxu0 %v3365
    %v3401 = vpop.f32.mrb[0].mxu0
    %v3402 = vadd.f32 0.0, %v3401
    %v3403 = vpop.f32.mrb[0].mxu0
    %v3404 = vadd.f32 0.0, %v3403
    %v3405 = vpop.f32.mrb[0].mxu0
    %v3406 = vpop.f32.mrb[0].mxu0
    %3407 = vdwg.mxu0
    %3408 = vmatprep.subr.bf16.mxu0 %v3351
    %3409 = vmatpush1.bf16.msra.mxu0 %v3350
    %3410 = vmatprep.subr.bf16.mxu0 %v3355
    %3411 = vmatpush1.bf16.msra.mxu0 %v3354
    %3412 = vmatprep.subr.bf16.mxu0 0
    %3413 = vmatpush1.bf16.msra.mxu0 0
    %3414 = vmatprep.subr.bf16.mxu0 0
    %3415 = vmatpush1.bf16.msra.mxu0 0
    %3416 = vmatprep.subr.bf16.mxu0 0
    %3417 = vmatpush1.bf16.msra.mxu0 0
    %3418 = vmatprep.subr.bf16.mxu0 0
    %3419 = vmatpush1.bf16.msra.mxu0 0
    %3420 = vmatprep.subr.bf16.mxu0 0
    %3421 = vmatpush1.bf16.msra.mxu0 0
    %3422 = vmatprep.subr.bf16.mxu0 0
    %3423 = vmatpush1.bf16.msra.mxu0 0
    %3424 = vmatprep.subr.bf16.mxu0 0
    %3425 = vmatpush1.bf16.msra.mxu0 0
    %3426 = vmatprep.subr.bf16.mxu0 0
    %3427 = vmatpush1.bf16.msra.mxu0 0
    %3428 = vmatprep.subr.bf16.mxu0 0
    %3429 = vmatpush1.bf16.msra.mxu0 0
    %3430 = vmatprep.subr.bf16.mxu0 0
    %3431 = vmatpush1.bf16.msra.mxu0 0
    %3432 = vmatprep.subr.bf16.mxu0 0
    %3433 = vmatpush1.bf16.msra.mxu0 0
    %3434 = vmatprep.subr.bf16.mxu0 0
    %3435 = vmatpush1.bf16.msra.mxu0 0
    %3436 = vmatprep.subr.bf16.mxu0 0
    %3437 = vmatpush1.bf16.msra.mxu0 0
    %3438 = vmatprep.subr.bf16.mxu0 0
    %3439 = vmatpush1.bf16.msra.mxu0 0
    %3440 = vmatprep.mubr.bf16.mxu0 0
    %3441 = vmatmul.mubr.bf16.gmra.mrb[0].mxu0 %v3365
    %v3442 = vpop.f32.mrb[0].mxu0
    %v3443 = vadd.f32 0.0, %v3442
    %v3444 = vpop.f32.mrb[0].mxu0
    %v3445 = vadd.f32 0.0, %v3444
    %v3446 = vpop.f32.mrb[0].mxu0
    %v3447 = vpop.f32.mrb[0].mxu0
    %3448 = vdwg.mxu0
    %v3449 = vadd.f32 %v3308, %v3402
    %v3450 = vadd.f32 %v3309, %v3404
    %v3451 = vadd.f32 %v3310, %v3443
    %v3452 = vadd.f32 %v3311, %v3445
    %s3453 = scalar_lea.vmem [#allocation6], 7
    %v3454 = vld [vmem:[%s3453] ss:$16 sm:$0x3]
    %v3455 = vpack.c.bf16 %v3454, %v3454
    %s3456 = scalar_lea.vmem [#allocation7], 448
    %v3457 = vld [vmem:[%s3456] sm:$0xff]
    %v3458 = vld [vmem:[%s3456 + $0x8] sm:$0xff]
    %v3459 = vld [vmem:[%s3456 + $0x10] sm:$0xff]
    %v3460 = vld [vmem:[%s3456 + $0x18] sm:$0xff]
    %v3461 = vld [vmem:[%s3456 + $0x20] sm:$0xff]
    %v3462 = vld [vmem:[%s3456 + $0x28] sm:$0xff]
    %v3463 = vld [vmem:[%s3456 + $0x30] sm:$0xff]
    %v3464 = vld [vmem:[%s3456 + $0x38] sm:$0xff]
    %v3473 = vunpack.c.l.b16 %v3457
    %v3474 = vunpack.c.h.b16 %v3457
    %v3475 = vunpack.c.l.b16 %v3458
    %v3476 = vunpack.c.h.b16 %v3458
    %v3477 = vunpack.c.l.b16 %v3459
    %v3478 = vunpack.c.h.b16 %v3459
    %v3479 = vunpack.c.l.b16 %v3460
    %v3480 = vunpack.c.h.b16 %v3460
    %v3481 = vunpack.c.l.b16 %v3461
    %v3482 = vunpack.c.h.b16 %v3461
    %v3483 = vunpack.c.l.b16 %v3462
    %v3484 = vunpack.c.h.b16 %v3462
    %v3485 = vunpack.c.l.b16 %v3463
    %v3486 = vunpack.c.h.b16 %v3463
    %v3487 = vunpack.c.l.b16 %v3464
    %v3488 = vunpack.c.h.b16 %v3464
    %v3489 = vpack.c.b16 %v3477, %v3473
    %v3490 = vpack.c.b16 %v3478, %v3474
    %v3491 = vpack.c.b16 %v3479, %v3475
    %v3492 = vpack.c.b16 %v3480, %v3476
    %v3493 = vpack.c.b16 %v3485, %v3481
    %v3494 = vpack.c.b16 %v3486, %v3482
    %v3495 = vpack.c.b16 %v3487, %v3483
    %v3496 = vpack.c.b16 %v3488, %v3484
    %v3506 = vsel %vm2471, %v3455, 0
    %3508 = vmatprep.subr.bf16.mxu0 %v3490
    %3509 = vmatpush1.bf16.msra.mxu0 %v3489
    %3510 = vmatprep.subr.bf16.mxu0 %v3494
    %3511 = vmatpush1.bf16.msra.mxu0 %v3493
    %3512 = vmatprep.subr.bf16.mxu0 0
    %3513 = vmatpush1.bf16.msra.mxu0 0
    %3514 = vmatprep.subr.bf16.mxu0 0
    %3515 = vmatpush1.bf16.msra.mxu0 0
    %3516 = vmatprep.subr.bf16.mxu0 0
    %3517 = vmatpush1.bf16.msra.mxu0 0
    %3518 = vmatprep.subr.bf16.mxu0 0
    %3519 = vmatpush1.bf16.msra.mxu0 0
    %3520 = vmatprep.subr.bf16.mxu0 0
    %3521 = vmatpush1.bf16.msra.mxu0 0
    %3522 = vmatprep.subr.bf16.mxu0 0
    %3523 = vmatpush1.bf16.msra.mxu0 0
    %3524 = vmatprep.subr.bf16.mxu0 0
    %3525 = vmatpush1.bf16.msra.mxu0 0
    %3526 = vmatprep.subr.bf16.mxu0 0
    %3527 = vmatpush1.bf16.msra.mxu0 0
    %3528 = vmatprep.subr.bf16.mxu0 0
    %3529 = vmatpush1.bf16.msra.mxu0 0
    %3530 = vmatprep.subr.bf16.mxu0 0
    %3531 = vmatpush1.bf16.msra.mxu0 0
    %3532 = vmatprep.subr.bf16.mxu0 0
    %3533 = vmatpush1.bf16.msra.mxu0 0
    %3534 = vmatprep.subr.bf16.mxu0 0
    %3535 = vmatpush1.bf16.msra.mxu0 0
    %3536 = vmatprep.subr.bf16.mxu0 0
    %3537 = vmatpush1.bf16.msra.mxu0 0
    %3538 = vmatprep.subr.bf16.mxu0 0
    %3539 = vmatpush1.bf16.msra.mxu0 0
    %3540 = vmatprep.mubr.bf16.mxu0 0
    %3541 = vmatmul.mubr.bf16.gmra.mrb[0].mxu0 %v3506
    %v3542 = vpop.f32.mrb[0].mxu0
    %v3543 = vadd.f32 0.0, %v3542
    %v3544 = vpop.f32.mrb[0].mxu0
    %v3545 = vadd.f32 0.0, %v3544
    %v3546 = vpop.f32.mrb[0].mxu0
    %v3547 = vpop.f32.mrb[0].mxu0
    %3548 = vdwg.mxu0
    %3549 = vmatprep.subr.bf16.mxu0 %v3492
    %3550 = vmatpush1.bf16.msra.mxu0 %v3491
    %3551 = vmatprep.subr.bf16.mxu0 %v3496
    %3552 = vmatpush1.bf16.msra.mxu0 %v3495
    %3553 = vmatprep.subr.bf16.mxu0 0
    %3554 = vmatpush1.bf16.msra.mxu0 0
    %3555 = vmatprep.subr.bf16.mxu0 0
    %3556 = vmatpush1.bf16.msra.mxu0 0
    %3557 = vmatprep.subr.bf16.mxu0 0
    %3558 = vmatpush1.bf16.msra.mxu0 0
    %3559 = vmatprep.subr.bf16.mxu0 0
    %3560 = vmatpush1.bf16.msra.mxu0 0
    %3561 = vmatprep.subr.bf16.mxu0 0
    %3562 = vmatpush1.bf16.msra.mxu0 0
    %3563 = vmatprep.subr.bf16.mxu0 0
    %3564 = vmatpush1.bf16.msra.mxu0 0
    %3565 = vmatprep.subr.bf16.mxu0 0
    %3566 = vmatpush1.bf16.msra.mxu0 0
    %3567 = vmatprep.subr.bf16.mxu0 0
    %3568 = vmatpush1.bf16.msra.mxu0 0
    %3569 = vmatprep.subr.bf16.mxu0 0
    %3570 = vmatpush1.bf16.msra.mxu0 0
    %3571 = vmatprep.subr.bf16.mxu0 0
    %3572 = vmatpush1.bf16.msra.mxu0 0
    %3573 = vmatprep.subr.bf16.mxu0 0
    %3574 = vmatpush1.bf16.msra.mxu0 0
    %3575 = vmatprep.subr.bf16.mxu0 0
    %3576 = vmatpush1.bf16.msra.mxu0 0
    %3577 = vmatprep.subr.bf16.mxu0 0
    %3578 = vmatpush1.bf16.msra.mxu0 0
    %3579 = vmatprep.subr.bf16.mxu0 0
    %3580 = vmatpush1.bf16.msra.mxu0 0
    %3581 = vmatprep.mubr.bf16.mxu0 0
    %3582 = vmatmul.mubr.bf16.gmra.mrb[0].mxu0 %v3506
    %v3583 = vpop.f32.mrb[0].mxu0
    %v3584 = vadd.f32 0.0, %v3583
    %v3585 = vpop.f32.mrb[0].mxu0
    %v3586 = vadd.f32 0.0, %v3585
    %v3587 = vpop.f32.mrb[0].mxu0
    %v3588 = vpop.f32.mrb[0].mxu0
    %3589 = vdwg.mxu0
    %v3590 = vadd.f32 %v3449, %v3543
    %v3591 = vadd.f32 %v3450, %v3545
    %v3592 = vadd.f32 %v3451, %v3584
    %v3593 = vadd.f32 %v3452, %v3586
    %v3594 = vld [vmem:[%s8] sm:$0xf]
    %v3596 = vlaneseq
    %v3597 = vshrl.u32 %v3596, 7
    %v3598 = vsub.s32 0, %v3597
    %v3599 = vrot.slane %v3594, %v3598
    %v3600 = vlaneseq
    %v3601 = vshrl.u32 %v3600, 7
    %v3602 = vsub.s32 1, %v3601
    %v3603 = vrot.slane %v3594, %v3602
    %v3604 = vlaneseq
    %v3605 = vshrl.u32 %v3604, 7
    %v3606 = vsub.s32 2, %v3605
    %v3607 = vrot.slane %v3594, %v3606
    %v3608 = vlaneseq
    %v3609 = vshrl.u32 %v3608, 7
    %v3610 = vsub.s32 3, %v3609
    %v3611 = vrot.slane %v3594, %v3610
    %v3616 = vadd.f32 %v3590, %v3599
    %v3617 = vadd.f32 %v3591, %v3603
    %v3618 = vadd.f32 %v3592, %v3607
    %v3619 = vadd.f32 %v3593, %v3611
    %v3620 = vpack.c.bf16 %v3616, %v3616
    %v3621 = vpack.c.bf16 %v3617, %v3617
    %v3622 = vpack.c.bf16 %v3618, %v3618
    %v3623 = vpack.c.bf16 %v3619, %v3619
    %v3624 = vld [vmem:[%s9] sm:$0xf]
    %v3625 = vld [vmem:[%s9 + $0x4] sm:$0xf]
    %v3626 = vld [vmem:[%s9 + $0x8] sm:$0xf]
    %v3627 = vld [vmem:[%s9 + $0xc] sm:$0xf]
    %v3628 = vld [vmem:[%s9 + $0x10] sm:$0xf]
    %v3629 = vld [vmem:[%s9 + $0x14] sm:$0xf]
    %v3630 = vld [vmem:[%s9 + $0x18] sm:$0xf]
    %v3631 = vld [vmem:[%s9 + $0x1c] sm:$0xf]
    %v3632 = vld [vmem:[%s9 + $0x20] sm:$0xf]
    %v3633 = vld [vmem:[%s9 + $0x24] sm:$0xf]
    %v3634 = vld [vmem:[%s9 + $0x28] sm:$0xf]
    %v3635 = vld [vmem:[%s9 + $0x2c] sm:$0xf]
    %v3636 = vld [vmem:[%s9 + $0x30] sm:$0xf]
    %v3637 = vld [vmem:[%s9 + $0x34] sm:$0xf]
    %v3638 = vld [vmem:[%s9 + $0x38] sm:$0xf]
    %v3639 = vld [vmem:[%s9 + $0x3c] sm:$0xf]
    %v3640 = vld [vmem:[%s9 + $0x40] sm:$0xf]
    %v3641 = vld [vmem:[%s9 + $0x44] sm:$0xf]
    %v3642 = vld [vmem:[%s9 + $0x48] sm:$0xf]
    %v3643 = vld [vmem:[%s9 + $0x4c] sm:$0xf]
    %v3644 = vld [vmem:[%s9 + $0x50] sm:$0xf]
    %v3645 = vld [vmem:[%s9 + $0x54] sm:$0xf]
    %v3646 = vld [vmem:[%s9 + $0x58] sm:$0xf]
    %v3647 = vld [vmem:[%s9 + $0x5c] sm:$0xf]
    %v3648 = vld [vmem:[%s9 + $0x60] sm:$0xf]
    %v3649 = vld [vmem:[%s9 + $0x64] sm:$0xf]
    %v3650 = vld [vmem:[%s9 + $0x68] sm:$0xf]
    %v3651 = vld [vmem:[%s9 + $0x6c] sm:$0xf]
    %v3652 = vld [vmem:[%s9 + $0x70] sm:$0xf]
    %v3653 = vld [vmem:[%s9 + $0x74] sm:$0xf]
    %v3654 = vld [vmem:[%s9 + $0x78] sm:$0xf]
    %v3655 = vld [vmem:[%s9 + $0x7c] sm:$0xf]
    %v3656 = vld [vmem:[%s9 + $0x80] sm:$0xf]
    %v3657 = vld [vmem:[%s9 + $0x84] sm:$0xf]
    %v3658 = vld [vmem:[%s9 + $0x88] sm:$0xf]
    %v3659 = vld [vmem:[%s9 + $0x8c] sm:$0xf]
    %v3660 = vld [vmem:[%s9 + $0x90] sm:$0xf]
    %v3661 = vld [vmem:[%s9 + $0x94] sm:$0xf]
    %v3662 = vld [vmem:[%s9 + $0x98] sm:$0xf]
    %v3663 = vld [vmem:[%s9 + $0x9c] sm:$0xf]
    %v3664 = vld [vmem:[%s9 + $0xa0] sm:$0xf]
    %v3665 = vld [vmem:[%s9 + $0xa4] sm:$0xf]
    %v3666 = vld [vmem:[%s9 + $0xa8] sm:$0xf]
    %v3667 = vld [vmem:[%s9 + $0xac] sm:$0xf]
    %v3668 = vld [vmem:[%s9 + $0xb0] sm:$0xf]
    %v3669 = vld [vmem:[%s9 + $0xb4] sm:$0xf]
    %v3670 = vld [vmem:[%s9 + $0xb8] sm:$0xf]
    %v3671 = vld [vmem:[%s9 + $0xbc] sm:$0xf]
    %v3672 = vld [vmem:[%s9 + $0xc0] sm:$0xf]
    %v3673 = vld [vmem:[%s9 + $0xc4] sm:$0xf]
    %v3674 = vld [vmem:[%s9 + $0xc8] sm:$0xf]
    %v3675 = vld [vmem:[%s9 + $0xcc] sm:$0xf]
    %v3676 = vld [vmem:[%s9 + $0xd0] sm:$0xf]
    %v3677 = vld [vmem:[%s9 + $0xd4] sm:$0xf]
    %v3678 = vld [vmem:[%s9 + $0xd8] sm:$0xf]
    %v3679 = vld [vmem:[%s9 + $0xdc] sm:$0xf]
    %v3680 = vld [vmem:[%s9 + $0xe0] sm:$0xf]
    %v3681 = vld [vmem:[%s9 + $0xe4] sm:$0xf]
    %v3682 = vld [vmem:[%s9 + $0xe8] sm:$0xf]
    %v3683 = vld [vmem:[%s9 + $0xec] sm:$0xf]
    %v3684 = vld [vmem:[%s9 + $0xf0] sm:$0xf]
    %v3685 = vld [vmem:[%s9 + $0xf4] sm:$0xf]
    %v3686 = vld [vmem:[%s9 + $0xf8] sm:$0xf]
    %v3687 = vld [vmem:[%s9 + $0xfc] sm:$0xf]
    %v3688 = vld [vmem:[%s10] sm:$0x1]
    %v3690 = vlaneseq
    %v3691 = vshrl.u32 %v3690, 7
    %v3692 = vsub.s32 0, %v3691
    %v3693 = vrot.slane %v3688, %v3692
    %v3759 = vunpack.c.l.b16 %v3624
    %v3760 = vunpack.c.l.b16 %v3625
    %v3761 = vunpack.c.l.b16 %v3626
    %v3762 = vunpack.c.l.b16 %v3627
    %v3763 = vunpack.c.l.b16 %v3628
    %v3764 = vunpack.c.l.b16 %v3629
    %v3765 = vunpack.c.l.b16 %v3630
    %v3766 = vunpack.c.l.b16 %v3631
    %v3767 = vunpack.c.l.b16 %v3632
    %v3768 = vunpack.c.l.b16 %v3633
    %v3769 = vunpack.c.l.b16 %v3634
    %v3770 = vunpack.c.l.b16 %v3635
    %v3771 = vunpack.c.l.b16 %v3636
    %v3772 = vunpack.c.l.b16 %v3637
    %v3773 = vunpack.c.l.b16 %v3638
    %v3774 = vunpack.c.l.b16 %v3639
    %v3775 = vunpack.c.l.b16 %v3640
    %v3776 = vunpack.c.l.b16 %v3641
    %v3777 = vunpack.c.l.b16 %v3642
    %v3778 = vunpack.c.l.b16 %v3643
    %v3779 = vunpack.c.l.b16 %v3644
    %v3780 = vunpack.c.l.b16 %v3645
    %v3781 = vunpack.c.l.b16 %v3646
    %v3782 = vunpack.c.l.b16 %v3647
    %v3783 = vunpack.c.l.b16 %v3648
    %v3784 = vunpack.c.l.b16 %v3649
    %v3785 = vunpack.c.l.b16 %v3650
    %v3786 = vunpack.c.l.b16 %v3651
    %v3787 = vunpack.c.l.b16 %v3652
    %v3788 = vunpack.c.l.b16 %v3653
    %v3789 = vunpack.c.l.b16 %v3654
    %v3790 = vunpack.c.l.b16 %v3655
    %v3791 = vunpack.c.l.b16 %v3656
    %v3792 = vunpack.c.l.b16 %v3657
    %v3793 = vunpack.c.l.b16 %v3658
    %v3794 = vunpack.c.l.b16 %v3659
    %v3795 = vunpack.c.l.b16 %v3660
    %v3796 = vunpack.c.l.b16 %v3661
    %v3797 = vunpack.c.l.b16 %v3662
    %v3798 = vunpack.c.l.b16 %v3663
    %v3799 = vunpack.c.l.b16 %v3664
    %v3800 = vunpack.c.l.b16 %v3665
    %v3801 = vunpack.c.l.b16 %v3666
    %v3802 = vunpack.c.l.b16 %v3667
    %v3803 = vunpack.c.l.b16 %v3668
    %v3804 = vunpack.c.l.b16 %v3669
    %v3805 = vunpack.c.l.b16 %v3670
    %v3806 = vunpack.c.l.b16 %v3671
    %v3807 = vunpack.c.l.b16 %v3672
    %v3808 = vunpack.c.l.b16 %v3673
    %v3809 = vunpack.c.l.b16 %v3674
    %v3810 = vunpack.c.l.b16 %v3675
    %v3811 = vunpack.c.l.b16 %v3676
    %v3812 = vunpack.c.l.b16 %v3677
    %v3813 = vunpack.c.l.b16 %v3678
    %v3814 = vunpack.c.l.b16 %v3679
    %v3815 = vunpack.c.l.b16 %v3680
    %v3816 = vunpack.c.l.b16 %v3681
    %v3817 = vunpack.c.l.b16 %v3682
    %v3818 = vunpack.c.l.b16 %v3683
    %v3819 = vunpack.c.l.b16 %v3684
    %v3820 = vunpack.c.l.b16 %v3685
    %v3821 = vunpack.c.l.b16 %v3686
    %v3822 = vunpack.c.l.b16 %v3687
    %v3823 = vpack.c.b16 %v3760, %v3759
    %v3824 = vpack.c.b16 %v3762, %v3761
    %v3825 = vpack.c.b16 %v3764, %v3763
    %v3826 = vpack.c.b16 %v3766, %v3765
    %v3827 = vpack.c.b16 %v3768, %v3767
    %v3828 = vpack.c.b16 %v3770, %v3769
    %v3829 = vpack.c.b16 %v3772, %v3771
    %v3830 = vpack.c.b16 %v3774, %v3773
    %v3831 = vpack.c.b16 %v3776, %v3775
    %v3832 = vpack.c.b16 %v3778, %v3777
    %v3833 = vpack.c.b16 %v3780, %v3779
    %v3834 = vpack.c.b16 %v3782, %v3781
    %v3835 = vpack.c.b16 %v3784, %v3783
    %v3836 = vpack.c.b16 %v3786, %v3785
    %v3837 = vpack.c.b16 %v3788, %v3787
    %v3838 = vpack.c.b16 %v3790, %v3789
    %v3839 = vpack.c.b16 %v3792, %v3791
    %v3840 = vpack.c.b16 %v3794, %v3793
    %v3841 = vpack.c.b16 %v3796, %v3795
    %v3842 = vpack.c.b16 %v3798, %v3797
    %v3843 = vpack.c.b16 %v3800, %v3799
    %v3844 = vpack.c.b16 %v3802, %v3801
    %v3845 = vpack.c.b16 %v3804, %v3803
    %v3846 = vpack.c.b16 %v3806, %v3805
    %v3847 = vpack.c.b16 %v3808, %v3807
    %v3848 = vpack.c.b16 %v3810, %v3809
    %v3849 = vpack.c.b16 %v3812, %v3811
    %v3850 = vpack.c.b16 %v3814, %v3813
    %v3851 = vpack.c.b16 %v3816, %v3815
    %v3852 = vpack.c.b16 %v3818, %v3817
    %v3853 = vpack.c.b16 %v3820, %v3819
    %v3854 = vpack.c.b16 %v3822, %v3821
    %3887 = vmatprep.subr.bf16.mxu0 0
    %3888 = vmatpush1.bf16.msra.mxu0 %v3823
    %3889 = vmatprep.subr.bf16.mxu0 0
    %3890 = vmatpush1.bf16.msra.mxu0 %v3824
    %3891 = vmatprep.subr.bf16.mxu0 0
    %3892 = vmatpush1.bf16.msra.mxu0 %v3825
    %3893 = vmatprep.subr.bf16.mxu0 0
    %3894 = vmatpush1.bf16.msra.mxu0 %v3826
    %3895 = vmatprep.subr.bf16.mxu0 0
    %3896 = vmatpush1.bf16.msra.mxu0 %v3827
    %3897 = vmatprep.subr.bf16.mxu0 0
    %3898 = vmatpush1.bf16.msra.mxu0 %v3828
    %3899 = vmatprep.subr.bf16.mxu0 0
    %3900 = vmatpush1.bf16.msra.mxu0 %v3829
    %3901 = vmatprep.subr.bf16.mxu0 0
    %3902 = vmatpush1.bf16.msra.mxu0 %v3830
    %3903 = vmatprep.subr.bf16.mxu0 0
    %3904 = vmatpush1.bf16.msra.mxu0 %v3831
    %3905 = vmatprep.subr.bf16.mxu0 0
    %3906 = vmatpush1.bf16.msra.mxu0 %v3832
    %3907 = vmatprep.subr.bf16.mxu0 0
    %3908 = vmatpush1.bf16.msra.mxu0 %v3833
    %3909 = vmatprep.subr.bf16.mxu0 0
    %3910 = vmatpush1.bf16.msra.mxu0 %v3834
    %3911 = vmatprep.subr.bf16.mxu0 0
    %3912 = vmatpush1.bf16.msra.mxu0 %v3835
    %3913 = vmatprep.subr.bf16.mxu0 0
    %3914 = vmatpush1.bf16.msra.mxu0 %v3836
    %3915 = vmatprep.subr.bf16.mxu0 0
    %3916 = vmatpush1.bf16.msra.mxu0 %v3837
    %3917 = vmatprep.subr.bf16.mxu0 0
    %3918 = vmatpush1.bf16.msra.mxu0 %v3838
    %3919 = vmatprep.mubr.bf16.mxu0 %v3621
    %3920 = vmatmul.mubr.bf16.gmra.mrb[0].mxu0 %v3620
    %v3921 = vpop.f32.mrb[0].mxu0
    %v3922 = vadd.f32 %v3693, %v3921
    %v3923 = vpop.f32.mrb[0].mxu0
    %v3924 = vpop.f32.mrb[0].mxu0
    %v3925 = vpop.f32.mrb[0].mxu0
    %3926 = vdwg.mxu0
    %3927 = vmatprep.subr.bf16.mxu0 0
    %3928 = vmatpush1.bf16.msra.mxu0 %v3839
    %3929 = vmatprep.subr.bf16.mxu0 0
    %3930 = vmatpush1.bf16.msra.mxu0 %v3840
    %3931 = vmatprep.subr.bf16.mxu0 0
    %3932 = vmatpush1.bf16.msra.mxu0 %v3841
    %3933 = vmatprep.subr.bf16.mxu0 0
    %3934 = vmatpush1.bf16.msra.mxu0 %v3842
    %3935 = vmatprep.subr.bf16.mxu0 0
    %3936 = vmatpush1.bf16.msra.mxu0 %v3843
    %3937 = vmatprep.subr.bf16.mxu0 0
    %3938 = vmatpush1.bf16.msra.mxu0 %v3844
    %3939 = vmatprep.subr.bf16.mxu0 0
    %3940 = vmatpush1.bf16.msra.mxu0 %v3845
    %3941 = vmatprep.subr.bf16.mxu0 0
    %3942 = vmatpush1.bf16.msra.mxu0 %v3846
    %3943 = vmatprep.subr.bf16.mxu0 0
    %3944 = vmatpush1.bf16.msra.mxu0 %v3847
    %3945 = vmatprep.subr.bf16.mxu0 0
    %3946 = vmatpush1.bf16.msra.mxu0 %v3848
    %3947 = vmatprep.subr.bf16.mxu0 0
    %3948 = vmatpush1.bf16.msra.mxu0 %v3849
    %3949 = vmatprep.subr.bf16.mxu0 0
    %3950 = vmatpush1.bf16.msra.mxu0 %v3850
    %3951 = vmatprep.subr.bf16.mxu0 0
    %3952 = vmatpush1.bf16.msra.mxu0 %v3851
    %3953 = vmatprep.subr.bf16.mxu0 0
    %3954 = vmatpush1.bf16.msra.mxu0 %v3852
    %3955 = vmatprep.subr.bf16.mxu0 0
    %3956 = vmatpush1.bf16.msra.mxu0 %v3853
    %3957 = vmatprep.subr.bf16.mxu0 0
    %3958 = vmatpush1.bf16.msra.mxu0 %v3854
    %3959 = vmatprep.mubr.bf16.mxu0 %v3623
    %3960 = vmatmul.mubr.bf16.gmra.mrb[0].mxu0 %v3622
    %v3961 = vpop.f32.mrb[0].mxu0
    %v3962 = vadd.f32 %v3922, %v3961
    %v3963 = vpop.f32.mrb[0].mxu0
    %v3964 = vpop.f32.mrb[0].mxu0
    %v3965 = vpop.f32.mrb[0].mxu0
    %3966 = vdwg.mxu0
    %vm3967 = vcmask 74752
    %3968 = vst.msk [vmem:[#allocation10] sm:$0x3] %vm3967, %v3962
    // Predicated region
    $region50: #{cnn_forward_pallas.1} parent=1 // pred_check
      _
    $region51: #{cnn_forward_pallas.1} parent=1 // pred_check_branch
      %3970 = sbr.rel (0) target = $region53
    $region52: #{cnn_forward_pallas.1} parent=1 // pred_region
      %s3972 = ssub.s32 32, 32
      %3973 = vsyncadd [#allocation9], %s3972
      %s3975 = sshll.u32 [#allocation10], 4
      %s3976 = int_to_ptr.vmem [resolvable:$true] %s3975
      %3978 = dma.vmem_to_hbm [thread:$0]  %s3976, 32, %s11, [#allocation9]
    $region53: #{cnn_forward_pallas.1} parent=1 // pred_fallthru
      _
    // Predicated region
    $region54: #{cnn_forward_pallas.1} parent=1 // pred_check
      _
    $region55: #{cnn_forward_pallas.1} parent=1 // pred_check_branch
      %3980 = sbr.rel (0) target = $region57
    $region56: #{cnn_forward_pallas.1} parent=1 // pred_region
      %3981 = dma.done [#allocation9], 32
    $region57: #{cnn_forward_pallas.1} parent=1 // pred_fallthru
      _
    %3982 = vsyncpa [#allocation8], 1
    %3983 = vsyncpa [#allocation9], 1

</llo_original>
